<compile_context>
chip_gen: v7x
topology: tpu7x:2x2x1
jax: 0.10.0
libtpu: 0.0.40
codegen_flags: <defaults>
</compile_context>

<pallas_src>
import jax
import jax.numpy as jnp
from jax import lax
from jax.experimental import pallas as pl
from jax.experimental.pallas import tpu as pltpu

KSIZE = 3
PAD = KSIZE // 2          # = 1 (reflect padding)
NEG_SLOPE = 0.01          # nn.LeakyReLU() default


def _reflect_pad1_inplace(pad_ref, H, W):
    """Reflect-pad by 1 the interior [1:H+1, 1:W+1, :] of pad_ref, in place (VMEM)."""
    # top / bottom rows (interior columns; corners are filled by the column pass)
    pad_ref[0:1, 1:W + 1, :] = pad_ref[2:3, 1:W + 1, :]
    pad_ref[H + 1:H + 2, 1:W + 1, :] = pad_ref[H - 1:H, 1:W + 1, :]
    # left / right columns over the full padded height (also fills the 4 corners)
    pad_ref[:, 0:1, :] = pad_ref[:, 2:3, :]
    pad_ref[:, W + 1:W + 2, :] = pad_ref[:, W - 1:W, :]


def _im2col_into(pad_ref, patch_ref, H, W, C):
    """patch_ref[:, t*C:(t+1)*C] = pad_ref[kh:kh+H, kw:kw+W, :] for t = kh*3 + kw."""
    for kh in range(KSIZE):
        for kw in range(KSIZE):
            t = kh * KSIZE + kw
            patch_ref[:, t * C:(t + 1) * C] = (
                pad_ref[kh:kh + H, kw:kw + W, :].reshape(H * W, C))


def spatial_attention_kernel(x_ref, rx_ref, w1_ref, b1_ref, w2_ref, b2_ref,
                             o_ref, pad_ref, patch_ref):
    """One batch element per grid step.

    x_ref:     (1, H, W, Cx)        first input, NHWC
    rx_ref:    (1, H, W, Crx)       second input, NHWC
    w1_ref:    (9*Cin, Cin)         conv1 im2col weights (tap-major, channel-minor K)
    b1_ref:    (1, Cin)
    w2_ref:    (9*Cin, Cout)        conv2 im2col weights
    b2_ref:    (1, Cout)
    o_ref:     (1, H, W, Cout)      sigmoid attention output
    pad_ref:   (H+2, W+2, Cin)      VMEM scratch: reflect-padded activations
    patch_ref: (H*W, 9*Cin)         VMEM scratch: im2col patch matrix
    """
    H = o_ref.shape[1]
    W = o_ref.shape[2]
    Cout = o_ref.shape[3]
    Cx = x_ref.shape[3]
    Crx = rx_ref.shape[3]
    Cin = Cx + Crx

    # --- channel concat fused into the padded-buffer interior write (no HBM concat) ---
    pad_ref[1:H + 1, 1:W + 1, 0:Cx] = x_ref[0].astype(jnp.float32)
    pad_ref[1:H + 1, 1:W + 1, Cx:Cin] = rx_ref[0].astype(jnp.float32)
    _reflect_pad1_inplace(pad_ref, H, W)

    # --- conv1: single im2col matmul (K = 9*Cin) + bias + LeakyReLU ---
    _im2col_into(pad_ref, patch_ref, H, W, Cin)
    h1 = jnp.dot(patch_ref[...], w1_ref[...],
                 preferred_element_type=jnp.float32) + b1_ref[...]
    h1 = jnp.where(h1 > 0, h1, NEG_SLOPE * h1)

    # --- conv2 on LeakyReLU(conv1): reuse the same pad / patch scratch ---
    pad_ref[1:H + 1, 1:W + 1, :] = h1.reshape(H, W, Cin)
    _reflect_pad1_inplace(pad_ref, H, W)
    _im2col_into(pad_ref, patch_ref, H, W, Cin)
    z = jnp.dot(patch_ref[...], w2_ref[...],
                preferred_element_type=jnp.float32) + b2_ref[...]

    # --- Sigmoid + store (only HBM write of the whole layer) ---
    att = 1.0 / (1.0 + jnp.exp(-z))
    o_ref[0] = att.reshape(H, W, Cout).astype(o_ref.dtype)


def spatial_attention_forward(x_nchw, rx_nchw, w1_oihw, b1, w2_oihw, b2):
    """SpatialAttentionLayer.forward(x, rx) -> attention map, NCHW in / NCHW out."""
    N, Cx, H, W = x_nchw.shape
    Crx = rx_nchw.shape[1]
    Cin = Cx + Crx
    Cout = w2_oihw.shape[0]
    assert w1_oihw.shape == (Cin, Cin, KSIZE, KSIZE)
    assert w2_oihw.shape == (Cout, Cin, KSIZE, KSIZE)

    # NCHW -> NHWC once at the module boundary (keep NHWC across chained layers).
    x_nhwc = jnp.transpose(x_nchw, (0, 2, 3, 1))
    rx_nhwc = jnp.transpose(rx_nchw, (0, 2, 3, 1))

    # OIHW -> im2col weight matrices, K index = (kh*3 + kw)*Cin + cin.
    w1_mat = jnp.transpose(w1_oihw, (2, 3, 1, 0)).reshape(KSIZE * KSIZE * Cin, Cin)
    w2_mat = jnp.transpose(w2_oihw, (2, 3, 1, 0)).reshape(KSIZE * KSIZE * Cin, Cout)
    b1_2d = b1.reshape(1, Cin).astype(jnp.float32)
    b2_2d = b2.reshape(1, Cout).astype(jnp.float32)

    att_nhwc = pl.pallas_call(
        spatial_attention_kernel,
        out_shape=jax.ShapeDtypeStruct((N, H, W, Cout), x_nchw.dtype),
        grid_spec=pltpu.PrefetchScalarGridSpec(
            num_scalar_prefetch=0,
            grid=(N,),
            in_specs=[
                pl.BlockSpec((1, H, W, Cx), lambda n: (n, 0, 0, 0)),
                pl.BlockSpec((1, H, W, Crx), lambda n: (n, 0, 0, 0)),
                pl.BlockSpec((KSIZE * KSIZE * Cin, Cin), lambda n: (0, 0)),
                pl.BlockSpec((1, Cin), lambda n: (0, 0)),
                pl.BlockSpec((KSIZE * KSIZE * Cin, Cout), lambda n: (0, 0)),
                pl.BlockSpec((1, Cout), lambda n: (0, 0)),
            ],
            out_specs=pl.BlockSpec((1, H, W, Cout), lambda n: (n, 0, 0, 0)),
            scratch_shapes=[
                pltpu.VMEM((H + 2 * PAD, W + 2 * PAD, Cin), jnp.float32),
                pltpu.VMEM((H * W, KSIZE * KSIZE * Cin), jnp.float32),
            ],
        ),
        compiler_params=pltpu.CompilerParams(
            dimension_semantics=("parallel",)),
    )(x_nhwc, rx_nhwc, w1_mat, b1_2d, w2_mat, b2_2d)

    # Back to PyTorch NCHW.
    return jnp.transpose(att_nhwc, (0, 3, 1, 2))


def _reference_forward(x_nchw, rx_nchw, w1, b1, w2, b2):
    """Pure-JAX reference matching PyTorch semantics (reflect pad, cross-correlation)."""
    def conv_reflect(inp, w, b):
        ip = jnp.pad(inp, ((0, 0), (0, 0), (PAD, PAD), (PAD, PAD)), mode="reflect")
        y = lax.conv_general_dilated(
            ip, w, window_strides=(1, 1), padding="VALID",
            dimension_numbers=("NCHW", "OIHW", "NCHW"))
        return y + b.reshape(1, -1, 1, 1)

    xrx = jnp.concatenate([x_nchw, rx_nchw], axis=1)
    h = conv_reflect(xrx, w1, b1)
    h = jnp.where(h > 0, h, NEG_SLOPE * h)
    z = conv_reflect(h, w2, b2)
    return 1.0 / (1.0 + jnp.exp(-z))


if __name__ == "__main__":
    # SpatialAttentionLayer(in_channels=8, out_channels=4): x and rx each 4 channels.
    N, C, H, W = 2, 4, 16, 16
    Cin, Cout = 2 * C, 4

    key = jax.random.PRNGKey(0)
    kx, kr, kw1, kb1, kw2, kb2 = jax.random.split(key, 6)

    x = jax.random.normal(kx, (N, C, H, W), dtype=jnp.float32)
    rx = jax.random.normal(kr, (N, C, H, W), dtype=jnp.float32)
    w1 = 0.1 * jax.random.normal(kw1, (Cin, Cin, KSIZE, KSIZE), dtype=jnp.float32)
    b1 = 0.1 * jax.random.normal(kb1, (Cin,), dtype=jnp.float32)
    w2 = 0.1 * jax.random.normal(kw2, (Cout, Cin, KSIZE, KSIZE), dtype=jnp.float32)
    b2 = 0.1 * jax.random.normal(kb2, (Cout,), dtype=jnp.float32)

    fwd = jax.jit(spatial_attention_forward)
    out = jax.block_until_ready(fwd(x, rx, w1, b1, w2, b2))

    ref = jax.block_until_ready(_reference_forward(x, rx, w1, b1, w2, b2))
    assert out.shape == (N, Cout, H, W), out.shape
    assert jnp.allclose(out, ref, atol=1e-4, rtol=1e-4), \
        float(jnp.max(jnp.abs(out - ref)))

    print("KERNEL_OK")
</pallas_src>

<mosaic_0001>
module attributes {stable_mosaic.version = 11 : i64} {
  func.func @spatial_attention_kernel(%arg0: i32, %arg1: memref<1x16x16x4xf32, #tpu.memory_space<vmem>>, %arg2: memref<1x16x16x4xf32, #tpu.memory_space<vmem>>, %arg3: memref<72x8xf32, #tpu.memory_space<vmem>>, %arg4: memref<1x8xf32, #tpu.memory_space<vmem>>, %arg5: memref<72x4xf32, #tpu.memory_space<vmem>>, %arg6: memref<1x4xf32, #tpu.memory_space<vmem>>, %arg7: memref<1x16x16x4xf32, #tpu.memory_space<vmem>>, %arg8: memref<18x18x8xf32, #tpu.memory_space<vmem>>, %arg9: memref<256x72xf32, #tpu.memory_space<vmem>>) attributes {dimension_semantics = [#tpu.dimension_semantics<parallel>], iteration_bounds = array<i64: 2>, scalar_prefetch = 0 : i64, scratch_operands = 2 : i64, tpu.core_type = #tpu.core_type<tc>, window_params = [{transform_indices = @transform_0, window_bounds = array<i64: 1, 16, 16, 4>}, {transform_indices = @transform_1, window_bounds = array<i64: 1, 16, 16, 4>}, {pipeline_mode = #tpu.pipeline_mode<synchronous>, transform_indices = @transform_2, window_bounds = array<i64: 72, 8>}, {pipeline_mode = #tpu.pipeline_mode<synchronous>, transform_indices = @transform_3, window_bounds = array<i64: 1, 8>}, {pipeline_mode = #tpu.pipeline_mode<synchronous>, transform_indices = @transform_4, window_bounds = array<i64: 72, 4>}, {pipeline_mode = #tpu.pipeline_mode<synchronous>, transform_indices = @transform_5, window_bounds = array<i64: 1, 4>}, {transform_indices = @transform_6, window_bounds = array<i64: 1, 16, 16, 4>}]} {
    %c0 = arith.constant 0 : index
    %c0_0 = arith.constant 0 : index
    %c0_1 = arith.constant 0 : index
    %c0_2 = arith.constant 0 : index
    %0 = vector.load %arg1[%c0, %c0_0, %c0_1, %c0_2] : memref<1x16x16x4xf32, #tpu.memory_space<vmem>>, vector<1x16x16x4xf32>
    %1 = vector.shape_cast %0 : vector<1x16x16x4xf32> to vector<16x16x4xf32>
    %c1 = arith.constant 1 : index
    %c1_3 = arith.constant 1 : index
    %c0_4 = arith.constant 0 : index
    %2 = vector.load %arg8[%c1, %c1_3, %c0_4] : memref<18x18x8xf32, #tpu.memory_space<vmem>>, vector<16x16x4xf32>
    tpu.vector_store %arg8[%c1, %c1_3, %c0_4], %1 {strides = array<i32>} : memref<18x18x8xf32, #tpu.memory_space<vmem>>, vector<16x16x4xf32>,
    %c0_5 = arith.constant 0 : index
    %c0_6 = arith.constant 0 : index
    %c0_7 = arith.constant 0 : index
    %c0_8 = arith.constant 0 : index
    %3 = vector.load %arg2[%c0_5, %c0_6, %c0_7, %c0_8] : memref<1x16x16x4xf32, #tpu.memory_space<vmem>>, vector<1x16x16x4xf32>
    %4 = vector.shape_cast %3 : vector<1x16x16x4xf32> to vector<16x16x4xf32>
    %c1_9 = arith.constant 1 : index
    %c1_10 = arith.constant 1 : index
    %c4 = arith.constant 4 : index
    %5 = vector.load %arg8[%c1_9, %c1_10, %c4] : memref<18x18x8xf32, #tpu.memory_space<vmem>>, vector<16x16x4xf32>
    tpu.vector_store %arg8[%c1_9, %c1_10, %c4], %4 {strides = array<i32>} : memref<18x18x8xf32, #tpu.memory_space<vmem>>, vector<16x16x4xf32>,
    %c2 = arith.constant 2 : index
    %c1_11 = arith.constant 1 : index
    %c0_12 = arith.constant 0 : index
    %6 = vector.load %arg8[%c2, %c1_11, %c0_12] : memref<18x18x8xf32, #tpu.memory_space<vmem>>, vector<1x16x8xf32>
    %c0_13 = arith.constant 0 : index
    %c1_14 = arith.constant 1 : index
    %c0_15 = arith.constant 0 : index
    %7 = vector.load %arg8[%c0_13, %c1_14, %c0_15] : memref<18x18x8xf32, #tpu.memory_space<vmem>>, vector<1x16x8xf32>
    tpu.vector_store %arg8[%c0_13, %c1_14, %c0_15], %6 {strides = array<i32>} : memref<18x18x8xf32, #tpu.memory_space<vmem>>, vector<1x16x8xf32>,
    %c15 = arith.constant 15 : index
    %c1_16 = arith.constant 1 : index
    %c0_17 = arith.constant 0 : index
    %8 = vector.load %arg8[%c15, %c1_16, %c0_17] : memref<18x18x8xf32, #tpu.memory_space<vmem>>, vector<1x16x8xf32>
    %c17 = arith.constant 17 : index
    %c1_18 = arith.constant 1 : index
    %c0_19 = arith.constant 0 : index
    %9 = vector.load %arg8[%c17, %c1_18, %c0_19] : memref<18x18x8xf32, #tpu.memory_space<vmem>>, vector<1x16x8xf32>
    tpu.vector_store %arg8[%c17, %c1_18, %c0_19], %8 {strides = array<i32>} : memref<18x18x8xf32, #tpu.memory_space<vmem>>, vector<1x16x8xf32>,
    %c0_20 = arith.constant 0 : index
    %c2_21 = arith.constant 2 : index
    %c0_22 = arith.constant 0 : index
    %10 = vector.load %arg8[%c0_20, %c2_21, %c0_22] : memref<18x18x8xf32, #tpu.memory_space<vmem>>, vector<18x1x8xf32>
    %c0_23 = arith.constant 0 : index
    %c0_24 = arith.constant 0 : index
    %c0_25 = arith.constant 0 : index
    %11 = vector.load %arg8[%c0_23, %c0_24, %c0_25] : memref<18x18x8xf32, #tpu.memory_space<vmem>>, vector<18x1x8xf32>
    tpu.vector_store %arg8[%c0_23, %c0_24, %c0_25], %10 {strides = array<i32>} : memref<18x18x8xf32, #tpu.memory_space<vmem>>, vector<18x1x8xf32>,
    %c0_26 = arith.constant 0 : index
    %c15_27 = arith.constant 15 : index
    %c0_28 = arith.constant 0 : index
    %12 = vector.load %arg8[%c0_26, %c15_27, %c0_28] : memref<18x18x8xf32, #tpu.memory_space<vmem>>, vector<18x1x8xf32>
    %c0_29 = arith.constant 0 : index
    %c17_30 = arith.constant 17 : index
    %c0_31 = arith.constant 0 : index
    %13 = vector.load %arg8[%c0_29, %c17_30, %c0_31] : memref<18x18x8xf32, #tpu.memory_space<vmem>>, vector<18x1x8xf32>
    tpu.vector_store %arg8[%c0_29, %c17_30, %c0_31], %12 {strides = array<i32>} : memref<18x18x8xf32, #tpu.memory_space<vmem>>, vector<18x1x8xf32>,
    %c0_32 = arith.constant 0 : index
    %c0_33 = arith.constant 0 : index
    %c0_34 = arith.constant 0 : index
    %14 = vector.load %arg8[%c0_32, %c0_33, %c0_34] : memref<18x18x8xf32, #tpu.memory_space<vmem>>, vector<16x16x8xf32>
    %15 = vector.shape_cast %14 : vector<16x16x8xf32> to vector<256x8xf32>
    %c0_35 = arith.constant 0 : index
    %c0_36 = arith.constant 0 : index
    %16 = vector.load %arg9[%c0_35, %c0_36] : memref<256x72xf32, #tpu.memory_space<vmem>>, vector<256x8xf32>
    tpu.vector_store %arg9[%c0_35, %c0_36], %15 {strides = array<i32>} : memref<256x72xf32, #tpu.memory_space<vmem>>, vector<256x8xf32>,
    %c0_37 = arith.constant 0 : index
    %c1_38 = arith.constant 1 : index
    %c0_39 = arith.constant 0 : index
    %17 = vector.load %arg8[%c0_37, %c1_38, %c0_39] : memref<18x18x8xf32, #tpu.memory_space<vmem>>, vector<16x16x8xf32>
    %18 = vector.shape_cast %17 : vector<16x16x8xf32> to vector<256x8xf32>
    %c0_40 = arith.constant 0 : index
    %c8 = arith.constant 8 : index
    %19 = vector.load %arg9[%c0_40, %c8] : memref<256x72xf32, #tpu.memory_space<vmem>>, vector<256x8xf32>
    tpu.vector_store %arg9[%c0_40, %c8], %18 {strides = array<i32>} : memref<256x72xf32, #tpu.memory_space<vmem>>, vector<256x8xf32>,
    %c0_41 = arith.constant 0 : index
    %c2_42 = arith.constant 2 : index
    %c0_43 = arith.constant 0 : index
    %20 = vector.load %arg8[%c0_41, %c2_42, %c0_43] : memref<18x18x8xf32, #tpu.memory_space<vmem>>, vector<16x16x8xf32>
    %21 = vector.shape_cast %20 : vector<16x16x8xf32> to vector<256x8xf32>
    %c0_44 = arith.constant 0 : index
    %c16 = arith.constant 16 : index
    %22 = vector.load %arg9[%c0_44, %c16] : memref<256x72xf32, #tpu.memory_space<vmem>>, vector<256x8xf32>
    tpu.vector_store %arg9[%c0_44, %c16], %21 {strides = array<i32>} : memref<256x72xf32, #tpu.memory_space<vmem>>, vector<256x8xf32>,
    %c1_45 = arith.constant 1 : index
    %c0_46 = arith.constant 0 : index
    %c0_47 = arith.constant 0 : index
    %23 = vector.load %arg8[%c1_45, %c0_46, %c0_47] : memref<18x18x8xf32, #tpu.memory_space<vmem>>, vector<16x16x8xf32>
    %24 = vector.shape_cast %23 : vector<16x16x8xf32> to vector<256x8xf32>
    %c0_48 = arith.constant 0 : index
    %c24 = arith.constant 24 : index
    %25 = vector.load %arg9[%c0_48, %c24] : memref<256x72xf32, #tpu.memory_space<vmem>>, vector<256x8xf32>
    tpu.vector_store %arg9[%c0_48, %c24], %24 {strides = array<i32>} : memref<256x72xf32, #tpu.memory_space<vmem>>, vector<256x8xf32>,
    %c1_49 = arith.constant 1 : index
    %c1_50 = arith.constant 1 : index
    %c0_51 = arith.constant 0 : index
    %26 = vector.load %arg8[%c1_49, %c1_50, %c0_51] : memref<18x18x8xf32, #tpu.memory_space<vmem>>, vector<16x16x8xf32>
    %27 = vector.shape_cast %26 : vector<16x16x8xf32> to vector<256x8xf32>
    %c0_52 = arith.constant 0 : index
    %c32 = arith.constant 32 : index
    %28 = vector.load %arg9[%c0_52, %c32] : memref<256x72xf32, #tpu.memory_space<vmem>>, vector<256x8xf32>
    tpu.vector_store %arg9[%c0_52, %c32], %27 {strides = array<i32>} : memref<256x72xf32, #tpu.memory_space<vmem>>, vector<256x8xf32>,
    %c1_53 = arith.constant 1 : index
    %c2_54 = arith.constant 2 : index
    %c0_55 = arith.constant 0 : index
    %29 = vector.load %arg8[%c1_53, %c2_54, %c0_55] : memref<18x18x8xf32, #tpu.memory_space<vmem>>, vector<16x16x8xf32>
    %30 = vector.shape_cast %29 : vector<16x16x8xf32> to vector<256x8xf32>
    %c0_56 = arith.constant 0 : index
    %c40 = arith.constant 40 : index
    %31 = vector.load %arg9[%c0_56, %c40] : memref<256x72xf32, #tpu.memory_space<vmem>>, vector<256x8xf32>
    tpu.vector_store %arg9[%c0_56, %c40], %30 {strides = array<i32>} : memref<256x72xf32, #tpu.memory_space<vmem>>, vector<256x8xf32>,
    %c2_57 = arith.constant 2 : index
    %c0_58 = arith.constant 0 : index
    %c0_59 = arith.constant 0 : index
    %32 = vector.load %arg8[%c2_57, %c0_58, %c0_59] : memref<18x18x8xf32, #tpu.memory_space<vmem>>, vector<16x16x8xf32>
    %33 = vector.shape_cast %32 : vector<16x16x8xf32> to vector<256x8xf32>
    %c0_60 = arith.constant 0 : index
    %c48 = arith.constant 48 : index
    %34 = vector.load %arg9[%c0_60, %c48] : memref<256x72xf32, #tpu.memory_space<vmem>>, vector<256x8xf32>
    tpu.vector_store %arg9[%c0_60, %c48], %33 {strides = array<i32>} : memref<256x72xf32, #tpu.memory_space<vmem>>, vector<256x8xf32>,
    %c2_61 = arith.constant 2 : index
    %c1_62 = arith.constant 1 : index
    %c0_63 = arith.constant 0 : index
    %35 = vector.load %arg8[%c2_61, %c1_62, %c0_63] : memref<18x18x8xf32, #tpu.memory_space<vmem>>, vector<16x16x8xf32>
    %36 = vector.shape_cast %35 : vector<16x16x8xf32> to vector<256x8xf32>
    %c0_64 = arith.constant 0 : index
    %c56 = arith.constant 56 : index
    %37 = vector.load %arg9[%c0_64, %c56] : memref<256x72xf32, #tpu.memory_space<vmem>>, vector<256x8xf32>
    tpu.vector_store %arg9[%c0_64, %c56], %36 {strides = array<i32>} : memref<256x72xf32, #tpu.memory_space<vmem>>, vector<256x8xf32>,
    %c2_65 = arith.constant 2 : index
    %c2_66 = arith.constant 2 : index
    %c0_67 = arith.constant 0 : index
    %38 = vector.load %arg8[%c2_65, %c2_66, %c0_67] : memref<18x18x8xf32, #tpu.memory_space<vmem>>, vector<16x16x8xf32>
    %39 = vector.shape_cast %38 : vector<16x16x8xf32> to vector<256x8xf32>
    %c0_68 = arith.constant 0 : index
    %c64 = arith.constant 64 : index
    %40 = vector.load %arg9[%c0_68, %c64] : memref<256x72xf32, #tpu.memory_space<vmem>>, vector<256x8xf32>
    tpu.vector_store %arg9[%c0_68, %c64], %39 {strides = array<i32>} : memref<256x72xf32, #tpu.memory_space<vmem>>, vector<256x8xf32>,
    %c0_69 = arith.constant 0 : index
    %c0_70 = arith.constant 0 : index
    %41 = vector.load %arg9[%c0_69, %c0_70] : memref<256x72xf32, #tpu.memory_space<vmem>>, vector<256x72xf32>
    %c0_71 = arith.constant 0 : index
    %c0_72 = arith.constant 0 : index
    %42 = vector.load %arg3[%c0_71, %c0_72] : memref<72x8xf32, #tpu.memory_space<vmem>>, vector<72x8xf32>
    %cst = arith.constant dense<0.000000e+00> : vector<256x8xf32>
    %43 = tpu.matmul %41, %42, %cst {dimension_numbers = #tpu.dot_dimension_numbers<[1], [0], [0], [1], [0, 0, 1, 1], [], []>} : vector<256x72xf32>, vector<72x8xf32>, vector<256x8xf32> -> vector<256x8xf32>
    %c0_73 = arith.constant 0 : index
    %c0_74 = arith.constant 0 : index
    %44 = vector.load %arg4[%c0_73, %c0_74] : memref<1x8xf32, #tpu.memory_space<vmem>>, vector<1x8xf32>
    %45 = vector.broadcast %44 : vector<1x8xf32> to vector<256x8xf32>
    %46 = arith.addf %43, %45 : vector<256x8xf32>
    %cst_75 = arith.constant 0.000000e+00 : f32
    %47 = vector.broadcast %cst_75 : f32 to vector<256x8xf32>
    %48 = arith.cmpf ogt, %46, %47 : vector<256x8xf32>
    %cst_76 = arith.constant 0.00999999977 : f32
    %49 = vector.broadcast %cst_76 : f32 to vector<256x8xf32>
    %50 = arith.mulf %49, %46 : vector<256x8xf32>
    %51 = arith.select %48, %46, %50 : vector<256x8xi1>, vector<256x8xf32>
    %52 = vector.shape_cast %51 : vector<256x8xf32> to vector<16x16x8xf32>
    %c1_77 = arith.constant 1 : index
    %c1_78 = arith.constant 1 : index
    %c0_79 = arith.constant 0 : index
    %53 = vector.load %arg8[%c1_77, %c1_78, %c0_79] : memref<18x18x8xf32, #tpu.memory_space<vmem>>, vector<16x16x8xf32>
    tpu.vector_store %arg8[%c1_77, %c1_78, %c0_79], %52 {strides = array<i32>} : memref<18x18x8xf32, #tpu.memory_space<vmem>>, vector<16x16x8xf32>,
    %c2_80 = arith.constant 2 : index
    %c1_81 = arith.constant 1 : index
    %c0_82 = arith.constant 0 : index
    %54 = vector.load %arg8[%c2_80, %c1_81, %c0_82] : memref<18x18x8xf32, #tpu.memory_space<vmem>>, vector<1x16x8xf32>
    %c0_83 = arith.constant 0 : index
    %c1_84 = arith.constant 1 : index
    %c0_85 = arith.constant 0 : index
    %55 = vector.load %arg8[%c0_83, %c1_84, %c0_85] : memref<18x18x8xf32, #tpu.memory_space<vmem>>, vector<1x16x8xf32>
    tpu.vector_store %arg8[%c0_83, %c1_84, %c0_85], %54 {strides = array<i32>} : memref<18x18x8xf32, #tpu.memory_space<vmem>>, vector<1x16x8xf32>,
    %c15_86 = arith.constant 15 : index
    %c1_87 = arith.constant 1 : index
    %c0_88 = arith.constant 0 : index
    %56 = vector.load %arg8[%c15_86, %c1_87, %c0_88] : memref<18x18x8xf32, #tpu.memory_space<vmem>>, vector<1x16x8xf32>
    %c17_89 = arith.constant 17 : index
    %c1_90 = arith.constant 1 : index
    %c0_91 = arith.constant 0 : index
    %57 = vector.load %arg8[%c17_89, %c1_90, %c0_91] : memref<18x18x8xf32, #tpu.memory_space<vmem>>, vector<1x16x8xf32>
    tpu.vector_store %arg8[%c17_89, %c1_90, %c0_91], %56 {strides = array<i32>} : memref<18x18x8xf32, #tpu.memory_space<vmem>>, vector<1x16x8xf32>,
    %c0_92 = arith.constant 0 : index
    %c2_93 = arith.constant 2 : index
    %c0_94 = arith.constant 0 : index
    %58 = vector.load %arg8[%c0_92, %c2_93, %c0_94] : memref<18x18x8xf32, #tpu.memory_space<vmem>>, vector<18x1x8xf32>
    %c0_95 = arith.constant 0 : index
    %c0_96 = arith.constant 0 : index
    %c0_97 = arith.constant 0 : index
    %59 = vector.load %arg8[%c0_95, %c0_96, %c0_97] : memref<18x18x8xf32, #tpu.memory_space<vmem>>, vector<18x1x8xf32>
    tpu.vector_store %arg8[%c0_95, %c0_96, %c0_97], %58 {strides = array<i32>} : memref<18x18x8xf32, #tpu.memory_space<vmem>>, vector<18x1x8xf32>,
    %c0_98 = arith.constant 0 : index
    %c15_99 = arith.constant 15 : index
    %c0_100 = arith.constant 0 : index
    %60 = vector.load %arg8[%c0_98, %c15_99, %c0_100] : memref<18x18x8xf32, #tpu.memory_space<vmem>>, vector<18x1x8xf32>
    %c0_101 = arith.constant 0 : index
    %c17_102 = arith.constant 17 : index
    %c0_103 = arith.constant 0 : index
    %61 = vector.load %arg8[%c0_101, %c17_102, %c0_103] : memref<18x18x8xf32, #tpu.memory_space<vmem>>, vector<18x1x8xf32>
    tpu.vector_store %arg8[%c0_101, %c17_102, %c0_103], %60 {strides = array<i32>} : memref<18x18x8xf32, #tpu.memory_space<vmem>>, vector<18x1x8xf32>,
    %c0_104 = arith.constant 0 : index
    %c0_105 = arith.constant 0 : index
    %c0_106 = arith.constant 0 : index
    %62 = vector.load %arg8[%c0_104, %c0_105, %c0_106] : memref<18x18x8xf32, #tpu.memory_space<vmem>>, vector<16x16x8xf32>
    %63 = vector.shape_cast %62 : vector<16x16x8xf32> to vector<256x8xf32>
    %c0_107 = arith.constant 0 : index
    %c0_108 = arith.constant 0 : index
    %64 = vector.load %arg9[%c0_107, %c0_108] : memref<256x72xf32, #tpu.memory_space<vmem>>, vector<256x8xf32>
    tpu.vector_store %arg9[%c0_107, %c0_108], %63 {strides = array<i32>} : memref<256x72xf32, #tpu.memory_space<vmem>>, vector<256x8xf32>,
    %c0_109 = arith.constant 0 : index
    %c1_110 = arith.constant 1 : index
    %c0_111 = arith.constant 0 : index
    %65 = vector.load %arg8[%c0_109, %c1_110, %c0_111] : memref<18x18x8xf32, #tpu.memory_space<vmem>>, vector<16x16x8xf32>
    %66 = vector.shape_cast %65 : vector<16x16x8xf32> to vector<256x8xf32>
    %c0_112 = arith.constant 0 : index
    %c8_113 = arith.constant 8 : index
    %67 = vector.load %arg9[%c0_112, %c8_113] : memref<256x72xf32, #tpu.memory_space<vmem>>, vector<256x8xf32>
    tpu.vector_store %arg9[%c0_112, %c8_113], %66 {strides = array<i32>} : memref<256x72xf32, #tpu.memory_space<vmem>>, vector<256x8xf32>,
    %c0_114 = arith.constant 0 : index
    %c2_115 = arith.constant 2 : index
    %c0_116 = arith.constant 0 : index
    %68 = vector.load %arg8[%c0_114, %c2_115, %c0_116] : memref<18x18x8xf32, #tpu.memory_space<vmem>>, vector<16x16x8xf32>
    %69 = vector.shape_cast %68 : vector<16x16x8xf32> to vector<256x8xf32>
    %c0_117 = arith.constant 0 : index
    %c16_118 = arith.constant 16 : index
    %70 = vector.load %arg9[%c0_117, %c16_118] : memref<256x72xf32, #tpu.memory_space<vmem>>, vector<256x8xf32>
    tpu.vector_store %arg9[%c0_117, %c16_118], %69 {strides = array<i32>} : memref<256x72xf32, #tpu.memory_space<vmem>>, vector<256x8xf32>,
    %c1_119 = arith.constant 1 : index
    %c0_120 = arith.constant 0 : index
    %c0_121 = arith.constant 0 : index
    %71 = vector.load %arg8[%c1_119, %c0_120, %c0_121] : memref<18x18x8xf32, #tpu.memory_space<vmem>>, vector<16x16x8xf32>
    %72 = vector.shape_cast %71 : vector<16x16x8xf32> to vector<256x8xf32>
    %c0_122 = arith.constant 0 : index
    %c24_123 = arith.constant 24 : index
    %73 = vector.load %arg9[%c0_122, %c24_123] : memref<256x72xf32, #tpu.memory_space<vmem>>, vector<256x8xf32>
    tpu.vector_store %arg9[%c0_122, %c24_123], %72 {strides = array<i32>} : memref<256x72xf32, #tpu.memory_space<vmem>>, vector<256x8xf32>,
    %c1_124 = arith.constant 1 : index
    %c1_125 = arith.constant 1 : index
    %c0_126 = arith.constant 0 : index
    %74 = vector.load %arg8[%c1_124, %c1_125, %c0_126] : memref<18x18x8xf32, #tpu.memory_space<vmem>>, vector<16x16x8xf32>
    %75 = vector.shape_cast %74 : vector<16x16x8xf32> to vector<256x8xf32>
    %c0_127 = arith.constant 0 : index
    %c32_128 = arith.constant 32 : index
    %76 = vector.load %arg9[%c0_127, %c32_128] : memref<256x72xf32, #tpu.memory_space<vmem>>, vector<256x8xf32>
    tpu.vector_store %arg9[%c0_127, %c32_128], %75 {strides = array<i32>} : memref<256x72xf32, #tpu.memory_space<vmem>>, vector<256x8xf32>,
    %c1_129 = arith.constant 1 : index
    %c2_130 = arith.constant 2 : index
    %c0_131 = arith.constant 0 : index
    %77 = vector.load %arg8[%c1_129, %c2_130, %c0_131] : memref<18x18x8xf32, #tpu.memory_space<vmem>>, vector<16x16x8xf32>
    %78 = vector.shape_cast %77 : vector<16x16x8xf32> to vector<256x8xf32>
    %c0_132 = arith.constant 0 : index
    %c40_133 = arith.constant 40 : index
    %79 = vector.load %arg9[%c0_132, %c40_133] : memref<256x72xf32, #tpu.memory_space<vmem>>, vector<256x8xf32>
    tpu.vector_store %arg9[%c0_132, %c40_133], %78 {strides = array<i32>} : memref<256x72xf32, #tpu.memory_space<vmem>>, vector<256x8xf32>,
    %c2_134 = arith.constant 2 : index
    %c0_135 = arith.constant 0 : index
    %c0_136 = arith.constant 0 : index
    %80 = vector.load %arg8[%c2_134, %c0_135, %c0_136] : memref<18x18x8xf32, #tpu.memory_space<vmem>>, vector<16x16x8xf32>
    %81 = vector.shape_cast %80 : vector<16x16x8xf32> to vector<256x8xf32>
    %c0_137 = arith.constant 0 : index
    %c48_138 = arith.constant 48 : index
    %82 = vector.load %arg9[%c0_137, %c48_138] : memref<256x72xf32, #tpu.memory_space<vmem>>, vector<256x8xf32>
    tpu.vector_store %arg9[%c0_137, %c48_138], %81 {strides = array<i32>} : memref<256x72xf32, #tpu.memory_space<vmem>>, vector<256x8xf32>,
    %c2_139 = arith.constant 2 : index
    %c1_140 = arith.constant 1 : index
    %c0_141 = arith.constant 0 : index
    %83 = vector.load %arg8[%c2_139, %c1_140, %c0_141] : memref<18x18x8xf32, #tpu.memory_space<vmem>>, vector<16x16x8xf32>
    %84 = vector.shape_cast %83 : vector<16x16x8xf32> to vector<256x8xf32>
    %c0_142 = arith.constant 0 : index
    %c56_143 = arith.constant 56 : index
    %85 = vector.load %arg9[%c0_142, %c56_143] : memref<256x72xf32, #tpu.memory_space<vmem>>, vector<256x8xf32>
    tpu.vector_store %arg9[%c0_142, %c56_143], %84 {strides = array<i32>} : memref<256x72xf32, #tpu.memory_space<vmem>>, vector<256x8xf32>,
    %c2_144 = arith.constant 2 : index
    %c2_145 = arith.constant 2 : index
    %c0_146 = arith.constant 0 : index
    %86 = vector.load %arg8[%c2_144, %c2_145, %c0_146] : memref<18x18x8xf32, #tpu.memory_space<vmem>>, vector<16x16x8xf32>
    %87 = vector.shape_cast %86 : vector<16x16x8xf32> to vector<256x8xf32>
    %c0_147 = arith.constant 0 : index
    %c64_148 = arith.constant 64 : index
    %88 = vector.load %arg9[%c0_147, %c64_148] : memref<256x72xf32, #tpu.memory_space<vmem>>, vector<256x8xf32>
    tpu.vector_store %arg9[%c0_147, %c64_148], %87 {strides = array<i32>} : memref<256x72xf32, #tpu.memory_space<vmem>>, vector<256x8xf32>,
    %c0_149 = arith.constant 0 : index
    %c0_150 = arith.constant 0 : index
    %89 = vector.load %arg9[%c0_149, %c0_150] : memref<256x72xf32, #tpu.memory_space<vmem>>, vector<256x72xf32>
    %c0_151 = arith.constant 0 : index
    %c0_152 = arith.constant 0 : index
    %90 = vector.load %arg5[%c0_151, %c0_152] : memref<72x4xf32, #tpu.memory_space<vmem>>, vector<72x4xf32>
    %cst_153 = arith.constant dense<0.000000e+00> : vector<256x4xf32>
    %91 = tpu.matmul %89, %90, %cst_153 {dimension_numbers = #tpu.dot_dimension_numbers<[1], [0], [0], [1], [0, 0, 1, 1], [], []>} : vector<256x72xf32>, vector<72x4xf32>, vector<256x4xf32> -> vector<256x4xf32>
    %c0_154 = arith.constant 0 : index
    %c0_155 = arith.constant 0 : index
    %92 = vector.load %arg6[%c0_154, %c0_155] : memref<1x4xf32, #tpu.memory_space<vmem>>, vector<1x4xf32>
    %93 = vector.broadcast %92 : vector<1x4xf32> to vector<256x4xf32>
    %94 = arith.addf %91, %93 : vector<256x4xf32>
    %cst_156 = arith.constant 0.000000e+00 : f32
    %95 = vector.broadcast %cst_156 : f32 to vector<256x4xf32>
    %96 = arith.subf %95, %94 : vector<256x4xf32>
    %97 = math.exp %96 : vector<256x4xf32>
    %cst_157 = arith.constant 1.000000e+00 : f32
    %98 = vector.broadcast %cst_157 : f32 to vector<256x4xf32>
    %99 = arith.addf %98, %97 : vector<256x4xf32>
    %cst_158 = arith.constant 1.000000e+00 : f32
    %100 = vector.broadcast %cst_158 : f32 to vector<256x4xf32>
    %101 = arith.divf %100, %99 : vector<256x4xf32>
    %102 = vector.shape_cast %101 : vector<256x4xf32> to vector<16x16x4xf32>
    %c0_159 = arith.constant 0 : index
    %c0_160 = arith.constant 0 : index
    %c0_161 = arith.constant 0 : index
    %c0_162 = arith.constant 0 : index
    %103 = vector.load %arg7[%c0_159, %c0_160, %c0_161, %c0_162] : memref<1x16x16x4xf32, #tpu.memory_space<vmem>>, vector<1x16x16x4xf32>
    %104 = vector.shape_cast %103 : vector<1x16x16x4xf32> to vector<16x16x4xf32>
    %105 = vector.shape_cast %102 : vector<16x16x4xf32> to vector<1x16x16x4xf32>
    tpu.vector_store %arg7[%c0_159, %c0_160, %c0_161, %c0_162], %105 {strides = array<i32>} : memref<1x16x16x4xf32, #tpu.memory_space<vmem>>, vector<1x16x16x4xf32>,
    return
  }
  func.func @transform_0(%arg0: i32) -> (i32, i32, i32, i32) {
    %c0_i32 = arith.constant 0 : i32
    %c0_i32_0 = arith.constant 0 : i32
    %c0_i32_1 = arith.constant 0 : i32
    %c0_i32_2 = arith.constant 0 : i32
    return %arg0, %c0_i32, %c0_i32_0, %c0_i32_1 : i32, i32, i32, i32
  }
  func.func @transform_1(%arg0: i32) -> (i32, i32, i32, i32) {
    %c0_i32 = arith.constant 0 : i32
    %c0_i32_0 = arith.constant 0 : i32
    %c0_i32_1 = arith.constant 0 : i32
    %c0_i32_2 = arith.constant 0 : i32
    return %arg0, %c0_i32, %c0_i32_0, %c0_i32_1 : i32, i32, i32, i32
  }
  func.func @transform_2(%arg0: i32) -> (i32, i32) {
    %c0_i32 = arith.constant 0 : i32
    %c0_i32_0 = arith.constant 0 : i32
    %c0_i32_1 = arith.constant 0 : i32
    return %c0_i32, %c0_i32_0 : i32, i32
  }
  func.func @transform_3(%arg0: i32) -> (i32, i32) {
    %c0_i32 = arith.constant 0 : i32
    %c0_i32_0 = arith.constant 0 : i32
    %c0_i32_1 = arith.constant 0 : i32
    return %c0_i32, %c0_i32_0 : i32, i32
  }
  func.func @transform_4(%arg0: i32) -> (i32, i32) {
    %c0_i32 = arith.constant 0 : i32
    %c0_i32_0 = arith.constant 0 : i32
    %c0_i32_1 = arith.constant 0 : i32
    return %c0_i32, %c0_i32_0 : i32, i32
  }
  func.func @transform_5(%arg0: i32) -> (i32, i32) {
    %c0_i32 = arith.constant 0 : i32
    %c0_i32_0 = arith.constant 0 : i32
    %c0_i32_1 = arith.constant 0 : i32
    return %c0_i32, %c0_i32_0 : i32, i32
  }
  func.func @transform_6(%arg0: i32) -> (i32, i32, i32, i32) {
    %c0_i32 = arith.constant 0 : i32
    %c0_i32_0 = arith.constant 0 : i32
    %c0_i32_1 = arith.constant 0 : i32
    %c0_i32_2 = arith.constant 0 : i32
    return %arg0, %c0_i32, %c0_i32_0, %c0_i32_1 : i32, i32, i32, i32
  }
}

</mosaic_0001>

<llo_original>
// kernel: spatial_attention_forward.1
$region0: #{spatial_attention_forward.1}
  #allocation0 [shape = 'u32[]', space=smem, size = 0x4, offset = 0x4, fixed_abs, tag = 'smem constant byte address 0x4 - core index']
  #allocation1 [shape = 'u32[144,128]{1,0:T(1,128)}', space=vmem, size = 0x12000, scoped, tag = 'internal scratch']
  #allocation2 [shape = 'f32[18,18,8]{2,1,0:T(8,128)}', space=vmem, size = 0x36000, scoped, tag = 'scratch operand']
  #allocation3 [shape = 'f32[256,72]{1,0:T(8,128)}', space=vmem, size = 0x20000, scoped, tag = 'scratch operand']
  %s0 = inlined_call_operand.vmem [shape: f32[2,16,16,4], index: 0, kind: input, shape index: {}]
  %s1 = inlined_call_operand.vmem [shape: f32[2,16,16,4], index: 1, kind: input, shape index: {}]
  %s2 = inlined_call_operand.vmem [shape: f32[72,8], index: 2, kind: input, shape index: {}]
  %s3 = inlined_call_operand.vmem [shape: f32[1,8], index: 3, kind: input, shape index: {}]
  %s4 = inlined_call_operand.vmem [shape: f32[72,4], index: 4, kind: input, shape index: {}]
  %s5 = inlined_call_operand.vmem [shape: f32[1,4], index: 5, kind: input, shape index: {}]
  %s6 = inlined_call_operand.vmem [shape: f32[2,16,16,4], index: 6, kind: output, shape index: {}]
  %s7 = sld [smem:[#allocation0]]
  $region57: #{spatial_attention_forward.1} parent=0
    _
  %s9 = ssub.s32 1, %s7
  %s10 = scalar_select 0, %s9, %s7
  loop: start=0, step=1, limit=4
  $region2: #{spatial_attention_forward.1} parent=0 // loop_pre_header
    _
  $region3: #{spatial_attention_forward.1} parent=0 // loop_header
    %s12 = sphi 0, %s16
    %p13 = scmp.ge.s32.totalorder %s12, 4
    %s22 = sphi 0, %s24
    %s25 = sphi 0, %s22
    %s26 = sphi 0, %s25
    %s42 = sphi 0, %s26
    %s48 = sphi 0, %s50
    %s51 = sphi 0, %s48
    %s52 = sphi 0, %s51
    %s68 = sphi 0, %s52
    %s72 = sphi 0, %s72
    %s74 = sphi 0, %s72
    %s75 = sphi 0, %s74
    %s89 = sphi 0, %s75
    %s93 = sphi 0, %s93
    %s95 = sphi 0, %s93
    %s96 = sphi 0, %s95
    %s110 = sphi 0, %s96
    %s114 = sphi 0, %s114
    %s116 = sphi 0, %s114
    %s117 = sphi 0, %s116
    %s131 = sphi 0, %s117
    %s135 = sphi 0, %s135
    %s137 = sphi 0, %s135
    %s138 = sphi 0, %s137
    %s152 = sphi 0, %s138
    %s158 = sphi 0, %s160
    %s161 = sphi 0, %s158
    %s162 = sphi 0, %s161
    %s178 = sphi 0, %s162
  $region4: #{spatial_attention_forward.1} parent=0 // loop_header_branch
    %15 = sbr.rel (%p13) target = $region8
  $region5: #{spatial_attention_forward.1} parent=0 // loop_body
    %s17 = ssub.s32 %s12, 1
    %s18 = ssub.s32 %s12, 2
    %s19 = sadd.s32 %s12, 1
    %s20 = ssub.s32 %s12, %s19
    %p21 = scmp.eq.s32.totalorder %s20, 0
    %s23 = sadd.s32 %s22, 1
    %s24 = scalar_select %p21, %s22, %s23
    %p27 = pneg %p21
    %p28 = scmp.eq.s32.totalorder %s12, 1
    %p29 = por %p27, %p28
    %p30 = scmp.ne.s32.totalorder %s22, %s25
    %p31 = scmp.eq.s32.totalorder %s12, 0
    %p32 = por %p30, %p31
    %p33 = scmp.ne.s32.totalorder %s22, %s25
    %p34 = scmp.eq.s32.totalorder %s17, 1
    %p35 = por %p33, %p34
    %p36 = scmp.ne.s32.totalorder %s25, %s26
    %p37 = scmp.eq.s32.totalorder %s17, 0
    %p38 = por %p36, %p37
    %p39 = scmp.ne.s32.totalorder %s25, %s26
    %p40 = scmp.eq.s32.totalorder %s18, 1
    %p41 = por %p39, %p40
    %p43 = scmp.ne.s32.totalorder %s26, %s42
    %p44 = scmp.eq.s32.totalorder %s18, 0
    %p45 = por %p43, %p44
    %s46 = ssub.s32 %s12, %s19
    %p47 = scmp.eq.s32.totalorder %s46, 0
    %s49 = sadd.s32 %s48, 1
    %s50 = scalar_select %p47, %s48, %s49
    %p53 = pneg %p47
    %p54 = scmp.eq.s32.totalorder %s12, 1
    %p55 = por %p53, %p54
    %p56 = scmp.ne.s32.totalorder %s48, %s51
    %p57 = scmp.eq.s32.totalorder %s12, 0
    %p58 = por %p56, %p57
    %p59 = scmp.ne.s32.totalorder %s48, %s51
    %p60 = scmp.eq.s32.totalorder %s17, 1
    %p61 = por %p59, %p60
    %p62 = scmp.ne.s32.totalorder %s51, %s52
    %p63 = scmp.eq.s32.totalorder %s17, 0
    %p64 = por %p62, %p63
    %p65 = scmp.ne.s32.totalorder %s51, %s52
    %p66 = scmp.eq.s32.totalorder %s18, 1
    %p67 = por %p65, %p66
    %p69 = scmp.ne.s32.totalorder %s52, %s68
    %p70 = scmp.eq.s32.totalorder %s18, 0
    %p71 = por %p69, %p70
    %s73 = sadd.s32 %s72, 1
    %p76 = scmp.eq.s32.totalorder %s12, 1
    %p77 = scmp.ne.s32.totalorder %s72, %s74
    %p78 = scmp.eq.s32.totalorder %s12, 0
    %p79 = por %p77, %p78
    %p80 = scmp.ne.s32.totalorder %s72, %s74
    %p81 = scmp.eq.s32.totalorder %s17, 1
    %p82 = por %p80, %p81
    %p83 = scmp.ne.s32.totalorder %s74, %s75
    %p84 = scmp.eq.s32.totalorder %s17, 0
    %p85 = por %p83, %p84
    %p86 = scmp.ne.s32.totalorder %s74, %s75
    %p87 = scmp.eq.s32.totalorder %s18, 1
    %p88 = por %p86, %p87
    %p90 = scmp.ne.s32.totalorder %s75, %s89
    %p91 = scmp.eq.s32.totalorder %s18, 0
    %p92 = por %p90, %p91
    %s94 = sadd.s32 %s93, 1
    %p97 = scmp.eq.s32.totalorder %s12, 1
    %p98 = scmp.ne.s32.totalorder %s93, %s95
    %p99 = scmp.eq.s32.totalorder %s12, 0
    %p100 = por %p98, %p99
    %p101 = scmp.ne.s32.totalorder %s93, %s95
    %p102 = scmp.eq.s32.totalorder %s17, 1
    %p103 = por %p101, %p102
    %p104 = scmp.ne.s32.totalorder %s95, %s96
    %p105 = scmp.eq.s32.totalorder %s17, 0
    %p106 = por %p104, %p105
    %p107 = scmp.ne.s32.totalorder %s95, %s96
    %p108 = scmp.eq.s32.totalorder %s18, 1
    %p109 = por %p107, %p108
    %p111 = scmp.ne.s32.totalorder %s96, %s110
    %p112 = scmp.eq.s32.totalorder %s18, 0
    %p113 = por %p111, %p112
    %s115 = sadd.s32 %s114, 1
    %p118 = scmp.eq.s32.totalorder %s12, 1
    %p119 = scmp.ne.s32.totalorder %s114, %s116
    %p120 = scmp.eq.s32.totalorder %s12, 0
    %p121 = por %p119, %p120
    %p122 = scmp.ne.s32.totalorder %s114, %s116
    %p123 = scmp.eq.s32.totalorder %s17, 1
    %p124 = por %p122, %p123
    %p125 = scmp.ne.s32.totalorder %s116, %s117
    %p126 = scmp.eq.s32.totalorder %s17, 0
    %p127 = por %p125, %p126
    %p128 = scmp.ne.s32.totalorder %s116, %s117
    %p129 = scmp.eq.s32.totalorder %s18, 1
    %p130 = por %p128, %p129
    %p132 = scmp.ne.s32.totalorder %s117, %s131
    %p133 = scmp.eq.s32.totalorder %s18, 0
    %p134 = por %p132, %p133
    %s136 = sadd.s32 %s135, 1
    %p139 = scmp.eq.s32.totalorder %s12, 1
    %p140 = scmp.ne.s32.totalorder %s135, %s137
    %p141 = scmp.eq.s32.totalorder %s12, 0
    %p142 = por %p140, %p141
    %p143 = scmp.ne.s32.totalorder %s135, %s137
    %p144 = scmp.eq.s32.totalorder %s17, 1
    %p145 = por %p143, %p144
    %p146 = scmp.ne.s32.totalorder %s137, %s138
    %p147 = scmp.eq.s32.totalorder %s17, 0
    %p148 = por %p146, %p147
    %p149 = scmp.ne.s32.totalorder %s137, %s138
    %p150 = scmp.eq.s32.totalorder %s18, 1
    %p151 = por %p149, %p150
    %p153 = scmp.ne.s32.totalorder %s138, %s152
    %p154 = scmp.eq.s32.totalorder %s18, 0
    %p155 = por %p153, %p154
    %s156 = ssub.s32 %s12, %s19
    %p157 = scmp.eq.s32.totalorder %s156, 0
    %s159 = sadd.s32 %s158, 1
    %s160 = scalar_select %p157, %s158, %s159
    %p163 = pneg %p157
    %p164 = scmp.eq.s32.totalorder %s12, 1
    %p165 = por %p163, %p164
    %p166 = scmp.ne.s32.totalorder %s158, %s161
    %p167 = scmp.eq.s32.totalorder %s12, 0
    %p168 = por %p166, %p167
    %p169 = scmp.ne.s32.totalorder %s158, %s161
    %p170 = scmp.eq.s32.totalorder %s17, 1
    %p171 = por %p169, %p170
    %p172 = scmp.ne.s32.totalorder %s161, %s162
    %p173 = scmp.eq.s32.totalorder %s17, 0
    %p174 = por %p172, %p173
    %p175 = scmp.ne.s32.totalorder %s161, %s162
    %p176 = scmp.eq.s32.totalorder %s18, 1
    %p177 = por %p175, %p176
    %p179 = scmp.ne.s32.totalorder %s162, %s178
    %p180 = scmp.eq.s32.totalorder %s18, 0
    %p181 = por %p179, %p180
    %p182 = scmp.le.s32.totalorder 1, %s12
    %p183 = scmp.lt.s32.totalorder %s12, 3
    %p184 = pnand %p182, %p183
    %p185 = pneg %p184
    // Predicated region
    $region9: #{spatial_attention_forward.1} parent=5 // pred_check
      _
    $region10: #{spatial_attention_forward.1} parent=5 // pred_check_branch
      %187 = sbr.rel (%p184) target = $region12
    $region11: #{spatial_attention_forward.1} parent=5 // pred_region
      %s188 = ssub.s32 %s12, 1
      // Predicated region
      $region13: #{spatial_attention_forward.1} parent=11 // pred_check
        %p189 = pneg %p85
      $region14: #{spatial_attention_forward.1} parent=11 // pred_check_branch
        %191 = sbr.rel (%p189) target = $region16
      $region15: #{spatial_attention_forward.1} parent=11 // pred_region
        _
      $region16: #{spatial_attention_forward.1} parent=11 // pred_fallthru
        _
      // Predicated region
      $region17: #{spatial_attention_forward.1} parent=11 // pred_check
        %p192 = pneg %p106
      $region18: #{spatial_attention_forward.1} parent=11 // pred_check_branch
        %194 = sbr.rel (%p192) target = $region20
      $region19: #{spatial_attention_forward.1} parent=11 // pred_region
        _
      $region20: #{spatial_attention_forward.1} parent=11 // pred_fallthru
        _
      // Predicated region
      $region21: #{spatial_attention_forward.1} parent=11 // pred_check
        %p195 = pneg %p127
      $region22: #{spatial_attention_forward.1} parent=11 // pred_check_branch
        %197 = sbr.rel (%p195) target = $region24
      $region23: #{spatial_attention_forward.1} parent=11 // pred_region
        _
      $region24: #{spatial_attention_forward.1} parent=11 // pred_fallthru
        _
      // Predicated region
      $region25: #{spatial_attention_forward.1} parent=11 // pred_check
        %p198 = pneg %p148
      $region26: #{spatial_attention_forward.1} parent=11 // pred_check_branch
        %200 = sbr.rel (%p198) target = $region28
      $region27: #{spatial_attention_forward.1} parent=11 // pred_region
        _
      $region28: #{spatial_attention_forward.1} parent=11 // pred_fallthru
        _
    $region12: #{spatial_attention_forward.1} parent=5 // pred_fallthru
      _
    %p201 = scmp.lt.s32.totalorder %s12, 2
    // Predicated region
    $region29: #{spatial_attention_forward.1} parent=5 // pred_check
      %p202 = pneg %p201
    $region30: #{spatial_attention_forward.1} parent=5 // pred_check_branch
      %204 = sbr.rel (%p202) target = $region32
    $region31: #{spatial_attention_forward.1} parent=5 // pred_region
      // Predicated region
      $region33: #{spatial_attention_forward.1} parent=31 // pred_check
        %p205 = pneg %p32
      $region34: #{spatial_attention_forward.1} parent=31 // pred_check_branch
        %207 = sbr.rel (%p205) target = $region36
      $region35: #{spatial_attention_forward.1} parent=31 // pred_region
        %p208 = scmp.lt.s32.totalorder %s12, 1
        %s209 = scalar_select %p208, %s12, 1
        %s210 = smul.addr %s209, 32
        %s211 = smul.addr %s210, 8
        %s212 = scalar_lea.vmem %s0, %s211
      $region36: #{spatial_attention_forward.1} parent=31 // pred_fallthru
        _
      // Predicated region
      $region37: #{spatial_attention_forward.1} parent=31 // pred_check
        %p213 = pneg %p58
      $region38: #{spatial_attention_forward.1} parent=31 // pred_check_branch
        %215 = sbr.rel (%p213) target = $region40
      $region39: #{spatial_attention_forward.1} parent=31 // pred_region
        %p216 = scmp.lt.s32.totalorder %s12, 1
        %s217 = scalar_select %p216, %s12, 1
        %s218 = smul.addr %s217, 32
        %s219 = smul.addr %s218, 8
        %s220 = scalar_lea.vmem %s1, %s219
      $region40: #{spatial_attention_forward.1} parent=31 // pred_fallthru
        _
    $region32: #{spatial_attention_forward.1} parent=5 // pred_fallthru
      _
    %p221 = scmp.le.s32.totalorder 1, %s12
    %p222 = scmp.lt.s32.totalorder %s12, 3
    %p223 = pnand %p221, %p222
    %p224 = pneg %p223
    // Predicated region
    $region41: #{spatial_attention_forward.1} parent=5 // pred_check
      _
    $region42: #{spatial_attention_forward.1} parent=5 // pred_check_branch
      %226 = sbr.rel (%p223) target = $region44
    $region43: #{spatial_attention_forward.1} parent=5 // pred_region
      %s227 = ssub.s32 %s12, 1
      %p228 = scmp.lt.s32.totalorder %s17, 1
      %s229 = scalar_select %p228, %s17, 1
      %s230 = smul.addr %s229, 32
      %s231 = smul.addr %s230, 8
      %s232 = scalar_lea.vmem %s0, %s231
      %p233 = pneg %p38
      %p234 = pneg %p35
      %p235 = scmp.lt.s32.totalorder %s17, 1
      %s236 = scalar_select %p235, %s17, 1
      %s237 = smul.addr %s236, 32
      %s238 = smul.addr %s237, 8
      %s239 = scalar_lea.vmem %s1, %s238
      %p240 = pneg %p64
      %p241 = pneg %p61
      %p242 = pneg %p85
      %p243 = pneg %p82
      %p244 = pneg %p106
      %p245 = pneg %p103
      %p246 = pneg %p127
      %p247 = pneg %p124
      %p248 = pneg %p148
      %p249 = pneg %p145
      %p250 = pneg %p174
      %p251 = pneg %p171
      %p252 = scmp.lt.s32.totalorder %s17, 1
      %s253 = scalar_select %p252, %s17, 1
      %s254 = smul.addr %s253, 32
      %s255 = smul.addr %s254, 8
      %s256 = scalar_lea.vmem %s6, %s255
      %p257 = scmp.lt.s32.totalorder %s17, 1
      %s258 = scalar_select %p257, %s17, 1
      %s259 = smul.addr %s258, 32
      %s260 = smul.addr %s259, 8
      %s261 = scalar_lea.vmem %s0, %s260
      %p262 = scmp.lt.s32.totalorder %s17, 1
      %s263 = scalar_select %p262, %s17, 1
      %s264 = smul.addr %s263, 32
      %s265 = smul.addr %s264, 8
      %s266 = scalar_lea.vmem %s1, %s265
      %p267 = scmp.lt.s32.totalorder %s17, 1
      %s268 = scalar_select %p267, %s17, 1
      %s269 = smul.addr %s268, 32
      %s270 = smul.addr %s269, 8
      %s271 = scalar_lea.vmem %s6, %s270
      %v272 = vld [vmem:[%s261] sm:$0xff]
      %v273 = vld [vmem:[%s261 + $0x8] sm:$0xff]
      %v274 = vld [vmem:[%s261 + $0x10] sm:$0xff]
      %v275 = vld [vmem:[%s261 + $0x18] sm:$0xff]
      %v276 = vld [vmem:[%s261 + $0x20] sm:$0xff]
      %v277 = vld [vmem:[%s261 + $0x28] sm:$0xff]
      %v278 = vld [vmem:[%s261 + $0x30] sm:$0xff]
      %v279 = vld [vmem:[%s261 + $0x38] sm:$0xff]
      %v280 = vld [vmem:[%s261 + $0x40] sm:$0xff]
      %v281 = vld [vmem:[%s261 + $0x48] sm:$0xff]
      %v282 = vld [vmem:[%s261 + $0x50] sm:$0xff]
      %v283 = vld [vmem:[%s261 + $0x58] sm:$0xff]
      %v284 = vld [vmem:[%s261 + $0x60] sm:$0xff]
      %v285 = vld [vmem:[%s261 + $0x68] sm:$0xff]
      %v286 = vld [vmem:[%s261 + $0x70] sm:$0xff]
      %v287 = vld [vmem:[%s261 + $0x78] sm:$0xff]
      %v288 = vld [vmem:[%s261 + $0x80] sm:$0xff]
      %v289 = vld [vmem:[%s261 + $0x88] sm:$0xff]
      %v290 = vld [vmem:[%s261 + $0x90] sm:$0xff]
      %v291 = vld [vmem:[%s261 + $0x98] sm:$0xff]
      %v292 = vld [vmem:[%s261 + $0xa0] sm:$0xff]
      %v293 = vld [vmem:[%s261 + $0xa8] sm:$0xff]
      %v294 = vld [vmem:[%s261 + $0xb0] sm:$0xff]
      %v295 = vld [vmem:[%s261 + $0xb8] sm:$0xff]
      %v296 = vld [vmem:[%s261 + $0xc0] sm:$0xff]
      %v297 = vld [vmem:[%s261 + $0xc8] sm:$0xff]
      %v298 = vld [vmem:[%s261 + $0xd0] sm:$0xff]
      %v299 = vld [vmem:[%s261 + $0xd8] sm:$0xff]
      %v300 = vld [vmem:[%s261 + $0xe0] sm:$0xff]
      %v301 = vld [vmem:[%s261 + $0xe8] sm:$0xff]
      %v302 = vld [vmem:[%s261 + $0xf0] sm:$0xff]
      %v303 = vld [vmem:[%s261 + $0xf8] sm:$0xff]
      %s304 = scalar_lea.vmem [#allocation2], 24
      %vm305 = vcmask 31744
      %306 = vst.msk [vmem:[%s304 + $0x1] sm:$0xff] %vm305, %v272
      %307 = vst.msk [vmem:[%s304 + $0x9] sm:$0xff] %vm305, %v273
      %308 = vst.msk [vmem:[%s304 + $0x19] sm:$0xff] %vm305, %v274
      %309 = vst.msk [vmem:[%s304 + $0x21] sm:$0xff] %vm305, %v275
      %310 = vst.msk [vmem:[%s304 + $0x31] sm:$0xff] %vm305, %v276
      %311 = vst.msk [vmem:[%s304 + $0x39] sm:$0xff] %vm305, %v277
      %312 = vst.msk [vmem:[%s304 + $0x49] sm:$0xff] %vm305, %v278
      %313 = vst.msk [vmem:[%s304 + $0x51] sm:$0xff] %vm305, %v279
      %314 = vst.msk [vmem:[%s304 + $0x61] sm:$0xff] %vm305, %v280
      %315 = vst.msk [vmem:[%s304 + $0x69] sm:$0xff] %vm305, %v281
      %316 = vst.msk [vmem:[%s304 + $0x79] sm:$0xff] %vm305, %v282
      %317 = vst.msk [vmem:[%s304 + $0x81] sm:$0xff] %vm305, %v283
      %318 = vst.msk [vmem:[%s304 + $0x91] sm:$0xff] %vm305, %v284
      %319 = vst.msk [vmem:[%s304 + $0x99] sm:$0xff] %vm305, %v285
      %320 = vst.msk [vmem:[%s304 + $0xa9] sm:$0xff] %vm305, %v286
      %321 = vst.msk [vmem:[%s304 + $0xb1] sm:$0xff] %vm305, %v287
      %322 = vst.msk [vmem:[%s304 + $0xc1] sm:$0xff] %vm305, %v288
      %323 = vst.msk [vmem:[%s304 + $0xc9] sm:$0xff] %vm305, %v289
      %324 = vst.msk [vmem:[%s304 + $0xd9] sm:$0xff] %vm305, %v290
      %325 = vst.msk [vmem:[%s304 + $0xe1] sm:$0xff] %vm305, %v291
      %326 = vst.msk [vmem:[%s304 + $0xf1] sm:$0xff] %vm305, %v292
      %327 = vst.msk [vmem:[%s304 + $0xf9] sm:$0xff] %vm305, %v293
      %328 = vst.msk [vmem:[%s304 + $0x109] sm:$0xff] %vm305, %v294
      %329 = vst.msk [vmem:[%s304 + $0x111] sm:$0xff] %vm305, %v295
      %330 = vst.msk [vmem:[%s304 + $0x121] sm:$0xff] %vm305, %v296
      %331 = vst.msk [vmem:[%s304 + $0x129] sm:$0xff] %vm305, %v297
      %332 = vst.msk [vmem:[%s304 + $0x139] sm:$0xff] %vm305, %v298
      %333 = vst.msk [vmem:[%s304 + $0x141] sm:$0xff] %vm305, %v299
      %334 = vst.msk [vmem:[%s304 + $0x151] sm:$0xff] %vm305, %v300
      %335 = vst.msk [vmem:[%s304 + $0x159] sm:$0xff] %vm305, %v301
      %336 = vst.msk [vmem:[%s304 + $0x169] sm:$0xff] %vm305, %v302
      %337 = vst.msk [vmem:[%s304 + $0x171] sm:$0xff] %vm305, %v303
      %v338 = vld [vmem:[%s266] sm:$0xff]
      %v339 = vld [vmem:[%s266 + $0x8] sm:$0xff]
      %v340 = vld [vmem:[%s266 + $0x10] sm:$0xff]
      %v341 = vld [vmem:[%s266 + $0x18] sm:$0xff]
      %v342 = vld [vmem:[%s266 + $0x20] sm:$0xff]
      %v343 = vld [vmem:[%s266 + $0x28] sm:$0xff]
      %v344 = vld [vmem:[%s266 + $0x30] sm:$0xff]
      %v345 = vld [vmem:[%s266 + $0x38] sm:$0xff]
      %v346 = vld [vmem:[%s266 + $0x40] sm:$0xff]
      %v347 = vld [vmem:[%s266 + $0x48] sm:$0xff]
      %v348 = vld [vmem:[%s266 + $0x50] sm:$0xff]
      %v349 = vld [vmem:[%s266 + $0x58] sm:$0xff]
      %v350 = vld [vmem:[%s266 + $0x60] sm:$0xff]
      %v351 = vld [vmem:[%s266 + $0x68] sm:$0xff]
      %v352 = vld [vmem:[%s266 + $0x70] sm:$0xff]
      %v353 = vld [vmem:[%s266 + $0x78] sm:$0xff]
      %v354 = vld [vmem:[%s266 + $0x80] sm:$0xff]
      %v355 = vld [vmem:[%s266 + $0x88] sm:$0xff]
      %v356 = vld [vmem:[%s266 + $0x90] sm:$0xff]
      %v357 = vld [vmem:[%s266 + $0x98] sm:$0xff]
      %v358 = vld [vmem:[%s266 + $0xa0] sm:$0xff]
      %v359 = vld [vmem:[%s266 + $0xa8] sm:$0xff]
      %v360 = vld [vmem:[%s266 + $0xb0] sm:$0xff]
      %v361 = vld [vmem:[%s266 + $0xb8] sm:$0xff]
      %v362 = vld [vmem:[%s266 + $0xc0] sm:$0xff]
      %v363 = vld [vmem:[%s266 + $0xc8] sm:$0xff]
      %v364 = vld [vmem:[%s266 + $0xd0] sm:$0xff]
      %v365 = vld [vmem:[%s266 + $0xd8] sm:$0xff]
      %v366 = vld [vmem:[%s266 + $0xe0] sm:$0xff]
      %v367 = vld [vmem:[%s266 + $0xe8] sm:$0xff]
      %v368 = vld [vmem:[%s266 + $0xf0] sm:$0xff]
      %v369 = vld [vmem:[%s266 + $0xf8] sm:$0xff]
      %402 = vrot.lane.b32.xlu0 %v338, 4
      %v403 = vpop.permute.xlu0 %402
      %404 = vrot.lane.b32.xlu0 %v339, 4
      %v405 = vpop.permute.xlu0 %404
      %406 = vrot.lane.b32.xlu0 %v340, 4
      %v407 = vpop.permute.xlu0 %406
      %408 = vrot.lane.b32.xlu0 %v341, 4
      %v409 = vpop.permute.xlu0 %408
      %410 = vrot.lane.b32.xlu0 %v342, 4
      %v411 = vpop.permute.xlu0 %410
      %412 = vrot.lane.b32.xlu0 %v343, 4
      %v413 = vpop.permute.xlu0 %412
      %414 = vrot.lane.b32.xlu0 %v344, 4
      %v415 = vpop.permute.xlu0 %414
      %416 = vrot.lane.b32.xlu0 %v345, 4
      %v417 = vpop.permute.xlu0 %416
      %418 = vrot.lane.b32.xlu0 %v346, 4
      %v419 = vpop.permute.xlu0 %418
      %420 = vrot.lane.b32.xlu0 %v347, 4
      %v421 = vpop.permute.xlu0 %420
      %422 = vrot.lane.b32.xlu0 %v348, 4
      %v423 = vpop.permute.xlu0 %422
      %424 = vrot.lane.b32.xlu0 %v349, 4
      %v425 = vpop.permute.xlu0 %424
      %426 = vrot.lane.b32.xlu0 %v350, 4
      %v427 = vpop.permute.xlu0 %426
      %428 = vrot.lane.b32.xlu0 %v351, 4
      %v429 = vpop.permute.xlu0 %428
      %430 = vrot.lane.b32.xlu0 %v352, 4
      %v431 = vpop.permute.xlu0 %430
      %432 = vrot.lane.b32.xlu0 %v353, 4
      %v433 = vpop.permute.xlu0 %432
      %434 = vrot.lane.b32.xlu0 %v354, 4
      %v435 = vpop.permute.xlu0 %434
      %436 = vrot.lane.b32.xlu0 %v355, 4
      %v437 = vpop.permute.xlu0 %436
      %438 = vrot.lane.b32.xlu0 %v356, 4
      %v439 = vpop.permute.xlu0 %438
      %440 = vrot.lane.b32.xlu0 %v357, 4
      %v441 = vpop.permute.xlu0 %440
      %442 = vrot.lane.b32.xlu0 %v358, 4
      %v443 = vpop.permute.xlu0 %442
      %444 = vrot.lane.b32.xlu0 %v359, 4
      %v445 = vpop.permute.xlu0 %444
      %446 = vrot.lane.b32.xlu0 %v360, 4
      %v447 = vpop.permute.xlu0 %446
      %448 = vrot.lane.b32.xlu0 %v361, 4
      %v449 = vpop.permute.xlu0 %448
      %450 = vrot.lane.b32.xlu0 %v362, 4
      %v451 = vpop.permute.xlu0 %450
      %452 = vrot.lane.b32.xlu0 %v363, 4
      %v453 = vpop.permute.xlu0 %452
      %454 = vrot.lane.b32.xlu0 %v364, 4
      %v455 = vpop.permute.xlu0 %454
      %456 = vrot.lane.b32.xlu0 %v365, 4
      %v457 = vpop.permute.xlu0 %456
      %458 = vrot.lane.b32.xlu0 %v366, 4
      %v459 = vpop.permute.xlu0 %458
      %460 = vrot.lane.b32.xlu0 %v367, 4
      %v461 = vpop.permute.xlu0 %460
      %462 = vrot.lane.b32.xlu0 %v368, 4
      %v463 = vpop.permute.xlu0 %462
      %464 = vrot.lane.b32.xlu0 %v369, 4
      %v465 = vpop.permute.xlu0 %464
      %vm498 = vcmask 64544
      %499 = vst.msk [vmem:[%s304 + $0x1] sm:$0xff] %vm498, %v403
      %500 = vst.msk [vmem:[%s304 + $0x9] sm:$0xff] %vm498, %v405
      %501 = vst.msk [vmem:[%s304 + $0x19] sm:$0xff] %vm498, %v407
      %502 = vst.msk [vmem:[%s304 + $0x21] sm:$0xff] %vm498, %v409
      %503 = vst.msk [vmem:[%s304 + $0x31] sm:$0xff] %vm498, %v411
      %504 = vst.msk [vmem:[%s304 + $0x39] sm:$0xff] %vm498, %v413
      %505 = vst.msk [vmem:[%s304 + $0x49] sm:$0xff] %vm498, %v415
      %506 = vst.msk [vmem:[%s304 + $0x51] sm:$0xff] %vm498, %v417
      %507 = vst.msk [vmem:[%s304 + $0x61] sm:$0xff] %vm498, %v419
      %508 = vst.msk [vmem:[%s304 + $0x69] sm:$0xff] %vm498, %v421
      %509 = vst.msk [vmem:[%s304 + $0x79] sm:$0xff] %vm498, %v423
      %510 = vst.msk [vmem:[%s304 + $0x81] sm:$0xff] %vm498, %v425
      %511 = vst.msk [vmem:[%s304 + $0x91] sm:$0xff] %vm498, %v427
      %512 = vst.msk [vmem:[%s304 + $0x99] sm:$0xff] %vm498, %v429
      %513 = vst.msk [vmem:[%s304 + $0xa9] sm:$0xff] %vm498, %v431
      %514 = vst.msk [vmem:[%s304 + $0xb1] sm:$0xff] %vm498, %v433
      %515 = vst.msk [vmem:[%s304 + $0xc1] sm:$0xff] %vm498, %v435
      %516 = vst.msk [vmem:[%s304 + $0xc9] sm:$0xff] %vm498, %v437
      %517 = vst.msk [vmem:[%s304 + $0xd9] sm:$0xff] %vm498, %v439
      %518 = vst.msk [vmem:[%s304 + $0xe1] sm:$0xff] %vm498, %v441
      %519 = vst.msk [vmem:[%s304 + $0xf1] sm:$0xff] %vm498, %v443
      %520 = vst.msk [vmem:[%s304 + $0xf9] sm:$0xff] %vm498, %v445
      %521 = vst.msk [vmem:[%s304 + $0x109] sm:$0xff] %vm498, %v447
      %522 = vst.msk [vmem:[%s304 + $0x111] sm:$0xff] %vm498, %v449
      %523 = vst.msk [vmem:[%s304 + $0x121] sm:$0xff] %vm498, %v451
      %524 = vst.msk [vmem:[%s304 + $0x129] sm:$0xff] %vm498, %v453
      %525 = vst.msk [vmem:[%s304 + $0x139] sm:$0xff] %vm498, %v455
      %526 = vst.msk [vmem:[%s304 + $0x141] sm:$0xff] %vm498, %v457
      %527 = vst.msk [vmem:[%s304 + $0x151] sm:$0xff] %vm498, %v459
      %528 = vst.msk [vmem:[%s304 + $0x159] sm:$0xff] %vm498, %v461
      %529 = vst.msk [vmem:[%s304 + $0x169] sm:$0xff] %vm498, %v463
      %530 = vst.msk [vmem:[%s304 + $0x171] sm:$0xff] %vm498, %v465
      %s531 = scalar_lea.vmem [#allocation2], 48
      %v532 = vld [vmem:[%s531 + $0x1] sm:$0xff]
      %v533 = vld [vmem:[%s531 + $0x9] sm:$0xff]
      %vm534 = vcmask 64512
      %535 = vst.msk [vmem:[#allocation2 + $0x1] sm:$0xff] %vm534, %v532
      %536 = vst.msk [vmem:[#allocation2 + $0x9] sm:$0xff] %vm534, %v533
      %s537 = scalar_lea.vmem [#allocation2], 360
      %v538 = vld [vmem:[%s537 + $0x1] sm:$0xff]
      %v539 = vld [vmem:[%s537 + $0x9] sm:$0xff]
      %s540 = scalar_lea.vmem [#allocation2], 408
      %541 = vst.msk [vmem:[%s540 + $0x1] sm:$0xff] %vm534, %v538
      %542 = vst.msk [vmem:[%s540 + $0x9] sm:$0xff] %vm534, %v539
      %v543 = vld [vmem:[#allocation2 + $0x2] sm:$0x1]
      %v544 = vld [vmem:[#allocation2 + $0x1a] sm:$0x1]
      %v545 = vld [vmem:[#allocation2 + $0x32] sm:$0x1]
      %v546 = vld [vmem:[#allocation2 + $0x4a] sm:$0x1]
      %v547 = vld [vmem:[#allocation2 + $0x62] sm:$0x1]
      %v548 = vld [vmem:[#allocation2 + $0x7a] sm:$0x1]
      %v549 = vld [vmem:[#allocation2 + $0x92] sm:$0x1]
      %v550 = vld [vmem:[#allocation2 + $0xaa] sm:$0x1]
      %v551 = vld [vmem:[#allocation2 + $0xc2] sm:$0x1]
      %v552 = vld [vmem:[#allocation2 + $0xda] sm:$0x1]
      %v553 = vld [vmem:[#allocation2 + $0xf2] sm:$0x1]
      %v554 = vld [vmem:[#allocation2 + $0x10a] sm:$0x1]
      %v555 = vld [vmem:[#allocation2 + $0x122] sm:$0x1]
      %v556 = vld [vmem:[#allocation2 + $0x13a] sm:$0x1]
      %v557 = vld [vmem:[#allocation2 + $0x152] sm:$0x1]
      %v558 = vld [vmem:[#allocation2 + $0x16a] sm:$0x1]
      %v559 = vld [vmem:[#allocation2 + $0x182] sm:$0x1]
      %v560 = vld [vmem:[#allocation2 + $0x19a] sm:$0x1]
      %vm561 = vcmask 57344
      %562 = vst.msk [vmem:[#allocation2] sm:$0x1] %vm561, %v543
      %563 = vst.msk [vmem:[#allocation2 + $0x18] sm:$0x1] %vm561, %v544
      %564 = vst.msk [vmem:[#allocation2 + $0x30] sm:$0x1] %vm561, %v545
      %565 = vst.msk [vmem:[#allocation2 + $0x48] sm:$0x1] %vm561, %v546
      %566 = vst.msk [vmem:[#allocation2 + $0x60] sm:$0x1] %vm561, %v547
      %567 = vst.msk [vmem:[#allocation2 + $0x78] sm:$0x1] %vm561, %v548
      %568 = vst.msk [vmem:[#allocation2 + $0x90] sm:$0x1] %vm561, %v549
      %569 = vst.msk [vmem:[#allocation2 + $0xa8] sm:$0x1] %vm561, %v550
      %570 = vst.msk [vmem:[#allocation2 + $0xc0] sm:$0x1] %vm561, %v551
      %571 = vst.msk [vmem:[#allocation2 + $0xd8] sm:$0x1] %vm561, %v552
      %572 = vst.msk [vmem:[#allocation2 + $0xf0] sm:$0x1] %vm561, %v553
      %573 = vst.msk [vmem:[#allocation2 + $0x108] sm:$0x1] %vm561, %v554
      %574 = vst.msk [vmem:[#allocation2 + $0x120] sm:$0x1] %vm561, %v555
      %575 = vst.msk [vmem:[#allocation2 + $0x138] sm:$0x1] %vm561, %v556
      %576 = vst.msk [vmem:[#allocation2 + $0x150] sm:$0x1] %vm561, %v557
      %577 = vst.msk [vmem:[#allocation2 + $0x168] sm:$0x1] %vm561, %v558
      %578 = vst.msk [vmem:[#allocation2 + $0x180] sm:$0x1] %vm561, %v559
      %579 = vst.msk [vmem:[#allocation2 + $0x198] sm:$0x1] %vm561, %v560
      %v580 = vld [vmem:[#allocation2 + $0xf] sm:$0x1]
      %v581 = vld [vmem:[#allocation2 + $0x27] sm:$0x1]
      %v582 = vld [vmem:[#allocation2 + $0x3f] sm:$0x1]
      %v583 = vld [vmem:[#allocation2 + $0x57] sm:$0x1]
      %v584 = vld [vmem:[#allocation2 + $0x6f] sm:$0x1]
      %v585 = vld [vmem:[#allocation2 + $0x87] sm:$0x1]
      %v586 = vld [vmem:[#allocation2 + $0x9f] sm:$0x1]
      %v587 = vld [vmem:[#allocation2 + $0xb7] sm:$0x1]
      %v588 = vld [vmem:[#allocation2 + $0xcf] sm:$0x1]
      %v589 = vld [vmem:[#allocation2 + $0xe7] sm:$0x1]
      %v590 = vld [vmem:[#allocation2 + $0xff] sm:$0x1]
      %v591 = vld [vmem:[#allocation2 + $0x117] sm:$0x1]
      %v592 = vld [vmem:[#allocation2 + $0x12f] sm:$0x1]
      %v593 = vld [vmem:[#allocation2 + $0x147] sm:$0x1]
      %v594 = vld [vmem:[#allocation2 + $0x15f] sm:$0x1]
      %v595 = vld [vmem:[#allocation2 + $0x177] sm:$0x1]
      %v596 = vld [vmem:[#allocation2 + $0x18f] sm:$0x1]
      %v597 = vld [vmem:[#allocation2 + $0x1a7] sm:$0x1]
      %598 = vst.msk [vmem:[#allocation2 + $0x11] sm:$0x1] %vm561, %v580
      %599 = vst.msk [vmem:[#allocation2 + $0x29] sm:$0x1] %vm561, %v581
      %600 = vst.msk [vmem:[#allocation2 + $0x41] sm:$0x1] %vm561, %v582
      %601 = vst.msk [vmem:[#allocation2 + $0x59] sm:$0x1] %vm561, %v583
      %602 = vst.msk [vmem:[#allocation2 + $0x71] sm:$0x1] %vm561, %v584
      %603 = vst.msk [vmem:[#allocation2 + $0x89] sm:$0x1] %vm561, %v585
      %604 = vst.msk [vmem:[#allocation2 + $0xa1] sm:$0x1] %vm561, %v586
      %605 = vst.msk [vmem:[#allocation2 + $0xb9] sm:$0x1] %vm561, %v587
      %606 = vst.msk [vmem:[#allocation2 + $0xd1] sm:$0x1] %vm561, %v588
      %607 = vst.msk [vmem:[#allocation2 + $0xe9] sm:$0x1] %vm561, %v589
      %608 = vst.msk [vmem:[#allocation2 + $0x101] sm:$0x1] %vm561, %v590
      %609 = vst.msk [vmem:[#allocation2 + $0x119] sm:$0x1] %vm561, %v591
      %610 = vst.msk [vmem:[#allocation2 + $0x131] sm:$0x1] %vm561, %v592
      %611 = vst.msk [vmem:[#allocation2 + $0x149] sm:$0x1] %vm561, %v593
      %612 = vst.msk [vmem:[#allocation2 + $0x161] sm:$0x1] %vm561, %v594
      %613 = vst.msk [vmem:[#allocation2 + $0x179] sm:$0x1] %vm561, %v595
      %614 = vst.msk [vmem:[#allocation2 + $0x191] sm:$0x1] %vm561, %v596
      %615 = vst.msk [vmem:[#allocation2 + $0x1a9] sm:$0x1] %vm561, %v597
      %v616 = vld [vmem:[#allocation2] sm:$0xff]
      %v617 = vld [vmem:[#allocation2 + $0x8] sm:$0xff]
      %v618 = vld [vmem:[#allocation2 + $0x18] sm:$0xff]
      %v619 = vld [vmem:[#allocation2 + $0x20] sm:$0xff]
      %v620 = vld [vmem:[#allocation2 + $0x30] sm:$0xff]
      %v621 = vld [vmem:[#allocation2 + $0x38] sm:$0xff]
      %v622 = vld [vmem:[#allocation2 + $0x48] sm:$0xff]
      %v623 = vld [vmem:[#allocation2 + $0x50] sm:$0xff]
      %v624 = vld [vmem:[#allocation2 + $0x60] sm:$0xff]
      %v625 = vld [vmem:[#allocation2 + $0x68] sm:$0xff]
      %v626 = vld [vmem:[#allocation2 + $0x78] sm:$0xff]
      %v627 = vld [vmem:[#allocation2 + $0x80] sm:$0xff]
      %v628 = vld [vmem:[#allocation2 + $0x90] sm:$0xff]
      %v629 = vld [vmem:[#allocation2 + $0x98] sm:$0xff]
      %v630 = vld [vmem:[#allocation2 + $0xa8] sm:$0xff]
      %v631 = vld [vmem:[#allocation2 + $0xb0] sm:$0xff]
      %v632 = vld [vmem:[#allocation2 + $0xc0] sm:$0xff]
      %v633 = vld [vmem:[#allocation2 + $0xc8] sm:$0xff]
      %v634 = vld [vmem:[#allocation2 + $0xd8] sm:$0xff]
      %v635 = vld [vmem:[#allocation2 + $0xe0] sm:$0xff]
      %v636 = vld [vmem:[#allocation2 + $0xf0] sm:$0xff]
      %v637 = vld [vmem:[#allocation2 + $0xf8] sm:$0xff]
      %v638 = vld [vmem:[#allocation2 + $0x108] sm:$0xff]
      %v639 = vld [vmem:[#allocation2 + $0x110] sm:$0xff]
      %v640 = vld [vmem:[#allocation2 + $0x120] sm:$0xff]
      %v641 = vld [vmem:[#allocation2 + $0x128] sm:$0xff]
      %v642 = vld [vmem:[#allocation2 + $0x138] sm:$0xff]
      %v643 = vld [vmem:[#allocation2 + $0x140] sm:$0xff]
      %v644 = vld [vmem:[#allocation2 + $0x150] sm:$0xff]
      %v645 = vld [vmem:[#allocation2 + $0x158] sm:$0xff]
      %v646 = vld [vmem:[#allocation2 + $0x168] sm:$0xff]
      %v647 = vld [vmem:[#allocation2 + $0x170] sm:$0xff]
      %648 = vst.msk [vmem:[#allocation3] sm:$0xff] %vm534, %v616
      %649 = vst.msk [vmem:[#allocation3 + $0x8] sm:$0xff] %vm534, %v617
      %650 = vst.msk [vmem:[#allocation3 + $0x10] sm:$0xff] %vm534, %v618
      %651 = vst.msk [vmem:[#allocation3 + $0x18] sm:$0xff] %vm534, %v619
      %652 = vst.msk [vmem:[#allocation3 + $0x20] sm:$0xff] %vm534, %v620
      %653 = vst.msk [vmem:[#allocation3 + $0x28] sm:$0xff] %vm534, %v621
      %654 = vst.msk [vmem:[#allocation3 + $0x30] sm:$0xff] %vm534, %v622
      %655 = vst.msk [vmem:[#allocation3 + $0x38] sm:$0xff] %vm534, %v623
      %656 = vst.msk [vmem:[#allocation3 + $0x40] sm:$0xff] %vm534, %v624
      %657 = vst.msk [vmem:[#allocation3 + $0x48] sm:$0xff] %vm534, %v625
      %658 = vst.msk [vmem:[#allocation3 + $0x50] sm:$0xff] %vm534, %v626
      %659 = vst.msk [vmem:[#allocation3 + $0x58] sm:$0xff] %vm534, %v627
      %660 = vst.msk [vmem:[#allocation3 + $0x60] sm:$0xff] %vm534, %v628
      %661 = vst.msk [vmem:[#allocation3 + $0x68] sm:$0xff] %vm534, %v629
      %662 = vst.msk [vmem:[#allocation3 + $0x70] sm:$0xff] %vm534, %v630
      %663 = vst.msk [vmem:[#allocation3 + $0x78] sm:$0xff] %vm534, %v631
      %664 = vst.msk [vmem:[#allocation3 + $0x80] sm:$0xff] %vm534, %v632
      %665 = vst.msk [vmem:[#allocation3 + $0x88] sm:$0xff] %vm534, %v633
      %666 = vst.msk [vmem:[#allocation3 + $0x90] sm:$0xff] %vm534, %v634
      %667 = vst.msk [vmem:[#allocation3 + $0x98] sm:$0xff] %vm534, %v635
      %668 = vst.msk [vmem:[#allocation3 + $0xa0] sm:$0xff] %vm534, %v636
      %669 = vst.msk [vmem:[#allocation3 + $0xa8] sm:$0xff] %vm534, %v637
      %670 = vst.msk [vmem:[#allocation3 + $0xb0] sm:$0xff] %vm534, %v638
      %671 = vst.msk [vmem:[#allocation3 + $0xb8] sm:$0xff] %vm534, %v639
      %672 = vst.msk [vmem:[#allocation3 + $0xc0] sm:$0xff] %vm534, %v640
      %673 = vst.msk [vmem:[#allocation3 + $0xc8] sm:$0xff] %vm534, %v641
      %674 = vst.msk [vmem:[#allocation3 + $0xd0] sm:$0xff] %vm534, %v642
      %675 = vst.msk [vmem:[#allocation3 + $0xd8] sm:$0xff] %vm534, %v643
      %676 = vst.msk [vmem:[#allocation3 + $0xe0] sm:$0xff] %vm534, %v644
      %677 = vst.msk [vmem:[#allocation3 + $0xe8] sm:$0xff] %vm534, %v645
      %678 = vst.msk [vmem:[#allocation3 + $0xf0] sm:$0xff] %vm534, %v646
      %679 = vst.msk [vmem:[#allocation3 + $0xf8] sm:$0xff] %vm534, %v647
      %v680 = vld [vmem:[#allocation2 + $0x1] sm:$0xff]
      %v681 = vld [vmem:[#allocation2 + $0x9] sm:$0xff]
      %v682 = vld [vmem:[#allocation2 + $0x19] sm:$0xff]
      %v683 = vld [vmem:[#allocation2 + $0x21] sm:$0xff]
      %v684 = vld [vmem:[#allocation2 + $0x31] sm:$0xff]
      %v685 = vld [vmem:[#allocation2 + $0x39] sm:$0xff]
      %v686 = vld [vmem:[#allocation2 + $0x49] sm:$0xff]
      %v687 = vld [vmem:[#allocation2 + $0x51] sm:$0xff]
      %v688 = vld [vmem:[#allocation2 + $0x61] sm:$0xff]
      %v689 = vld [vmem:[#allocation2 + $0x69] sm:$0xff]
      %v690 = vld [vmem:[#allocation2 + $0x79] sm:$0xff]
      %v691 = vld [vmem:[#allocation2 + $0x81] sm:$0xff]
      %v692 = vld [vmem:[#allocation2 + $0x91] sm:$0xff]
      %v693 = vld [vmem:[#allocation2 + $0x99] sm:$0xff]
      %v694 = vld [vmem:[#allocation2 + $0xa9] sm:$0xff]
      %v695 = vld [vmem:[#allocation2 + $0xb1] sm:$0xff]
      %v696 = vld [vmem:[#allocation2 + $0xc1] sm:$0xff]
      %v697 = vld [vmem:[#allocation2 + $0xc9] sm:$0xff]
      %v698 = vld [vmem:[#allocation2 + $0xd9] sm:$0xff]
      %v699 = vld [vmem:[#allocation2 + $0xe1] sm:$0xff]
      %v700 = vld [vmem:[#allocation2 + $0xf1] sm:$0xff]
      %v701 = vld [vmem:[#allocation2 + $0xf9] sm:$0xff]
      %v702 = vld [vmem:[#allocation2 + $0x109] sm:$0xff]
      %v703 = vld [vmem:[#allocation2 + $0x111] sm:$0xff]
      %v704 = vld [vmem:[#allocation2 + $0x121] sm:$0xff]
      %v705 = vld [vmem:[#allocation2 + $0x129] sm:$0xff]
      %v706 = vld [vmem:[#allocation2 + $0x139] sm:$0xff]
      %v707 = vld [vmem:[#allocation2 + $0x141] sm:$0xff]
      %v708 = vld [vmem:[#allocation2 + $0x151] sm:$0xff]
      %v709 = vld [vmem:[#allocation2 + $0x159] sm:$0xff]
      %v710 = vld [vmem:[#allocation2 + $0x169] sm:$0xff]
      %v711 = vld [vmem:[#allocation2 + $0x171] sm:$0xff]
      %744 = vrot.lane.b32.xlu0 %v680, 8
      %v745 = vpop.permute.xlu0 %744
      %746 = vrot.lane.b32.xlu0 %v681, 8
      %v747 = vpop.permute.xlu0 %746
      %748 = vrot.lane.b32.xlu0 %v682, 8
      %v749 = vpop.permute.xlu0 %748
      %750 = vrot.lane.b32.xlu0 %v683, 8
      %v751 = vpop.permute.xlu0 %750
      %752 = vrot.lane.b32.xlu0 %v684, 8
      %v753 = vpop.permute.xlu0 %752
      %754 = vrot.lane.b32.xlu0 %v685, 8
      %v755 = vpop.permute.xlu0 %754
      %756 = vrot.lane.b32.xlu0 %v686, 8
      %v757 = vpop.permute.xlu0 %756
      %758 = vrot.lane.b32.xlu0 %v687, 8
      %v759 = vpop.permute.xlu0 %758
      %760 = vrot.lane.b32.xlu0 %v688, 8
      %v761 = vpop.permute.xlu0 %760
      %762 = vrot.lane.b32.xlu0 %v689, 8
      %v763 = vpop.permute.xlu0 %762
      %764 = vrot.lane.b32.xlu0 %v690, 8
      %v765 = vpop.permute.xlu0 %764
      %766 = vrot.lane.b32.xlu0 %v691, 8
      %v767 = vpop.permute.xlu0 %766
      %768 = vrot.lane.b32.xlu0 %v692, 8
      %v769 = vpop.permute.xlu0 %768
      %770 = vrot.lane.b32.xlu0 %v693, 8
      %v771 = vpop.permute.xlu0 %770
      %772 = vrot.lane.b32.xlu0 %v694, 8
      %v773 = vpop.permute.xlu0 %772
      %774 = vrot.lane.b32.xlu0 %v695, 8
      %v775 = vpop.permute.xlu0 %774
      %776 = vrot.lane.b32.xlu0 %v696, 8
      %v777 = vpop.permute.xlu0 %776
      %778 = vrot.lane.b32.xlu0 %v697, 8
      %v779 = vpop.permute.xlu0 %778
      %780 = vrot.lane.b32.xlu0 %v698, 8
      %v781 = vpop.permute.xlu0 %780
      %782 = vrot.lane.b32.xlu0 %v699, 8
      %v783 = vpop.permute.xlu0 %782
      %784 = vrot.lane.b32.xlu0 %v700, 8
      %v785 = vpop.permute.xlu0 %784
      %786 = vrot.lane.b32.xlu0 %v701, 8
      %v787 = vpop.permute.xlu0 %786
      %788 = vrot.lane.b32.xlu0 %v702, 8
      %v789 = vpop.permute.xlu0 %788
      %790 = vrot.lane.b32.xlu0 %v703, 8
      %v791 = vpop.permute.xlu0 %790
      %792 = vrot.lane.b32.xlu0 %v704, 8
      %v793 = vpop.permute.xlu0 %792
      %794 = vrot.lane.b32.xlu0 %v705, 8
      %v795 = vpop.permute.xlu0 %794
      %796 = vrot.lane.b32.xlu0 %v706, 8
      %v797 = vpop.permute.xlu0 %796
      %798 = vrot.lane.b32.xlu0 %v707, 8
      %v799 = vpop.permute.xlu0 %798
      %800 = vrot.lane.b32.xlu0 %v708, 8
      %v801 = vpop.permute.xlu0 %800
      %802 = vrot.lane.b32.xlu0 %v709, 8
      %v803 = vpop.permute.xlu0 %802
      %804 = vrot.lane.b32.xlu0 %v710, 8
      %v805 = vpop.permute.xlu0 %804
      %806 = vrot.lane.b32.xlu0 %v711, 8
      %v807 = vpop.permute.xlu0 %806
      %vm840 = vcmask 130112
      %841 = vst.msk [vmem:[#allocation3] sm:$0xff] %vm840, %v745
      %842 = vst.msk [vmem:[#allocation3 + $0x8] sm:$0xff] %vm840, %v747
      %843 = vst.msk [vmem:[#allocation3 + $0x10] sm:$0xff] %vm840, %v749
      %844 = vst.msk [vmem:[#allocation3 + $0x18] sm:$0xff] %vm840, %v751
      %845 = vst.msk [vmem:[#allocation3 + $0x20] sm:$0xff] %vm840, %v753
      %846 = vst.msk [vmem:[#allocation3 + $0x28] sm:$0xff] %vm840, %v755
      %847 = vst.msk [vmem:[#allocation3 + $0x30] sm:$0xff] %vm840, %v757
      %848 = vst.msk [vmem:[#allocation3 + $0x38] sm:$0xff] %vm840, %v759
      %849 = vst.msk [vmem:[#allocation3 + $0x40] sm:$0xff] %vm840, %v761
      %850 = vst.msk [vmem:[#allocation3 + $0x48] sm:$0xff] %vm840, %v763
      %851 = vst.msk [vmem:[#allocation3 + $0x50] sm:$0xff] %vm840, %v765
      %852 = vst.msk [vmem:[#allocation3 + $0x58] sm:$0xff] %vm840, %v767
      %853 = vst.msk [vmem:[#allocation3 + $0x60] sm:$0xff] %vm840, %v769
      %854 = vst.msk [vmem:[#allocation3 + $0x68] sm:$0xff] %vm840, %v771
      %855 = vst.msk [vmem:[#allocation3 + $0x70] sm:$0xff] %vm840, %v773
      %856 = vst.msk [vmem:[#allocation3 + $0x78] sm:$0xff] %vm840, %v775
      %857 = vst.msk [vmem:[#allocation3 + $0x80] sm:$0xff] %vm840, %v777
      %858 = vst.msk [vmem:[#allocation3 + $0x88] sm:$0xff] %vm840, %v779
      %859 = vst.msk [vmem:[#allocation3 + $0x90] sm:$0xff] %vm840, %v781
      %860 = vst.msk [vmem:[#allocation3 + $0x98] sm:$0xff] %vm840, %v783
      %861 = vst.msk [vmem:[#allocation3 + $0xa0] sm:$0xff] %vm840, %v785
      %862 = vst.msk [vmem:[#allocation3 + $0xa8] sm:$0xff] %vm840, %v787
      %863 = vst.msk [vmem:[#allocation3 + $0xb0] sm:$0xff] %vm840, %v789
      %864 = vst.msk [vmem:[#allocation3 + $0xb8] sm:$0xff] %vm840, %v791
      %865 = vst.msk [vmem:[#allocation3 + $0xc0] sm:$0xff] %vm840, %v793
      %866 = vst.msk [vmem:[#allocation3 + $0xc8] sm:$0xff] %vm840, %v795
      %867 = vst.msk [vmem:[#allocation3 + $0xd0] sm:$0xff] %vm840, %v797
      %868 = vst.msk [vmem:[#allocation3 + $0xd8] sm:$0xff] %vm840, %v799
      %869 = vst.msk [vmem:[#allocation3 + $0xe0] sm:$0xff] %vm840, %v801
      %870 = vst.msk [vmem:[#allocation3 + $0xe8] sm:$0xff] %vm840, %v803
      %871 = vst.msk [vmem:[#allocation3 + $0xf0] sm:$0xff] %vm840, %v805
      %872 = vst.msk [vmem:[#allocation3 + $0xf8] sm:$0xff] %vm840, %v807
      %v873 = vld [vmem:[#allocation2 + $0x2] sm:$0xff]
      %v874 = vld [vmem:[#allocation2 + $0xa] sm:$0xff]
      %v875 = vld [vmem:[#allocation2 + $0x1a] sm:$0xff]
      %v876 = vld [vmem:[#allocation2 + $0x22] sm:$0xff]
      %v877 = vld [vmem:[#allocation2 + $0x32] sm:$0xff]
      %v878 = vld [vmem:[#allocation2 + $0x3a] sm:$0xff]
      %v879 = vld [vmem:[#allocation2 + $0x4a] sm:$0xff]
      %v880 = vld [vmem:[#allocation2 + $0x52] sm:$0xff]
      %v881 = vld [vmem:[#allocation2 + $0x62] sm:$0xff]
      %v882 = vld [vmem:[#allocation2 + $0x6a] sm:$0xff]
      %v883 = vld [vmem:[#allocation2 + $0x7a] sm:$0xff]
      %v884 = vld [vmem:[#allocation2 + $0x82] sm:$0xff]
      %v885 = vld [vmem:[#allocation2 + $0x92] sm:$0xff]
      %v886 = vld [vmem:[#allocation2 + $0x9a] sm:$0xff]
      %v887 = vld [vmem:[#allocation2 + $0xaa] sm:$0xff]
      %v888 = vld [vmem:[#allocation2 + $0xb2] sm:$0xff]
      %v889 = vld [vmem:[#allocation2 + $0xc2] sm:$0xff]
      %v890 = vld [vmem:[#allocation2 + $0xca] sm:$0xff]
      %v891 = vld [vmem:[#allocation2 + $0xda] sm:$0xff]
      %v892 = vld [vmem:[#allocation2 + $0xe2] sm:$0xff]
      %v893 = vld [vmem:[#allocation2 + $0xf2] sm:$0xff]
      %v894 = vld [vmem:[#allocation2 + $0xfa] sm:$0xff]
      %v895 = vld [vmem:[#allocation2 + $0x10a] sm:$0xff]
      %v896 = vld [vmem:[#allocation2 + $0x112] sm:$0xff]
      %v897 = vld [vmem:[#allocation2 + $0x122] sm:$0xff]
      %v898 = vld [vmem:[#allocation2 + $0x12a] sm:$0xff]
      %v899 = vld [vmem:[#allocation2 + $0x13a] sm:$0xff]
      %v900 = vld [vmem:[#allocation2 + $0x142] sm:$0xff]
      %v901 = vld [vmem:[#allocation2 + $0x152] sm:$0xff]
      %v902 = vld [vmem:[#allocation2 + $0x15a] sm:$0xff]
      %v903 = vld [vmem:[#allocation2 + $0x16a] sm:$0xff]
      %v904 = vld [vmem:[#allocation2 + $0x172] sm:$0xff]
      %937 = vrot.lane.b32.xlu0 %v873, 16
      %v938 = vpop.permute.xlu0 %937
      %939 = vrot.lane.b32.xlu0 %v874, 16
      %v940 = vpop.permute.xlu0 %939
      %941 = vrot.lane.b32.xlu0 %v875, 16
      %v942 = vpop.permute.xlu0 %941
      %943 = vrot.lane.b32.xlu0 %v876, 16
      %v944 = vpop.permute.xlu0 %943
      %945 = vrot.lane.b32.xlu0 %v877, 16
      %v946 = vpop.permute.xlu0 %945
      %947 = vrot.lane.b32.xlu0 %v878, 16
      %v948 = vpop.permute.xlu0 %947
      %949 = vrot.lane.b32.xlu0 %v879, 16
      %v950 = vpop.permute.xlu0 %949
      %951 = vrot.lane.b32.xlu0 %v880, 16
      %v952 = vpop.permute.xlu0 %951
      %953 = vrot.lane.b32.xlu0 %v881, 16
      %v954 = vpop.permute.xlu0 %953
      %955 = vrot.lane.b32.xlu0 %v882, 16
      %v956 = vpop.permute.xlu0 %955
      %957 = vrot.lane.b32.xlu0 %v883, 16
      %v958 = vpop.permute.xlu0 %957
      %959 = vrot.lane.b32.xlu0 %v884, 16
      %v960 = vpop.permute.xlu0 %959
      %961 = vrot.lane.b32.xlu0 %v885, 16
      %v962 = vpop.permute.xlu0 %961
      %963 = vrot.lane.b32.xlu0 %v886, 16
      %v964 = vpop.permute.xlu0 %963
      %965 = vrot.lane.b32.xlu0 %v887, 16
      %v966 = vpop.permute.xlu0 %965
      %967 = vrot.lane.b32.xlu0 %v888, 16
      %v968 = vpop.permute.xlu0 %967
      %969 = vrot.lane.b32.xlu0 %v889, 16
      %v970 = vpop.permute.xlu0 %969
      %971 = vrot.lane.b32.xlu0 %v890, 16
      %v972 = vpop.permute.xlu0 %971
      %973 = vrot.lane.b32.xlu0 %v891, 16
      %v974 = vpop.permute.xlu0 %973
      %975 = vrot.lane.b32.xlu0 %v892, 16
      %v976 = vpop.permute.xlu0 %975
      %977 = vrot.lane.b32.xlu0 %v893, 16
      %v978 = vpop.permute.xlu0 %977
      %979 = vrot.lane.b32.xlu0 %v894, 16
      %v980 = vpop.permute.xlu0 %979
      %981 = vrot.lane.b32.xlu0 %v895, 16
      %v982 = vpop.permute.xlu0 %981
      %983 = vrot.lane.b32.xlu0 %v896, 16
      %v984 = vpop.permute.xlu0 %983
      %985 = vrot.lane.b32.xlu0 %v897, 16
      %v986 = vpop.permute.xlu0 %985
      %987 = vrot.lane.b32.xlu0 %v898, 16
      %v988 = vpop.permute.xlu0 %987
      %989 = vrot.lane.b32.xlu0 %v899, 16
      %v990 = vpop.permute.xlu0 %989
      %991 = vrot.lane.b32.xlu0 %v900, 16
      %v992 = vpop.permute.xlu0 %991
      %993 = vrot.lane.b32.xlu0 %v901, 16
      %v994 = vpop.permute.xlu0 %993
      %995 = vrot.lane.b32.xlu0 %v902, 16
      %v996 = vpop.permute.xlu0 %995
      %997 = vrot.lane.b32.xlu0 %v903, 16
      %v998 = vpop.permute.xlu0 %997
      %999 = vrot.lane.b32.xlu0 %v904, 16
      %v1000 = vpop.permute.xlu0 %999
      %vm1033 = vcmask 195712
      %1034 = vst.msk [vmem:[#allocation3] sm:$0xff] %vm1033, %v938
      %1035 = vst.msk [vmem:[#allocation3 + $0x8] sm:$0xff] %vm1033, %v940
      %1036 = vst.msk [vmem:[#allocation3 + $0x10] sm:$0xff] %vm1033, %v942
      %1037 = vst.msk [vmem:[#allocation3 + $0x18] sm:$0xff] %vm1033, %v944
      %1038 = vst.msk [vmem:[#allocation3 + $0x20] sm:$0xff] %vm1033, %v946
      %1039 = vst.msk [vmem:[#allocation3 + $0x28] sm:$0xff] %vm1033, %v948
      %1040 = vst.msk [vmem:[#allocation3 + $0x30] sm:$0xff] %vm1033, %v950
      %1041 = vst.msk [vmem:[#allocation3 + $0x38] sm:$0xff] %vm1033, %v952
      %1042 = vst.msk [vmem:[#allocation3 + $0x40] sm:$0xff] %vm1033, %v954
      %1043 = vst.msk [vmem:[#allocation3 + $0x48] sm:$0xff] %vm1033, %v956
      %1044 = vst.msk [vmem:[#allocation3 + $0x50] sm:$0xff] %vm1033, %v958
      %1045 = vst.msk [vmem:[#allocation3 + $0x58] sm:$0xff] %vm1033, %v960
      %1046 = vst.msk [vmem:[#allocation3 + $0x60] sm:$0xff] %vm1033, %v962
      %1047 = vst.msk [vmem:[#allocation3 + $0x68] sm:$0xff] %vm1033, %v964
      %1048 = vst.msk [vmem:[#allocation3 + $0x70] sm:$0xff] %vm1033, %v966
      %1049 = vst.msk [vmem:[#allocation3 + $0x78] sm:$0xff] %vm1033, %v968
      %1050 = vst.msk [vmem:[#allocation3 + $0x80] sm:$0xff] %vm1033, %v970
      %1051 = vst.msk [vmem:[#allocation3 + $0x88] sm:$0xff] %vm1033, %v972
      %1052 = vst.msk [vmem:[#allocation3 + $0x90] sm:$0xff] %vm1033, %v974
      %1053 = vst.msk [vmem:[#allocation3 + $0x98] sm:$0xff] %vm1033, %v976
      %1054 = vst.msk [vmem:[#allocation3 + $0xa0] sm:$0xff] %vm1033, %v978
      %1055 = vst.msk [vmem:[#allocation3 + $0xa8] sm:$0xff] %vm1033, %v980
      %1056 = vst.msk [vmem:[#allocation3 + $0xb0] sm:$0xff] %vm1033, %v982
      %1057 = vst.msk [vmem:[#allocation3 + $0xb8] sm:$0xff] %vm1033, %v984
      %1058 = vst.msk [vmem:[#allocation3 + $0xc0] sm:$0xff] %vm1033, %v986
      %1059 = vst.msk [vmem:[#allocation3 + $0xc8] sm:$0xff] %vm1033, %v988
      %1060 = vst.msk [vmem:[#allocation3 + $0xd0] sm:$0xff] %vm1033, %v990
      %1061 = vst.msk [vmem:[#allocation3 + $0xd8] sm:$0xff] %vm1033, %v992
      %1062 = vst.msk [vmem:[#allocation3 + $0xe0] sm:$0xff] %vm1033, %v994
      %1063 = vst.msk [vmem:[#allocation3 + $0xe8] sm:$0xff] %vm1033, %v996
      %1064 = vst.msk [vmem:[#allocation3 + $0xf0] sm:$0xff] %vm1033, %v998
      %1065 = vst.msk [vmem:[#allocation3 + $0xf8] sm:$0xff] %vm1033, %v1000
      %v1066 = vld [vmem:[%s304] sm:$0xff]
      %v1067 = vld [vmem:[%s304 + $0x8] sm:$0xff]
      %v1068 = vld [vmem:[%s304 + $0x18] sm:$0xff]
      %v1069 = vld [vmem:[%s304 + $0x20] sm:$0xff]
      %v1070 = vld [vmem:[%s304 + $0x30] sm:$0xff]
      %v1071 = vld [vmem:[%s304 + $0x38] sm:$0xff]
      %v1072 = vld [vmem:[%s304 + $0x48] sm:$0xff]
      %v1073 = vld [vmem:[%s304 + $0x50] sm:$0xff]
      %v1074 = vld [vmem:[%s304 + $0x60] sm:$0xff]
      %v1075 = vld [vmem:[%s304 + $0x68] sm:$0xff]
      %v1076 = vld [vmem:[%s304 + $0x78] sm:$0xff]
      %v1077 = vld [vmem:[%s304 + $0x80] sm:$0xff]
      %v1078 = vld [vmem:[%s304 + $0x90] sm:$0xff]
      %v1079 = vld [vmem:[%s304 + $0x98] sm:$0xff]
      %v1080 = vld [vmem:[%s304 + $0xa8] sm:$0xff]
      %v1081 = vld [vmem:[%s304 + $0xb0] sm:$0xff]
      %v1082 = vld [vmem:[%s304 + $0xc0] sm:$0xff]
      %v1083 = vld [vmem:[%s304 + $0xc8] sm:$0xff]
      %v1084 = vld [vmem:[%s304 + $0xd8] sm:$0xff]
      %v1085 = vld [vmem:[%s304 + $0xe0] sm:$0xff]
      %v1086 = vld [vmem:[%s304 + $0xf0] sm:$0xff]
      %v1087 = vld [vmem:[%s304 + $0xf8] sm:$0xff]
      %v1088 = vld [vmem:[%s304 + $0x108] sm:$0xff]
      %v1089 = vld [vmem:[%s304 + $0x110] sm:$0xff]
      %v1090 = vld [vmem:[%s304 + $0x120] sm:$0xff]
      %v1091 = vld [vmem:[%s304 + $0x128] sm:$0xff]
      %v1092 = vld [vmem:[%s304 + $0x138] sm:$0xff]
      %v1093 = vld [vmem:[%s304 + $0x140] sm:$0xff]
      %v1094 = vld [vmem:[%s304 + $0x150] sm:$0xff]
      %v1095 = vld [vmem:[%s304 + $0x158] sm:$0xff]
      %v1096 = vld [vmem:[%s304 + $0x168] sm:$0xff]
      %v1097 = vld [vmem:[%s304 + $0x170] sm:$0xff]
      %1130 = vrot.lane.b32.xlu0 %v1066, 24
      %v1131 = vpop.permute.xlu0 %1130
      %1132 = vrot.lane.b32.xlu0 %v1067, 24
      %v1133 = vpop.permute.xlu0 %1132
      %1134 = vrot.lane.b32.xlu0 %v1068, 24
      %v1135 = vpop.permute.xlu0 %1134
      %1136 = vrot.lane.b32.xlu0 %v1069, 24
      %v1137 = vpop.permute.xlu0 %1136
      %1138 = vrot.lane.b32.xlu0 %v1070, 24
      %v1139 = vpop.permute.xlu0 %1138
      %1140 = vrot.lane.b32.xlu0 %v1071, 24
      %v1141 = vpop.permute.xlu0 %1140
      %1142 = vrot.lane.b32.xlu0 %v1072, 24
      %v1143 = vpop.permute.xlu0 %1142
      %1144 = vrot.lane.b32.xlu0 %v1073, 24
      %v1145 = vpop.permute.xlu0 %1144
      %1146 = vrot.lane.b32.xlu0 %v1074, 24
      %v1147 = vpop.permute.xlu0 %1146
      %1148 = vrot.lane.b32.xlu0 %v1075, 24
      %v1149 = vpop.permute.xlu0 %1148
      %1150 = vrot.lane.b32.xlu0 %v1076, 24
      %v1151 = vpop.permute.xlu0 %1150
      %1152 = vrot.lane.b32.xlu0 %v1077, 24
      %v1153 = vpop.permute.xlu0 %1152
      %1154 = vrot.lane.b32.xlu0 %v1078, 24
      %v1155 = vpop.permute.xlu0 %1154
      %1156 = vrot.lane.b32.xlu0 %v1079, 24
      %v1157 = vpop.permute.xlu0 %1156
      %1158 = vrot.lane.b32.xlu0 %v1080, 24
      %v1159 = vpop.permute.xlu0 %1158
      %1160 = vrot.lane.b32.xlu0 %v1081, 24
      %v1161 = vpop.permute.xlu0 %1160
      %1162 = vrot.lane.b32.xlu0 %v1082, 24
      %v1163 = vpop.permute.xlu0 %1162
      %1164 = vrot.lane.b32.xlu0 %v1083, 24
      %v1165 = vpop.permute.xlu0 %1164
      %1166 = vrot.lane.b32.xlu0 %v1084, 24
      %v1167 = vpop.permute.xlu0 %1166
      %1168 = vrot.lane.b32.xlu0 %v1085, 24
      %v1169 = vpop.permute.xlu0 %1168
      %1170 = vrot.lane.b32.xlu0 %v1086, 24
      %v1171 = vpop.permute.xlu0 %1170
      %1172 = vrot.lane.b32.xlu0 %v1087, 24
      %v1173 = vpop.permute.xlu0 %1172
      %1174 = vrot.lane.b32.xlu0 %v1088, 24
      %v1175 = vpop.permute.xlu0 %1174
      %1176 = vrot.lane.b32.xlu0 %v1089, 24
      %v1177 = vpop.permute.xlu0 %1176
      %1178 = vrot.lane.b32.xlu0 %v1090, 24
      %v1179 = vpop.permute.xlu0 %1178
      %1180 = vrot.lane.b32.xlu0 %v1091, 24
      %v1181 = vpop.permute.xlu0 %1180
      %1182 = vrot.lane.b32.xlu0 %v1092, 24
      %v1183 = vpop.permute.xlu0 %1182
      %1184 = vrot.lane.b32.xlu0 %v1093, 24
      %v1185 = vpop.permute.xlu0 %1184
      %1186 = vrot.lane.b32.xlu0 %v1094, 24
      %v1187 = vpop.permute.xlu0 %1186
      %1188 = vrot.lane.b32.xlu0 %v1095, 24
      %v1189 = vpop.permute.xlu0 %1188
      %1190 = vrot.lane.b32.xlu0 %v1096, 24
      %v1191 = vpop.permute.xlu0 %1190
      %1192 = vrot.lane.b32.xlu0 %v1097, 24
      %v1193 = vpop.permute.xlu0 %1192
      %vm1226 = vcmask 261312
      %1227 = vst.msk [vmem:[#allocation3] sm:$0xff] %vm1226, %v1131
      %1228 = vst.msk [vmem:[#allocation3 + $0x8] sm:$0xff] %vm1226, %v1133
      %1229 = vst.msk [vmem:[#allocation3 + $0x10] sm:$0xff] %vm1226, %v1135
      %1230 = vst.msk [vmem:[#allocation3 + $0x18] sm:$0xff] %vm1226, %v1137
      %1231 = vst.msk [vmem:[#allocation3 + $0x20] sm:$0xff] %vm1226, %v1139
      %1232 = vst.msk [vmem:[#allocation3 + $0x28] sm:$0xff] %vm1226, %v1141
      %1233 = vst.msk [vmem:[#allocation3 + $0x30] sm:$0xff] %vm1226, %v1143
      %1234 = vst.msk [vmem:[#allocation3 + $0x38] sm:$0xff] %vm1226, %v1145
      %1235 = vst.msk [vmem:[#allocation3 + $0x40] sm:$0xff] %vm1226, %v1147
      %1236 = vst.msk [vmem:[#allocation3 + $0x48] sm:$0xff] %vm1226, %v1149
      %1237 = vst.msk [vmem:[#allocation3 + $0x50] sm:$0xff] %vm1226, %v1151
      %1238 = vst.msk [vmem:[#allocation3 + $0x58] sm:$0xff] %vm1226, %v1153
      %1239 = vst.msk [vmem:[#allocation3 + $0x60] sm:$0xff] %vm1226, %v1155
      %1240 = vst.msk [vmem:[#allocation3 + $0x68] sm:$0xff] %vm1226, %v1157
      %1241 = vst.msk [vmem:[#allocation3 + $0x70] sm:$0xff] %vm1226, %v1159
      %1242 = vst.msk [vmem:[#allocation3 + $0x78] sm:$0xff] %vm1226, %v1161
      %1243 = vst.msk [vmem:[#allocation3 + $0x80] sm:$0xff] %vm1226, %v1163
      %1244 = vst.msk [vmem:[#allocation3 + $0x88] sm:$0xff] %vm1226, %v1165
      %1245 = vst.msk [vmem:[#allocation3 + $0x90] sm:$0xff] %vm1226, %v1167
      %1246 = vst.msk [vmem:[#allocation3 + $0x98] sm:$0xff] %vm1226, %v1169
      %1247 = vst.msk [vmem:[#allocation3 + $0xa0] sm:$0xff] %vm1226, %v1171
      %1248 = vst.msk [vmem:[#allocation3 + $0xa8] sm:$0xff] %vm1226, %v1173
      %1249 = vst.msk [vmem:[#allocation3 + $0xb0] sm:$0xff] %vm1226, %v1175
      %1250 = vst.msk [vmem:[#allocation3 + $0xb8] sm:$0xff] %vm1226, %v1177
      %1251 = vst.msk [vmem:[#allocation3 + $0xc0] sm:$0xff] %vm1226, %v1179
      %1252 = vst.msk [vmem:[#allocation3 + $0xc8] sm:$0xff] %vm1226, %v1181
      %1253 = vst.msk [vmem:[#allocation3 + $0xd0] sm:$0xff] %vm1226, %v1183
      %1254 = vst.msk [vmem:[#allocation3 + $0xd8] sm:$0xff] %vm1226, %v1185
      %1255 = vst.msk [vmem:[#allocation3 + $0xe0] sm:$0xff] %vm1226, %v1187
      %1256 = vst.msk [vmem:[#allocation3 + $0xe8] sm:$0xff] %vm1226, %v1189
      %1257 = vst.msk [vmem:[#allocation3 + $0xf0] sm:$0xff] %vm1226, %v1191
      %1258 = vst.msk [vmem:[#allocation3 + $0xf8] sm:$0xff] %vm1226, %v1193
      %v1259 = vld [vmem:[%s304 + $0x1] sm:$0xff]
      %v1260 = vld [vmem:[%s304 + $0x9] sm:$0xff]
      %v1261 = vld [vmem:[%s304 + $0x19] sm:$0xff]
      %v1262 = vld [vmem:[%s304 + $0x21] sm:$0xff]
      %v1263 = vld [vmem:[%s304 + $0x31] sm:$0xff]
      %v1264 = vld [vmem:[%s304 + $0x39] sm:$0xff]
      %v1265 = vld [vmem:[%s304 + $0x49] sm:$0xff]
      %v1266 = vld [vmem:[%s304 + $0x51] sm:$0xff]
      %v1267 = vld [vmem:[%s304 + $0x61] sm:$0xff]
      %v1268 = vld [vmem:[%s304 + $0x69] sm:$0xff]
      %v1269 = vld [vmem:[%s304 + $0x79] sm:$0xff]
      %v1270 = vld [vmem:[%s304 + $0x81] sm:$0xff]
      %v1271 = vld [vmem:[%s304 + $0x91] sm:$0xff]
      %v1272 = vld [vmem:[%s304 + $0x99] sm:$0xff]
      %v1273 = vld [vmem:[%s304 + $0xa9] sm:$0xff]
      %v1274 = vld [vmem:[%s304 + $0xb1] sm:$0xff]
      %v1275 = vld [vmem:[%s304 + $0xc1] sm:$0xff]
      %v1276 = vld [vmem:[%s304 + $0xc9] sm:$0xff]
      %v1277 = vld [vmem:[%s304 + $0xd9] sm:$0xff]
      %v1278 = vld [vmem:[%s304 + $0xe1] sm:$0xff]
      %v1279 = vld [vmem:[%s304 + $0xf1] sm:$0xff]
      %v1280 = vld [vmem:[%s304 + $0xf9] sm:$0xff]
      %v1281 = vld [vmem:[%s304 + $0x109] sm:$0xff]
      %v1282 = vld [vmem:[%s304 + $0x111] sm:$0xff]
      %v1283 = vld [vmem:[%s304 + $0x121] sm:$0xff]
      %v1284 = vld [vmem:[%s304 + $0x129] sm:$0xff]
      %v1285 = vld [vmem:[%s304 + $0x139] sm:$0xff]
      %v1286 = vld [vmem:[%s304 + $0x141] sm:$0xff]
      %v1287 = vld [vmem:[%s304 + $0x151] sm:$0xff]
      %v1288 = vld [vmem:[%s304 + $0x159] sm:$0xff]
      %v1289 = vld [vmem:[%s304 + $0x169] sm:$0xff]
      %v1290 = vld [vmem:[%s304 + $0x171] sm:$0xff]
      %1323 = vrot.lane.b32.xlu0 %v1259, 32
      %v1324 = vpop.permute.xlu0 %1323
      %1325 = vrot.lane.b32.xlu0 %v1260, 32
      %v1326 = vpop.permute.xlu0 %1325
      %1327 = vrot.lane.b32.xlu0 %v1261, 32
      %v1328 = vpop.permute.xlu0 %1327
      %1329 = vrot.lane.b32.xlu0 %v1262, 32
      %v1330 = vpop.permute.xlu0 %1329
      %1331 = vrot.lane.b32.xlu0 %v1263, 32
      %v1332 = vpop.permute.xlu0 %1331
      %1333 = vrot.lane.b32.xlu0 %v1264, 32
      %v1334 = vpop.permute.xlu0 %1333
      %1335 = vrot.lane.b32.xlu0 %v1265, 32
      %v1336 = vpop.permute.xlu0 %1335
      %1337 = vrot.lane.b32.xlu0 %v1266, 32
      %v1338 = vpop.permute.xlu0 %1337
      %1339 = vrot.lane.b32.xlu0 %v1267, 32
      %v1340 = vpop.permute.xlu0 %1339
      %1341 = vrot.lane.b32.xlu0 %v1268, 32
      %v1342 = vpop.permute.xlu0 %1341
      %1343 = vrot.lane.b32.xlu0 %v1269, 32
      %v1344 = vpop.permute.xlu0 %1343
      %1345 = vrot.lane.b32.xlu0 %v1270, 32
      %v1346 = vpop.permute.xlu0 %1345
      %1347 = vrot.lane.b32.xlu0 %v1271, 32
      %v1348 = vpop.permute.xlu0 %1347
      %1349 = vrot.lane.b32.xlu0 %v1272, 32
      %v1350 = vpop.permute.xlu0 %1349
      %1351 = vrot.lane.b32.xlu0 %v1273, 32
      %v1352 = vpop.permute.xlu0 %1351
      %1353 = vrot.lane.b32.xlu0 %v1274, 32
      %v1354 = vpop.permute.xlu0 %1353
      %1355 = vrot.lane.b32.xlu0 %v1275, 32
      %v1356 = vpop.permute.xlu0 %1355
      %1357 = vrot.lane.b32.xlu0 %v1276, 32
      %v1358 = vpop.permute.xlu0 %1357
      %1359 = vrot.lane.b32.xlu0 %v1277, 32
      %v1360 = vpop.permute.xlu0 %1359
      %1361 = vrot.lane.b32.xlu0 %v1278, 32
      %v1362 = vpop.permute.xlu0 %1361
      %1363 = vrot.lane.b32.xlu0 %v1279, 32
      %v1364 = vpop.permute.xlu0 %1363
      %1365 = vrot.lane.b32.xlu0 %v1280, 32
      %v1366 = vpop.permute.xlu0 %1365
      %1367 = vrot.lane.b32.xlu0 %v1281, 32
      %v1368 = vpop.permute.xlu0 %1367
      %1369 = vrot.lane.b32.xlu0 %v1282, 32
      %v1370 = vpop.permute.xlu0 %1369
      %1371 = vrot.lane.b32.xlu0 %v1283, 32
      %v1372 = vpop.permute.xlu0 %1371
      %1373 = vrot.lane.b32.xlu0 %v1284, 32
      %v1374 = vpop.permute.xlu0 %1373
      %1375 = vrot.lane.b32.xlu0 %v1285, 32
      %v1376 = vpop.permute.xlu0 %1375
      %1377 = vrot.lane.b32.xlu0 %v1286, 32
      %v1378 = vpop.permute.xlu0 %1377
      %1379 = vrot.lane.b32.xlu0 %v1287, 32
      %v1380 = vpop.permute.xlu0 %1379
      %1381 = vrot.lane.b32.xlu0 %v1288, 32
      %v1382 = vpop.permute.xlu0 %1381
      %1383 = vrot.lane.b32.xlu0 %v1289, 32
      %v1384 = vpop.permute.xlu0 %1383
      %1385 = vrot.lane.b32.xlu0 %v1290, 32
      %v1386 = vpop.permute.xlu0 %1385
      %vm1419 = vcmask 326912
      %1420 = vst.msk [vmem:[#allocation3] sm:$0xff] %vm1419, %v1324
      %1421 = vst.msk [vmem:[#allocation3 + $0x8] sm:$0xff] %vm1419, %v1326
      %1422 = vst.msk [vmem:[#allocation3 + $0x10] sm:$0xff] %vm1419, %v1328
      %1423 = vst.msk [vmem:[#allocation3 + $0x18] sm:$0xff] %vm1419, %v1330
      %1424 = vst.msk [vmem:[#allocation3 + $0x20] sm:$0xff] %vm1419, %v1332
      %1425 = vst.msk [vmem:[#allocation3 + $0x28] sm:$0xff] %vm1419, %v1334
      %1426 = vst.msk [vmem:[#allocation3 + $0x30] sm:$0xff] %vm1419, %v1336
      %1427 = vst.msk [vmem:[#allocation3 + $0x38] sm:$0xff] %vm1419, %v1338
      %1428 = vst.msk [vmem:[#allocation3 + $0x40] sm:$0xff] %vm1419, %v1340
      %1429 = vst.msk [vmem:[#allocation3 + $0x48] sm:$0xff] %vm1419, %v1342
      %1430 = vst.msk [vmem:[#allocation3 + $0x50] sm:$0xff] %vm1419, %v1344
      %1431 = vst.msk [vmem:[#allocation3 + $0x58] sm:$0xff] %vm1419, %v1346
      %1432 = vst.msk [vmem:[#allocation3 + $0x60] sm:$0xff] %vm1419, %v1348
      %1433 = vst.msk [vmem:[#allocation3 + $0x68] sm:$0xff] %vm1419, %v1350
      %1434 = vst.msk [vmem:[#allocation3 + $0x70] sm:$0xff] %vm1419, %v1352
      %1435 = vst.msk [vmem:[#allocation3 + $0x78] sm:$0xff] %vm1419, %v1354
      %1436 = vst.msk [vmem:[#allocation3 + $0x80] sm:$0xff] %vm1419, %v1356
      %1437 = vst.msk [vmem:[#allocation3 + $0x88] sm:$0xff] %vm1419, %v1358
      %1438 = vst.msk [vmem:[#allocation3 + $0x90] sm:$0xff] %vm1419, %v1360
      %1439 = vst.msk [vmem:[#allocation3 + $0x98] sm:$0xff] %vm1419, %v1362
      %1440 = vst.msk [vmem:[#allocation3 + $0xa0] sm:$0xff] %vm1419, %v1364
      %1441 = vst.msk [vmem:[#allocation3 + $0xa8] sm:$0xff] %vm1419, %v1366
      %1442 = vst.msk [vmem:[#allocation3 + $0xb0] sm:$0xff] %vm1419, %v1368
      %1443 = vst.msk [vmem:[#allocation3 + $0xb8] sm:$0xff] %vm1419, %v1370
      %1444 = vst.msk [vmem:[#allocation3 + $0xc0] sm:$0xff] %vm1419, %v1372
      %1445 = vst.msk [vmem:[#allocation3 + $0xc8] sm:$0xff] %vm1419, %v1374
      %1446 = vst.msk [vmem:[#allocation3 + $0xd0] sm:$0xff] %vm1419, %v1376
      %1447 = vst.msk [vmem:[#allocation3 + $0xd8] sm:$0xff] %vm1419, %v1378
      %1448 = vst.msk [vmem:[#allocation3 + $0xe0] sm:$0xff] %vm1419, %v1380
      %1449 = vst.msk [vmem:[#allocation3 + $0xe8] sm:$0xff] %vm1419, %v1382
      %1450 = vst.msk [vmem:[#allocation3 + $0xf0] sm:$0xff] %vm1419, %v1384
      %1451 = vst.msk [vmem:[#allocation3 + $0xf8] sm:$0xff] %vm1419, %v1386
      %v1452 = vld [vmem:[%s304 + $0x2] sm:$0xff]
      %v1453 = vld [vmem:[%s304 + $0xa] sm:$0xff]
      %v1454 = vld [vmem:[%s304 + $0x1a] sm:$0xff]
      %v1455 = vld [vmem:[%s304 + $0x22] sm:$0xff]
      %v1456 = vld [vmem:[%s304 + $0x32] sm:$0xff]
      %v1457 = vld [vmem:[%s304 + $0x3a] sm:$0xff]
      %v1458 = vld [vmem:[%s304 + $0x4a] sm:$0xff]
      %v1459 = vld [vmem:[%s304 + $0x52] sm:$0xff]
      %v1460 = vld [vmem:[%s304 + $0x62] sm:$0xff]
      %v1461 = vld [vmem:[%s304 + $0x6a] sm:$0xff]
      %v1462 = vld [vmem:[%s304 + $0x7a] sm:$0xff]
      %v1463 = vld [vmem:[%s304 + $0x82] sm:$0xff]
      %v1464 = vld [vmem:[%s304 + $0x92] sm:$0xff]
      %v1465 = vld [vmem:[%s304 + $0x9a] sm:$0xff]
      %v1466 = vld [vmem:[%s304 + $0xaa] sm:$0xff]
      %v1467 = vld [vmem:[%s304 + $0xb2] sm:$0xff]
      %v1468 = vld [vmem:[%s304 + $0xc2] sm:$0xff]
      %v1469 = vld [vmem:[%s304 + $0xca] sm:$0xff]
      %v1470 = vld [vmem:[%s304 + $0xda] sm:$0xff]
      %v1471 = vld [vmem:[%s304 + $0xe2] sm:$0xff]
      %v1472 = vld [vmem:[%s304 + $0xf2] sm:$0xff]
      %v1473 = vld [vmem:[%s304 + $0xfa] sm:$0xff]
      %v1474 = vld [vmem:[%s304 + $0x10a] sm:$0xff]
      %v1475 = vld [vmem:[%s304 + $0x112] sm:$0xff]
      %v1476 = vld [vmem:[%s304 + $0x122] sm:$0xff]
      %v1477 = vld [vmem:[%s304 + $0x12a] sm:$0xff]
      %v1478 = vld [vmem:[%s304 + $0x13a] sm:$0xff]
      %v1479 = vld [vmem:[%s304 + $0x142] sm:$0xff]
      %v1480 = vld [vmem:[%s304 + $0x152] sm:$0xff]
      %v1481 = vld [vmem:[%s304 + $0x15a] sm:$0xff]
      %v1482 = vld [vmem:[%s304 + $0x16a] sm:$0xff]
      %v1483 = vld [vmem:[%s304 + $0x172] sm:$0xff]
      %1516 = vrot.lane.b32.xlu0 %v1452, 40
      %v1517 = vpop.permute.xlu0 %1516
      %1518 = vrot.lane.b32.xlu0 %v1453, 40
      %v1519 = vpop.permute.xlu0 %1518
      %1520 = vrot.lane.b32.xlu0 %v1454, 40
      %v1521 = vpop.permute.xlu0 %1520
      %1522 = vrot.lane.b32.xlu0 %v1455, 40
      %v1523 = vpop.permute.xlu0 %1522
      %1524 = vrot.lane.b32.xlu0 %v1456, 40
      %v1525 = vpop.permute.xlu0 %1524
      %1526 = vrot.lane.b32.xlu0 %v1457, 40
      %v1527 = vpop.permute.xlu0 %1526
      %1528 = vrot.lane.b32.xlu0 %v1458, 40
      %v1529 = vpop.permute.xlu0 %1528
      %1530 = vrot.lane.b32.xlu0 %v1459, 40
      %v1531 = vpop.permute.xlu0 %1530
      %1532 = vrot.lane.b32.xlu0 %v1460, 40
      %v1533 = vpop.permute.xlu0 %1532
      %1534 = vrot.lane.b32.xlu0 %v1461, 40
      %v1535 = vpop.permute.xlu0 %1534
      %1536 = vrot.lane.b32.xlu0 %v1462, 40
      %v1537 = vpop.permute.xlu0 %1536
      %1538 = vrot.lane.b32.xlu0 %v1463, 40
      %v1539 = vpop.permute.xlu0 %1538
      %1540 = vrot.lane.b32.xlu0 %v1464, 40
      %v1541 = vpop.permute.xlu0 %1540
      %1542 = vrot.lane.b32.xlu0 %v1465, 40
      %v1543 = vpop.permute.xlu0 %1542
      %1544 = vrot.lane.b32.xlu0 %v1466, 40
      %v1545 = vpop.permute.xlu0 %1544
      %1546 = vrot.lane.b32.xlu0 %v1467, 40
      %v1547 = vpop.permute.xlu0 %1546
      %1548 = vrot.lane.b32.xlu0 %v1468, 40
      %v1549 = vpop.permute.xlu0 %1548
      %1550 = vrot.lane.b32.xlu0 %v1469, 40
      %v1551 = vpop.permute.xlu0 %1550
      %1552 = vrot.lane.b32.xlu0 %v1470, 40
      %v1553 = vpop.permute.xlu0 %1552
      %1554 = vrot.lane.b32.xlu0 %v1471, 40
      %v1555 = vpop.permute.xlu0 %1554
      %1556 = vrot.lane.b32.xlu0 %v1472, 40
      %v1557 = vpop.permute.xlu0 %1556
      %1558 = vrot.lane.b32.xlu0 %v1473, 40
      %v1559 = vpop.permute.xlu0 %1558
      %1560 = vrot.lane.b32.xlu0 %v1474, 40
      %v1561 = vpop.permute.xlu0 %1560
      %1562 = vrot.lane.b32.xlu0 %v1475, 40
      %v1563 = vpop.permute.xlu0 %1562
      %1564 = vrot.lane.b32.xlu0 %v1476, 40
      %v1565 = vpop.permute.xlu0 %1564
      %1566 = vrot.lane.b32.xlu0 %v1477, 40
      %v1567 = vpop.permute.xlu0 %1566
      %1568 = vrot.lane.b32.xlu0 %v1478, 40
      %v1569 = vpop.permute.xlu0 %1568
      %1570 = vrot.lane.b32.xlu0 %v1479, 40
      %v1571 = vpop.permute.xlu0 %1570
      %1572 = vrot.lane.b32.xlu0 %v1480, 40
      %v1573 = vpop.permute.xlu0 %1572
      %1574 = vrot.lane.b32.xlu0 %v1481, 40
      %v1575 = vpop.permute.xlu0 %1574
      %1576 = vrot.lane.b32.xlu0 %v1482, 40
      %v1577 = vpop.permute.xlu0 %1576
      %1578 = vrot.lane.b32.xlu0 %v1483, 40
      %v1579 = vpop.permute.xlu0 %1578
      %vm1612 = vcmask 392512
      %1613 = vst.msk [vmem:[#allocation3] sm:$0xff] %vm1612, %v1517
      %1614 = vst.msk [vmem:[#allocation3 + $0x8] sm:$0xff] %vm1612, %v1519
      %1615 = vst.msk [vmem:[#allocation3 + $0x10] sm:$0xff] %vm1612, %v1521
      %1616 = vst.msk [vmem:[#allocation3 + $0x18] sm:$0xff] %vm1612, %v1523
      %1617 = vst.msk [vmem:[#allocation3 + $0x20] sm:$0xff] %vm1612, %v1525
      %1618 = vst.msk [vmem:[#allocation3 + $0x28] sm:$0xff] %vm1612, %v1527
      %1619 = vst.msk [vmem:[#allocation3 + $0x30] sm:$0xff] %vm1612, %v1529
      %1620 = vst.msk [vmem:[#allocation3 + $0x38] sm:$0xff] %vm1612, %v1531
      %1621 = vst.msk [vmem:[#allocation3 + $0x40] sm:$0xff] %vm1612, %v1533
      %1622 = vst.msk [vmem:[#allocation3 + $0x48] sm:$0xff] %vm1612, %v1535
      %1623 = vst.msk [vmem:[#allocation3 + $0x50] sm:$0xff] %vm1612, %v1537
      %1624 = vst.msk [vmem:[#allocation3 + $0x58] sm:$0xff] %vm1612, %v1539
      %1625 = vst.msk [vmem:[#allocation3 + $0x60] sm:$0xff] %vm1612, %v1541
      %1626 = vst.msk [vmem:[#allocation3 + $0x68] sm:$0xff] %vm1612, %v1543
      %1627 = vst.msk [vmem:[#allocation3 + $0x70] sm:$0xff] %vm1612, %v1545
      %1628 = vst.msk [vmem:[#allocation3 + $0x78] sm:$0xff] %vm1612, %v1547
      %1629 = vst.msk [vmem:[#allocation3 + $0x80] sm:$0xff] %vm1612, %v1549
      %1630 = vst.msk [vmem:[#allocation3 + $0x88] sm:$0xff] %vm1612, %v1551
      %1631 = vst.msk [vmem:[#allocation3 + $0x90] sm:$0xff] %vm1612, %v1553
      %1632 = vst.msk [vmem:[#allocation3 + $0x98] sm:$0xff] %vm1612, %v1555
      %1633 = vst.msk [vmem:[#allocation3 + $0xa0] sm:$0xff] %vm1612, %v1557
      %1634 = vst.msk [vmem:[#allocation3 + $0xa8] sm:$0xff] %vm1612, %v1559
      %1635 = vst.msk [vmem:[#allocation3 + $0xb0] sm:$0xff] %vm1612, %v1561
      %1636 = vst.msk [vmem:[#allocation3 + $0xb8] sm:$0xff] %vm1612, %v1563
      %1637 = vst.msk [vmem:[#allocation3 + $0xc0] sm:$0xff] %vm1612, %v1565
      %1638 = vst.msk [vmem:[#allocation3 + $0xc8] sm:$0xff] %vm1612, %v1567
      %1639 = vst.msk [vmem:[#allocation3 + $0xd0] sm:$0xff] %vm1612, %v1569
      %1640 = vst.msk [vmem:[#allocation3 + $0xd8] sm:$0xff] %vm1612, %v1571
      %1641 = vst.msk [vmem:[#allocation3 + $0xe0] sm:$0xff] %vm1612, %v1573
      %1642 = vst.msk [vmem:[#allocation3 + $0xe8] sm:$0xff] %vm1612, %v1575
      %1643 = vst.msk [vmem:[#allocation3 + $0xf0] sm:$0xff] %vm1612, %v1577
      %1644 = vst.msk [vmem:[#allocation3 + $0xf8] sm:$0xff] %vm1612, %v1579
      %v1645 = vld [vmem:[%s531] sm:$0xff]
      %v1646 = vld [vmem:[%s531 + $0x8] sm:$0xff]
      %v1647 = vld [vmem:[%s531 + $0x18] sm:$0xff]
      %v1648 = vld [vmem:[%s531 + $0x20] sm:$0xff]
      %v1649 = vld [vmem:[%s531 + $0x30] sm:$0xff]
      %v1650 = vld [vmem:[%s531 + $0x38] sm:$0xff]
      %v1651 = vld [vmem:[%s531 + $0x48] sm:$0xff]
      %v1652 = vld [vmem:[%s531 + $0x50] sm:$0xff]
      %v1653 = vld [vmem:[%s531 + $0x60] sm:$0xff]
      %v1654 = vld [vmem:[%s531 + $0x68] sm:$0xff]
      %v1655 = vld [vmem:[%s531 + $0x78] sm:$0xff]
      %v1656 = vld [vmem:[%s531 + $0x80] sm:$0xff]
      %v1657 = vld [vmem:[%s531 + $0x90] sm:$0xff]
      %v1658 = vld [vmem:[%s531 + $0x98] sm:$0xff]
      %v1659 = vld [vmem:[%s531 + $0xa8] sm:$0xff]
      %v1660 = vld [vmem:[%s531 + $0xb0] sm:$0xff]
      %v1661 = vld [vmem:[%s531 + $0xc0] sm:$0xff]
      %v1662 = vld [vmem:[%s531 + $0xc8] sm:$0xff]
      %v1663 = vld [vmem:[%s531 + $0xd8] sm:$0xff]
      %v1664 = vld [vmem:[%s531 + $0xe0] sm:$0xff]
      %v1665 = vld [vmem:[%s531 + $0xf0] sm:$0xff]
      %v1666 = vld [vmem:[%s531 + $0xf8] sm:$0xff]
      %v1667 = vld [vmem:[%s531 + $0x108] sm:$0xff]
      %v1668 = vld [vmem:[%s531 + $0x110] sm:$0xff]
      %v1669 = vld [vmem:[%s531 + $0x120] sm:$0xff]
      %v1670 = vld [vmem:[%s531 + $0x128] sm:$0xff]
      %v1671 = vld [vmem:[%s531 + $0x138] sm:$0xff]
      %v1672 = vld [vmem:[%s531 + $0x140] sm:$0xff]
      %v1673 = vld [vmem:[%s531 + $0x150] sm:$0xff]
      %v1674 = vld [vmem:[%s531 + $0x158] sm:$0xff]
      %v1675 = vld [vmem:[%s531 + $0x168] sm:$0xff]
      %v1676 = vld [vmem:[%s531 + $0x170] sm:$0xff]
      %1709 = vrot.lane.b32.xlu0 %v1645, 48
      %v1710 = vpop.permute.xlu0 %1709
      %1711 = vrot.lane.b32.xlu0 %v1646, 48
      %v1712 = vpop.permute.xlu0 %1711
      %1713 = vrot.lane.b32.xlu0 %v1647, 48
      %v1714 = vpop.permute.xlu0 %1713
      %1715 = vrot.lane.b32.xlu0 %v1648, 48
      %v1716 = vpop.permute.xlu0 %1715
      %1717 = vrot.lane.b32.xlu0 %v1649, 48
      %v1718 = vpop.permute.xlu0 %1717
      %1719 = vrot.lane.b32.xlu0 %v1650, 48
      %v1720 = vpop.permute.xlu0 %1719
      %1721 = vrot.lane.b32.xlu0 %v1651, 48
      %v1722 = vpop.permute.xlu0 %1721
      %1723 = vrot.lane.b32.xlu0 %v1652, 48
      %v1724 = vpop.permute.xlu0 %1723
      %1725 = vrot.lane.b32.xlu0 %v1653, 48
      %v1726 = vpop.permute.xlu0 %1725
      %1727 = vrot.lane.b32.xlu0 %v1654, 48
      %v1728 = vpop.permute.xlu0 %1727
      %1729 = vrot.lane.b32.xlu0 %v1655, 48
      %v1730 = vpop.permute.xlu0 %1729
      %1731 = vrot.lane.b32.xlu0 %v1656, 48
      %v1732 = vpop.permute.xlu0 %1731
      %1733 = vrot.lane.b32.xlu0 %v1657, 48
      %v1734 = vpop.permute.xlu0 %1733
      %1735 = vrot.lane.b32.xlu0 %v1658, 48
      %v1736 = vpop.permute.xlu0 %1735
      %1737 = vrot.lane.b32.xlu0 %v1659, 48
      %v1738 = vpop.permute.xlu0 %1737
      %1739 = vrot.lane.b32.xlu0 %v1660, 48
      %v1740 = vpop.permute.xlu0 %1739
      %1741 = vrot.lane.b32.xlu0 %v1661, 48
      %v1742 = vpop.permute.xlu0 %1741
      %1743 = vrot.lane.b32.xlu0 %v1662, 48
      %v1744 = vpop.permute.xlu0 %1743
      %1745 = vrot.lane.b32.xlu0 %v1663, 48
      %v1746 = vpop.permute.xlu0 %1745
      %1747 = vrot.lane.b32.xlu0 %v1664, 48
      %v1748 = vpop.permute.xlu0 %1747
      %1749 = vrot.lane.b32.xlu0 %v1665, 48
      %v1750 = vpop.permute.xlu0 %1749
      %1751 = vrot.lane.b32.xlu0 %v1666, 48
      %v1752 = vpop.permute.xlu0 %1751
      %1753 = vrot.lane.b32.xlu0 %v1667, 48
      %v1754 = vpop.permute.xlu0 %1753
      %1755 = vrot.lane.b32.xlu0 %v1668, 48
      %v1756 = vpop.permute.xlu0 %1755
      %1757 = vrot.lane.b32.xlu0 %v1669, 48
      %v1758 = vpop.permute.xlu0 %1757
      %1759 = vrot.lane.b32.xlu0 %v1670, 48
      %v1760 = vpop.permute.xlu0 %1759
      %1761 = vrot.lane.b32.xlu0 %v1671, 48
      %v1762 = vpop.permute.xlu0 %1761
      %1763 = vrot.lane.b32.xlu0 %v1672, 48
      %v1764 = vpop.permute.xlu0 %1763
      %1765 = vrot.lane.b32.xlu0 %v1673, 48
      %v1766 = vpop.permute.xlu0 %1765
      %1767 = vrot.lane.b32.xlu0 %v1674, 48
      %v1768 = vpop.permute.xlu0 %1767
      %1769 = vrot.lane.b32.xlu0 %v1675, 48
      %v1770 = vpop.permute.xlu0 %1769
      %1771 = vrot.lane.b32.xlu0 %v1676, 48
      %v1772 = vpop.permute.xlu0 %1771
      %vm1805 = vcmask 458112
      %1806 = vst.msk [vmem:[#allocation3] sm:$0xff] %vm1805, %v1710
      %1807 = vst.msk [vmem:[#allocation3 + $0x8] sm:$0xff] %vm1805, %v1712
      %1808 = vst.msk [vmem:[#allocation3 + $0x10] sm:$0xff] %vm1805, %v1714
      %1809 = vst.msk [vmem:[#allocation3 + $0x18] sm:$0xff] %vm1805, %v1716
      %1810 = vst.msk [vmem:[#allocation3 + $0x20] sm:$0xff] %vm1805, %v1718
      %1811 = vst.msk [vmem:[#allocation3 + $0x28] sm:$0xff] %vm1805, %v1720
      %1812 = vst.msk [vmem:[#allocation3 + $0x30] sm:$0xff] %vm1805, %v1722
      %1813 = vst.msk [vmem:[#allocation3 + $0x38] sm:$0xff] %vm1805, %v1724
      %1814 = vst.msk [vmem:[#allocation3 + $0x40] sm:$0xff] %vm1805, %v1726
      %1815 = vst.msk [vmem:[#allocation3 + $0x48] sm:$0xff] %vm1805, %v1728
      %1816 = vst.msk [vmem:[#allocation3 + $0x50] sm:$0xff] %vm1805, %v1730
      %1817 = vst.msk [vmem:[#allocation3 + $0x58] sm:$0xff] %vm1805, %v1732
      %1818 = vst.msk [vmem:[#allocation3 + $0x60] sm:$0xff] %vm1805, %v1734
      %1819 = vst.msk [vmem:[#allocation3 + $0x68] sm:$0xff] %vm1805, %v1736
      %1820 = vst.msk [vmem:[#allocation3 + $0x70] sm:$0xff] %vm1805, %v1738
      %1821 = vst.msk [vmem:[#allocation3 + $0x78] sm:$0xff] %vm1805, %v1740
      %1822 = vst.msk [vmem:[#allocation3 + $0x80] sm:$0xff] %vm1805, %v1742
      %1823 = vst.msk [vmem:[#allocation3 + $0x88] sm:$0xff] %vm1805, %v1744
      %1824 = vst.msk [vmem:[#allocation3 + $0x90] sm:$0xff] %vm1805, %v1746
      %1825 = vst.msk [vmem:[#allocation3 + $0x98] sm:$0xff] %vm1805, %v1748
      %1826 = vst.msk [vmem:[#allocation3 + $0xa0] sm:$0xff] %vm1805, %v1750
      %1827 = vst.msk [vmem:[#allocation3 + $0xa8] sm:$0xff] %vm1805, %v1752
      %1828 = vst.msk [vmem:[#allocation3 + $0xb0] sm:$0xff] %vm1805, %v1754
      %1829 = vst.msk [vmem:[#allocation3 + $0xb8] sm:$0xff] %vm1805, %v1756
      %1830 = vst.msk [vmem:[#allocation3 + $0xc0] sm:$0xff] %vm1805, %v1758
      %1831 = vst.msk [vmem:[#allocation3 + $0xc8] sm:$0xff] %vm1805, %v1760
      %1832 = vst.msk [vmem:[#allocation3 + $0xd0] sm:$0xff] %vm1805, %v1762
      %1833 = vst.msk [vmem:[#allocation3 + $0xd8] sm:$0xff] %vm1805, %v1764
      %1834 = vst.msk [vmem:[#allocation3 + $0xe0] sm:$0xff] %vm1805, %v1766
      %1835 = vst.msk [vmem:[#allocation3 + $0xe8] sm:$0xff] %vm1805, %v1768
      %1836 = vst.msk [vmem:[#allocation3 + $0xf0] sm:$0xff] %vm1805, %v1770
      %1837 = vst.msk [vmem:[#allocation3 + $0xf8] sm:$0xff] %vm1805, %v1772
      %v1838 = vld [vmem:[%s531 + $0x1] sm:$0xff]
      %v1839 = vld [vmem:[%s531 + $0x9] sm:$0xff]
      %v1840 = vld [vmem:[%s531 + $0x19] sm:$0xff]
      %v1841 = vld [vmem:[%s531 + $0x21] sm:$0xff]
      %v1842 = vld [vmem:[%s531 + $0x31] sm:$0xff]
      %v1843 = vld [vmem:[%s531 + $0x39] sm:$0xff]
      %v1844 = vld [vmem:[%s531 + $0x49] sm:$0xff]
      %v1845 = vld [vmem:[%s531 + $0x51] sm:$0xff]
      %v1846 = vld [vmem:[%s531 + $0x61] sm:$0xff]
      %v1847 = vld [vmem:[%s531 + $0x69] sm:$0xff]
      %v1848 = vld [vmem:[%s531 + $0x79] sm:$0xff]
      %v1849 = vld [vmem:[%s531 + $0x81] sm:$0xff]
      %v1850 = vld [vmem:[%s531 + $0x91] sm:$0xff]
      %v1851 = vld [vmem:[%s531 + $0x99] sm:$0xff]
      %v1852 = vld [vmem:[%s531 + $0xa9] sm:$0xff]
      %v1853 = vld [vmem:[%s531 + $0xb1] sm:$0xff]
      %v1854 = vld [vmem:[%s531 + $0xc1] sm:$0xff]
      %v1855 = vld [vmem:[%s531 + $0xc9] sm:$0xff]
      %v1856 = vld [vmem:[%s531 + $0xd9] sm:$0xff]
      %v1857 = vld [vmem:[%s531 + $0xe1] sm:$0xff]
      %v1858 = vld [vmem:[%s531 + $0xf1] sm:$0xff]
      %v1859 = vld [vmem:[%s531 + $0xf9] sm:$0xff]
      %v1860 = vld [vmem:[%s531 + $0x109] sm:$0xff]
      %v1861 = vld [vmem:[%s531 + $0x111] sm:$0xff]
      %v1862 = vld [vmem:[%s531 + $0x121] sm:$0xff]
      %v1863 = vld [vmem:[%s531 + $0x129] sm:$0xff]
      %v1864 = vld [vmem:[%s531 + $0x139] sm:$0xff]
      %v1865 = vld [vmem:[%s531 + $0x141] sm:$0xff]
      %v1866 = vld [vmem:[%s531 + $0x151] sm:$0xff]
      %v1867 = vld [vmem:[%s531 + $0x159] sm:$0xff]
      %v1868 = vld [vmem:[%s531 + $0x169] sm:$0xff]
      %v1869 = vld [vmem:[%s531 + $0x171] sm:$0xff]
      %1902 = vrot.lane.b32.xlu0 %v1838, 56
      %v1903 = vpop.permute.xlu0 %1902
      %1904 = vrot.lane.b32.xlu0 %v1839, 56
      %v1905 = vpop.permute.xlu0 %1904
      %1906 = vrot.lane.b32.xlu0 %v1840, 56
      %v1907 = vpop.permute.xlu0 %1906
      %1908 = vrot.lane.b32.xlu0 %v1841, 56
      %v1909 = vpop.permute.xlu0 %1908
      %1910 = vrot.lane.b32.xlu0 %v1842, 56
      %v1911 = vpop.permute.xlu0 %1910
      %1912 = vrot.lane.b32.xlu0 %v1843, 56
      %v1913 = vpop.permute.xlu0 %1912
      %1914 = vrot.lane.b32.xlu0 %v1844, 56
      %v1915 = vpop.permute.xlu0 %1914
      %1916 = vrot.lane.b32.xlu0 %v1845, 56
      %v1917 = vpop.permute.xlu0 %1916
      %1918 = vrot.lane.b32.xlu0 %v1846, 56
      %v1919 = vpop.permute.xlu0 %1918
      %1920 = vrot.lane.b32.xlu0 %v1847, 56
      %v1921 = vpop.permute.xlu0 %1920
      %1922 = vrot.lane.b32.xlu0 %v1848, 56
      %v1923 = vpop.permute.xlu0 %1922
      %1924 = vrot.lane.b32.xlu0 %v1849, 56
      %v1925 = vpop.permute.xlu0 %1924
      %1926 = vrot.lane.b32.xlu0 %v1850, 56
      %v1927 = vpop.permute.xlu0 %1926
      %1928 = vrot.lane.b32.xlu0 %v1851, 56
      %v1929 = vpop.permute.xlu0 %1928
      %1930 = vrot.lane.b32.xlu0 %v1852, 56
      %v1931 = vpop.permute.xlu0 %1930
      %1932 = vrot.lane.b32.xlu0 %v1853, 56
      %v1933 = vpop.permute.xlu0 %1932
      %1934 = vrot.lane.b32.xlu0 %v1854, 56
      %v1935 = vpop.permute.xlu0 %1934
      %1936 = vrot.lane.b32.xlu0 %v1855, 56
      %v1937 = vpop.permute.xlu0 %1936
      %1938 = vrot.lane.b32.xlu0 %v1856, 56
      %v1939 = vpop.permute.xlu0 %1938
      %1940 = vrot.lane.b32.xlu0 %v1857, 56
      %v1941 = vpop.permute.xlu0 %1940
      %1942 = vrot.lane.b32.xlu0 %v1858, 56
      %v1943 = vpop.permute.xlu0 %1942
      %1944 = vrot.lane.b32.xlu0 %v1859, 56
      %v1945 = vpop.permute.xlu0 %1944
      %1946 = vrot.lane.b32.xlu0 %v1860, 56
      %v1947 = vpop.permute.xlu0 %1946
      %1948 = vrot.lane.b32.xlu0 %v1861, 56
      %v1949 = vpop.permute.xlu0 %1948
      %1950 = vrot.lane.b32.xlu0 %v1862, 56
      %v1951 = vpop.permute.xlu0 %1950
      %1952 = vrot.lane.b32.xlu0 %v1863, 56
      %v1953 = vpop.permute.xlu0 %1952
      %1954 = vrot.lane.b32.xlu0 %v1864, 56
      %v1955 = vpop.permute.xlu0 %1954
      %1956 = vrot.lane.b32.xlu0 %v1865, 56
      %v1957 = vpop.permute.xlu0 %1956
      %1958 = vrot.lane.b32.xlu0 %v1866, 56
      %v1959 = vpop.permute.xlu0 %1958
      %1960 = vrot.lane.b32.xlu0 %v1867, 56
      %v1961 = vpop.permute.xlu0 %1960
      %1962 = vrot.lane.b32.xlu0 %v1868, 56
      %v1963 = vpop.permute.xlu0 %1962
      %1964 = vrot.lane.b32.xlu0 %v1869, 56
      %v1965 = vpop.permute.xlu0 %1964
      %vm1998 = vcmask 523712
      %1999 = vst.msk [vmem:[#allocation3] sm:$0xff] %vm1998, %v1903
      %2000 = vst.msk [vmem:[#allocation3 + $0x8] sm:$0xff] %vm1998, %v1905
      %2001 = vst.msk [vmem:[#allocation3 + $0x10] sm:$0xff] %vm1998, %v1907
      %2002 = vst.msk [vmem:[#allocation3 + $0x18] sm:$0xff] %vm1998, %v1909
      %2003 = vst.msk [vmem:[#allocation3 + $0x20] sm:$0xff] %vm1998, %v1911
      %2004 = vst.msk [vmem:[#allocation3 + $0x28] sm:$0xff] %vm1998, %v1913
      %2005 = vst.msk [vmem:[#allocation3 + $0x30] sm:$0xff] %vm1998, %v1915
      %2006 = vst.msk [vmem:[#allocation3 + $0x38] sm:$0xff] %vm1998, %v1917
      %2007 = vst.msk [vmem:[#allocation3 + $0x40] sm:$0xff] %vm1998, %v1919
      %2008 = vst.msk [vmem:[#allocation3 + $0x48] sm:$0xff] %vm1998, %v1921
      %2009 = vst.msk [vmem:[#allocation3 + $0x50] sm:$0xff] %vm1998, %v1923
      %2010 = vst.msk [vmem:[#allocation3 + $0x58] sm:$0xff] %vm1998, %v1925
      %2011 = vst.msk [vmem:[#allocation3 + $0x60] sm:$0xff] %vm1998, %v1927
      %2012 = vst.msk [vmem:[#allocation3 + $0x68] sm:$0xff] %vm1998, %v1929
      %2013 = vst.msk [vmem:[#allocation3 + $0x70] sm:$0xff] %vm1998, %v1931
      %2014 = vst.msk [vmem:[#allocation3 + $0x78] sm:$0xff] %vm1998, %v1933
      %2015 = vst.msk [vmem:[#allocation3 + $0x80] sm:$0xff] %vm1998, %v1935
      %2016 = vst.msk [vmem:[#allocation3 + $0x88] sm:$0xff] %vm1998, %v1937
      %2017 = vst.msk [vmem:[#allocation3 + $0x90] sm:$0xff] %vm1998, %v1939
      %2018 = vst.msk [vmem:[#allocation3 + $0x98] sm:$0xff] %vm1998, %v1941
      %2019 = vst.msk [vmem:[#allocation3 + $0xa0] sm:$0xff] %vm1998, %v1943
      %2020 = vst.msk [vmem:[#allocation3 + $0xa8] sm:$0xff] %vm1998, %v1945
      %2021 = vst.msk [vmem:[#allocation3 + $0xb0] sm:$0xff] %vm1998, %v1947
      %2022 = vst.msk [vmem:[#allocation3 + $0xb8] sm:$0xff] %vm1998, %v1949
      %2023 = vst.msk [vmem:[#allocation3 + $0xc0] sm:$0xff] %vm1998, %v1951
      %2024 = vst.msk [vmem:[#allocation3 + $0xc8] sm:$0xff] %vm1998, %v1953
      %2025 = vst.msk [vmem:[#allocation3 + $0xd0] sm:$0xff] %vm1998, %v1955
      %2026 = vst.msk [vmem:[#allocation3 + $0xd8] sm:$0xff] %vm1998, %v1957
      %2027 = vst.msk [vmem:[#allocation3 + $0xe0] sm:$0xff] %vm1998, %v1959
      %2028 = vst.msk [vmem:[#allocation3 + $0xe8] sm:$0xff] %vm1998, %v1961
      %2029 = vst.msk [vmem:[#allocation3 + $0xf0] sm:$0xff] %vm1998, %v1963
      %2030 = vst.msk [vmem:[#allocation3 + $0xf8] sm:$0xff] %vm1998, %v1965
      %v2031 = vld [vmem:[%s531 + $0x2] sm:$0xff]
      %v2032 = vld [vmem:[%s531 + $0xa] sm:$0xff]
      %v2033 = vld [vmem:[%s531 + $0x1a] sm:$0xff]
      %v2034 = vld [vmem:[%s531 + $0x22] sm:$0xff]
      %v2035 = vld [vmem:[%s531 + $0x32] sm:$0xff]
      %v2036 = vld [vmem:[%s531 + $0x3a] sm:$0xff]
      %v2037 = vld [vmem:[%s531 + $0x4a] sm:$0xff]
      %v2038 = vld [vmem:[%s531 + $0x52] sm:$0xff]
      %v2039 = vld [vmem:[%s531 + $0x62] sm:$0xff]
      %v2040 = vld [vmem:[%s531 + $0x6a] sm:$0xff]
      %v2041 = vld [vmem:[%s531 + $0x7a] sm:$0xff]
      %v2042 = vld [vmem:[%s531 + $0x82] sm:$0xff]
      %v2043 = vld [vmem:[%s531 + $0x92] sm:$0xff]
      %v2044 = vld [vmem:[%s531 + $0x9a] sm:$0xff]
      %v2045 = vld [vmem:[%s531 + $0xaa] sm:$0xff]
      %v2046 = vld [vmem:[%s531 + $0xb2] sm:$0xff]
      %v2047 = vld [vmem:[%s531 + $0xc2] sm:$0xff]
      %v2048 = vld [vmem:[%s531 + $0xca] sm:$0xff]
      %v2049 = vld [vmem:[%s531 + $0xda] sm:$0xff]
      %v2050 = vld [vmem:[%s531 + $0xe2] sm:$0xff]
      %v2051 = vld [vmem:[%s531 + $0xf2] sm:$0xff]
      %v2052 = vld [vmem:[%s531 + $0xfa] sm:$0xff]
      %v2053 = vld [vmem:[%s531 + $0x10a] sm:$0xff]
      %v2054 = vld [vmem:[%s531 + $0x112] sm:$0xff]
      %v2055 = vld [vmem:[%s531 + $0x122] sm:$0xff]
      %v2056 = vld [vmem:[%s531 + $0x12a] sm:$0xff]
      %v2057 = vld [vmem:[%s531 + $0x13a] sm:$0xff]
      %v2058 = vld [vmem:[%s531 + $0x142] sm:$0xff]
      %v2059 = vld [vmem:[%s531 + $0x152] sm:$0xff]
      %v2060 = vld [vmem:[%s531 + $0x15a] sm:$0xff]
      %v2061 = vld [vmem:[%s531 + $0x16a] sm:$0xff]
      %v2062 = vld [vmem:[%s531 + $0x172] sm:$0xff]
      %2095 = vrot.lane.b32.xlu0 %v2031, 64
      %v2096 = vpop.permute.xlu0 %2095
      %2097 = vrot.lane.b32.xlu0 %v2032, 64
      %v2098 = vpop.permute.xlu0 %2097
      %2099 = vrot.lane.b32.xlu0 %v2033, 64
      %v2100 = vpop.permute.xlu0 %2099
      %2101 = vrot.lane.b32.xlu0 %v2034, 64
      %v2102 = vpop.permute.xlu0 %2101
      %2103 = vrot.lane.b32.xlu0 %v2035, 64
      %v2104 = vpop.permute.xlu0 %2103
      %2105 = vrot.lane.b32.xlu0 %v2036, 64
      %v2106 = vpop.permute.xlu0 %2105
      %2107 = vrot.lane.b32.xlu0 %v2037, 64
      %v2108 = vpop.permute.xlu0 %2107
      %2109 = vrot.lane.b32.xlu0 %v2038, 64
      %v2110 = vpop.permute.xlu0 %2109
      %2111 = vrot.lane.b32.xlu0 %v2039, 64
      %v2112 = vpop.permute.xlu0 %2111
      %2113 = vrot.lane.b32.xlu0 %v2040, 64
      %v2114 = vpop.permute.xlu0 %2113
      %2115 = vrot.lane.b32.xlu0 %v2041, 64
      %v2116 = vpop.permute.xlu0 %2115
      %2117 = vrot.lane.b32.xlu0 %v2042, 64
      %v2118 = vpop.permute.xlu0 %2117
      %2119 = vrot.lane.b32.xlu0 %v2043, 64
      %v2120 = vpop.permute.xlu0 %2119
      %2121 = vrot.lane.b32.xlu0 %v2044, 64
      %v2122 = vpop.permute.xlu0 %2121
      %2123 = vrot.lane.b32.xlu0 %v2045, 64
      %v2124 = vpop.permute.xlu0 %2123
      %2125 = vrot.lane.b32.xlu0 %v2046, 64
      %v2126 = vpop.permute.xlu0 %2125
      %2127 = vrot.lane.b32.xlu0 %v2047, 64
      %v2128 = vpop.permute.xlu0 %2127
      %2129 = vrot.lane.b32.xlu0 %v2048, 64
      %v2130 = vpop.permute.xlu0 %2129
      %2131 = vrot.lane.b32.xlu0 %v2049, 64
      %v2132 = vpop.permute.xlu0 %2131
      %2133 = vrot.lane.b32.xlu0 %v2050, 64
      %v2134 = vpop.permute.xlu0 %2133
      %2135 = vrot.lane.b32.xlu0 %v2051, 64
      %v2136 = vpop.permute.xlu0 %2135
      %2137 = vrot.lane.b32.xlu0 %v2052, 64
      %v2138 = vpop.permute.xlu0 %2137
      %2139 = vrot.lane.b32.xlu0 %v2053, 64
      %v2140 = vpop.permute.xlu0 %2139
      %2141 = vrot.lane.b32.xlu0 %v2054, 64
      %v2142 = vpop.permute.xlu0 %2141
      %2143 = vrot.lane.b32.xlu0 %v2055, 64
      %v2144 = vpop.permute.xlu0 %2143
      %2145 = vrot.lane.b32.xlu0 %v2056, 64
      %v2146 = vpop.permute.xlu0 %2145
      %2147 = vrot.lane.b32.xlu0 %v2057, 64
      %v2148 = vpop.permute.xlu0 %2147
      %2149 = vrot.lane.b32.xlu0 %v2058, 64
      %v2150 = vpop.permute.xlu0 %2149
      %2151 = vrot.lane.b32.xlu0 %v2059, 64
      %v2152 = vpop.permute.xlu0 %2151
      %2153 = vrot.lane.b32.xlu0 %v2060, 64
      %v2154 = vpop.permute.xlu0 %2153
      %2155 = vrot.lane.b32.xlu0 %v2061, 64
      %v2156 = vpop.permute.xlu0 %2155
      %2157 = vrot.lane.b32.xlu0 %v2062, 64
      %v2158 = vpop.permute.xlu0 %2157
      %vm2191 = vcmask 589312
      %2192 = vst.msk [vmem:[#allocation3] sm:$0xff] %vm2191, %v2096
      %2193 = vst.msk [vmem:[#allocation3 + $0x8] sm:$0xff] %vm2191, %v2098
      %2194 = vst.msk [vmem:[#allocation3 + $0x10] sm:$0xff] %vm2191, %v2100
      %2195 = vst.msk [vmem:[#allocation3 + $0x18] sm:$0xff] %vm2191, %v2102
      %2196 = vst.msk [vmem:[#allocation3 + $0x20] sm:$0xff] %vm2191, %v2104
      %2197 = vst.msk [vmem:[#allocation3 + $0x28] sm:$0xff] %vm2191, %v2106
      %2198 = vst.msk [vmem:[#allocation3 + $0x30] sm:$0xff] %vm2191, %v2108
      %2199 = vst.msk [vmem:[#allocation3 + $0x38] sm:$0xff] %vm2191, %v2110
      %2200 = vst.msk [vmem:[#allocation3 + $0x40] sm:$0xff] %vm2191, %v2112
      %2201 = vst.msk [vmem:[#allocation3 + $0x48] sm:$0xff] %vm2191, %v2114
      %2202 = vst.msk [vmem:[#allocation3 + $0x50] sm:$0xff] %vm2191, %v2116
      %2203 = vst.msk [vmem:[#allocation3 + $0x58] sm:$0xff] %vm2191, %v2118
      %2204 = vst.msk [vmem:[#allocation3 + $0x60] sm:$0xff] %vm2191, %v2120
      %2205 = vst.msk [vmem:[#allocation3 + $0x68] sm:$0xff] %vm2191, %v2122
      %2206 = vst.msk [vmem:[#allocation3 + $0x70] sm:$0xff] %vm2191, %v2124
      %2207 = vst.msk [vmem:[#allocation3 + $0x78] sm:$0xff] %vm2191, %v2126
      %2208 = vst.msk [vmem:[#allocation3 + $0x80] sm:$0xff] %vm2191, %v2128
      %2209 = vst.msk [vmem:[#allocation3 + $0x88] sm:$0xff] %vm2191, %v2130
      %2210 = vst.msk [vmem:[#allocation3 + $0x90] sm:$0xff] %vm2191, %v2132
      %2211 = vst.msk [vmem:[#allocation3 + $0x98] sm:$0xff] %vm2191, %v2134
      %2212 = vst.msk [vmem:[#allocation3 + $0xa0] sm:$0xff] %vm2191, %v2136
      %2213 = vst.msk [vmem:[#allocation3 + $0xa8] sm:$0xff] %vm2191, %v2138
      %2214 = vst.msk [vmem:[#allocation3 + $0xb0] sm:$0xff] %vm2191, %v2140
      %2215 = vst.msk [vmem:[#allocation3 + $0xb8] sm:$0xff] %vm2191, %v2142
      %2216 = vst.msk [vmem:[#allocation3 + $0xc0] sm:$0xff] %vm2191, %v2144
      %2217 = vst.msk [vmem:[#allocation3 + $0xc8] sm:$0xff] %vm2191, %v2146
      %2218 = vst.msk [vmem:[#allocation3 + $0xd0] sm:$0xff] %vm2191, %v2148
      %2219 = vst.msk [vmem:[#allocation3 + $0xd8] sm:$0xff] %vm2191, %v2150
      %2220 = vst.msk [vmem:[#allocation3 + $0xe0] sm:$0xff] %vm2191, %v2152
      %2221 = vst.msk [vmem:[#allocation3 + $0xe8] sm:$0xff] %vm2191, %v2154
      %2222 = vst.msk [vmem:[#allocation3 + $0xf0] sm:$0xff] %vm2191, %v2156
      %2223 = vst.msk [vmem:[#allocation3 + $0xf8] sm:$0xff] %vm2191, %v2158
      %v2224 = vld [vmem:[#allocation3] sm:$0xff]
      %v2225 = vld [vmem:[#allocation3 + $0x8] sm:$0xff]
      %v2226 = vld [vmem:[#allocation3 + $0x10] sm:$0xff]
      %v2227 = vld [vmem:[#allocation3 + $0x18] sm:$0xff]
      %v2228 = vld [vmem:[#allocation3 + $0x20] sm:$0xff]
      %v2229 = vld [vmem:[#allocation3 + $0x28] sm:$0xff]
      %v2230 = vld [vmem:[#allocation3 + $0x30] sm:$0xff]
      %v2231 = vld [vmem:[#allocation3 + $0x38] sm:$0xff]
      %v2232 = vld [vmem:[#allocation3 + $0x40] sm:$0xff]
      %v2233 = vld [vmem:[#allocation3 + $0x48] sm:$0xff]
      %v2234 = vld [vmem:[#allocation3 + $0x50] sm:$0xff]
      %v2235 = vld [vmem:[#allocation3 + $0x58] sm:$0xff]
      %v2236 = vld [vmem:[#allocation3 + $0x60] sm:$0xff]
      %v2237 = vld [vmem:[#allocation3 + $0x68] sm:$0xff]
      %v2238 = vld [vmem:[#allocation3 + $0x70] sm:$0xff]
      %v2239 = vld [vmem:[#allocation3 + $0x78] sm:$0xff]
      %v2240 = vld [vmem:[#allocation3 + $0x80] sm:$0xff]
      %v2241 = vld [vmem:[#allocation3 + $0x88] sm:$0xff]
      %v2242 = vld [vmem:[#allocation3 + $0x90] sm:$0xff]
      %v2243 = vld [vmem:[#allocation3 + $0x98] sm:$0xff]
      %v2244 = vld [vmem:[#allocation3 + $0xa0] sm:$0xff]
      %v2245 = vld [vmem:[#allocation3 + $0xa8] sm:$0xff]
      %v2246 = vld [vmem:[#allocation3 + $0xb0] sm:$0xff]
      %v2247 = vld [vmem:[#allocation3 + $0xb8] sm:$0xff]
      %v2248 = vld [vmem:[#allocation3 + $0xc0] sm:$0xff]
      %v2249 = vld [vmem:[#allocation3 + $0xc8] sm:$0xff]
      %v2250 = vld [vmem:[#allocation3 + $0xd0] sm:$0xff]
      %v2251 = vld [vmem:[#allocation3 + $0xd8] sm:$0xff]
      %v2252 = vld [vmem:[#allocation3 + $0xe0] sm:$0xff]
      %v2253 = vld [vmem:[#allocation3 + $0xe8] sm:$0xff]
      %v2254 = vld [vmem:[#allocation3 + $0xf0] sm:$0xff]
      %v2255 = vld [vmem:[#allocation3 + $0xf8] sm:$0xff]
      %v2256 = vld [vmem:[%s2] sm:$0xff]
      %v2257 = vld [vmem:[%s2 + $0x8] sm:$0xff]
      %v2258 = vld [vmem:[%s2 + $0x10] sm:$0xff]
      %v2259 = vld [vmem:[%s2 + $0x18] sm:$0xff]
      %v2260 = vld [vmem:[%s2 + $0x20] sm:$0xff]
      %v2261 = vld [vmem:[%s2 + $0x28] sm:$0xff]
      %v2262 = vld [vmem:[%s2 + $0x30] sm:$0xff]
      %v2263 = vld [vmem:[%s2 + $0x38] sm:$0xff]
      %v2264 = vld [vmem:[%s2 + $0x40] sm:$0xff]
      %v2265 = vld [vmem:[%s3] sm:$0x1]
      %v2267 = vlaneseq
      %v2268 = vshrl.u32 %v2267, 7
      %v2269 = vsub.s32 0, %v2268
      %v2270 = vrot.slane %v2265, %v2269
      %vm2272 = vcmask 588800
      %v2274 = vsel %vm2272, %v2224, 0
      %v2277 = vsel %vm2272, %v2225, 0
      %v2280 = vsel %vm2272, %v2226, 0
      %v2283 = vsel %vm2272, %v2227, 0
      %v2286 = vsel %vm2272, %v2228, 0
      %v2289 = vsel %vm2272, %v2229, 0
      %v2292 = vsel %vm2272, %v2230, 0
      %v2295 = vsel %vm2272, %v2231, 0
      %v2298 = vsel %vm2272, %v2232, 0
      %v2301 = vsel %vm2272, %v2233, 0
      %v2304 = vsel %vm2272, %v2234, 0
      %v2307 = vsel %vm2272, %v2235, 0
      %v2310 = vsel %vm2272, %v2236, 0
      %v2313 = vsel %vm2272, %v2237, 0
      %v2316 = vsel %vm2272, %v2238, 0
      %v2319 = vsel %vm2272, %v2239, 0
      %v2322 = vsel %vm2272, %v2240, 0
      %v2325 = vsel %vm2272, %v2241, 0
      %v2328 = vsel %vm2272, %v2242, 0
      %v2331 = vsel %vm2272, %v2243, 0
      %v2334 = vsel %vm2272, %v2244, 0
      %v2337 = vsel %vm2272, %v2245, 0
      %v2340 = vsel %vm2272, %v2246, 0
      %v2343 = vsel %vm2272, %v2247, 0
      %v2346 = vsel %vm2272, %v2248, 0
      %v2349 = vsel %vm2272, %v2249, 0
      %v2352 = vsel %vm2272, %v2250, 0
      %v2355 = vsel %vm2272, %v2251, 0
      %v2358 = vsel %vm2272, %v2252, 0
      %v2361 = vsel %vm2272, %v2253, 0
      %v2364 = vsel %vm2272, %v2254, 0
      %v2367 = vsel %vm2272, %v2255, 0
      %2369 = vmatprep.subr.mxu0 0.0
      %2370 = vmatpush1.msra.mxu0 %v2256
      %2371 = vmatprep.subr.mxu0 0.0
      %2372 = vmatpush1.msra.mxu0 %v2257
      %2373 = vmatprep.subr.mxu0 0.0
      %2374 = vmatpush1.msra.mxu0 %v2258
      %2375 = vmatprep.subr.mxu0 0.0
      %2376 = vmatpush1.msra.mxu0 %v2259
      %2377 = vmatprep.subr.mxu0 0.0
      %2378 = vmatpush1.msra.mxu0 %v2260
      %2379 = vmatprep.subr.mxu0 0.0
      %2380 = vmatpush1.msra.mxu0 %v2261
      %2381 = vmatprep.subr.mxu0 0.0
      %2382 = vmatpush1.msra.mxu0 %v2262
      %2383 = vmatprep.subr.mxu0 0.0
      %2384 = vmatpush1.msra.mxu0 %v2263
      %2385 = vmatprep.subr.mxu0 0.0
      %2386 = vmatpush1.msra.mxu0 %v2264
      %2387 = vmatprep.subr.mxu0 0.0
      %2388 = vmatpush1.msra.mxu0 0.0
      %2389 = vmatprep.subr.mxu0 0.0
      %2390 = vmatpush1.msra.mxu0 0.0
      %2391 = vmatprep.subr.mxu0 0.0
      %2392 = vmatpush1.msra.mxu0 0.0
      %2393 = vmatprep.subr.mxu0 0.0
      %2394 = vmatpush1.msra.mxu0 0.0
      %2395 = vmatprep.subr.mxu0 0.0
      %2396 = vmatpush1.msra.mxu0 0.0
      %2397 = vmatprep.subr.mxu0 0.0
      %2398 = vmatpush1.msra.mxu0 0.0
      %2399 = vmatprep.subr.mxu0 0.0
      %2400 = vmatpush1.msra.mxu0 0.0
      %2401 = vmatprep.subr.mxu0 0.0
      %2402 = vmatpush1.msra.mxu0 0.0
      %2403 = vmatprep.subr.mxu0 0.0
      %2404 = vmatpush1.msra.mxu0 0.0
      %2405 = vmatprep.subr.mxu0 0.0
      %2406 = vmatpush1.msra.mxu0 0.0
      %2407 = vmatprep.subr.mxu0 0.0
      %2408 = vmatpush1.msra.mxu0 0.0
      %2409 = vmatprep.subr.mxu0 0.0
      %2410 = vmatpush1.msra.mxu0 0.0
      %2411 = vmatprep.subr.mxu0 0.0
      %2412 = vmatpush1.msra.mxu0 0.0
      %2413 = vmatprep.subr.mxu0 0.0
      %2414 = vmatpush1.msra.mxu0 0.0
      %2415 = vmatprep.subr.mxu0 0.0
      %2416 = vmatpush1.msra.mxu0 0.0
      %2417 = vmatprep.subr.mxu0 0.0
      %2418 = vmatpush1.msra.mxu0 0.0
      %2419 = vmatprep.subr.mxu0 0.0
      %2420 = vmatpush1.msra.mxu0 0.0
      %2421 = vmatprep.subr.mxu0 0.0
      %2422 = vmatpush1.msra.mxu0 0.0
      %2423 = vmatprep.subr.mxu0 0.0
      %2424 = vmatpush1.msra.mxu0 0.0
      %2425 = vmatprep.subr.mxu0 0.0
      %2426 = vmatpush1.msra.mxu0 0.0
      %2427 = vmatprep.subr.mxu0 0.0
      %2428 = vmatpush1.msra.mxu0 0.0
      %2429 = vmatprep.subr.mxu0 0.0
      %2430 = vmatpush1.msra.mxu0 0.0
      %2431 = vmatprep.subr.mxu0 0.0
      %2432 = vmatpush1.msra.mxu0 0.0
      %2433 = vmatprep.mubr.f32.mxu0 0.0
      %2434 = vmatmul.mubr.f32.gmra.mrb[0].mxu0 %v2274
      %v2435 = vpop.f32.mrb[0].mxu0
      %v2436 = vadd.f32 %v2270, %v2435
      %v2437 = vpop.f32.mrb[0].mxu0
      %2438 = vmatprep.mubr.f32.mxu0 0.0
      %2439 = vmatmul.mubr.f32.gmra.mrb[0].mxu0 %v2277
      %v2440 = vpop.f32.mrb[0].mxu0
      %v2441 = vadd.f32 %v2270, %v2440
      %v2442 = vpop.f32.mrb[0].mxu0
      %2443 = vmatprep.mubr.f32.mxu0 0.0
      %2444 = vmatmul.mubr.f32.gmra.mrb[0].mxu0 %v2280
      %v2445 = vpop.f32.mrb[0].mxu0
      %v2446 = vadd.f32 %v2270, %v2445
      %v2447 = vpop.f32.mrb[0].mxu0
      %2448 = vmatprep.mubr.f32.mxu0 0.0
      %2449 = vmatmul.mubr.f32.gmra.mrb[0].mxu0 %v2283
      %v2450 = vpop.f32.mrb[0].mxu0
      %v2451 = vadd.f32 %v2270, %v2450
      %v2452 = vpop.f32.mrb[0].mxu0
      %2453 = vmatprep.mubr.f32.mxu0 0.0
      %2454 = vmatmul.mubr.f32.gmra.mrb[0].mxu0 %v2286
      %v2455 = vpop.f32.mrb[0].mxu0
      %v2456 = vadd.f32 %v2270, %v2455
      %v2457 = vpop.f32.mrb[0].mxu0
      %2458 = vmatprep.mubr.f32.mxu0 0.0
      %2459 = vmatmul.mubr.f32.gmra.mrb[0].mxu0 %v2289
      %v2460 = vpop.f32.mrb[0].mxu0
      %v2461 = vadd.f32 %v2270, %v2460
      %v2462 = vpop.f32.mrb[0].mxu0
      %2463 = vmatprep.mubr.f32.mxu0 0.0
      %2464 = vmatmul.mubr.f32.gmra.mrb[0].mxu0 %v2292
      %v2465 = vpop.f32.mrb[0].mxu0
      %v2466 = vadd.f32 %v2270, %v2465
      %v2467 = vpop.f32.mrb[0].mxu0
      %2468 = vmatprep.mubr.f32.mxu0 0.0
      %2469 = vmatmul.mubr.f32.gmra.mrb[0].mxu0 %v2295
      %v2470 = vpop.f32.mrb[0].mxu0
      %v2471 = vadd.f32 %v2270, %v2470
      %v2472 = vpop.f32.mrb[0].mxu0
      %2473 = vmatprep.mubr.f32.mxu0 0.0
      %2474 = vmatmul.mubr.f32.gmra.mrb[0].mxu0 %v2298
      %v2475 = vpop.f32.mrb[0].mxu0
      %v2476 = vadd.f32 %v2270, %v2475
      %v2477 = vpop.f32.mrb[0].mxu0
      %2478 = vmatprep.mubr.f32.mxu0 0.0
      %2479 = vmatmul.mubr.f32.gmra.mrb[0].mxu0 %v2301
      %v2480 = vpop.f32.mrb[0].mxu0
      %v2481 = vadd.f32 %v2270, %v2480
      %v2482 = vpop.f32.mrb[0].mxu0
      %2483 = vmatprep.mubr.f32.mxu0 0.0
      %2484 = vmatmul.mubr.f32.gmra.mrb[0].mxu0 %v2304
      %v2485 = vpop.f32.mrb[0].mxu0
      %v2486 = vadd.f32 %v2270, %v2485
      %v2487 = vpop.f32.mrb[0].mxu0
      %2488 = vmatprep.mubr.f32.mxu0 0.0
      %2489 = vmatmul.mubr.f32.gmra.mrb[0].mxu0 %v2307
      %v2490 = vpop.f32.mrb[0].mxu0
      %v2491 = vadd.f32 %v2270, %v2490
      %v2492 = vpop.f32.mrb[0].mxu0
      %2493 = vmatprep.mubr.f32.mxu0 0.0
      %2494 = vmatmul.mubr.f32.gmra.mrb[0].mxu0 %v2310
      %v2495 = vpop.f32.mrb[0].mxu0
      %v2496 = vadd.f32 %v2270, %v2495
      %v2497 = vpop.f32.mrb[0].mxu0
      %2498 = vmatprep.mubr.f32.mxu0 0.0
      %2499 = vmatmul.mubr.f32.gmra.mrb[0].mxu0 %v2313
      %v2500 = vpop.f32.mrb[0].mxu0
      %v2501 = vadd.f32 %v2270, %v2500
      %v2502 = vpop.f32.mrb[0].mxu0
      %2503 = vmatprep.mubr.f32.mxu0 0.0
      %2504 = vmatmul.mubr.f32.gmra.mrb[0].mxu0 %v2316
      %v2505 = vpop.f32.mrb[0].mxu0
      %v2506 = vadd.f32 %v2270, %v2505
      %v2507 = vpop.f32.mrb[0].mxu0
      %2508 = vmatprep.mubr.f32.mxu0 0.0
      %2509 = vmatmul.mubr.f32.gmra.mrb[0].mxu0 %v2319
      %v2510 = vpop.f32.mrb[0].mxu0
      %v2511 = vadd.f32 %v2270, %v2510
      %v2512 = vpop.f32.mrb[0].mxu0
      %2513 = vmatprep.mubr.f32.mxu0 0.0
      %2514 = vmatmul.mubr.f32.gmra.mrb[0].mxu0 %v2322
      %v2515 = vpop.f32.mrb[0].mxu0
      %v2516 = vadd.f32 %v2270, %v2515
      %v2517 = vpop.f32.mrb[0].mxu0
      %2518 = vmatprep.mubr.f32.mxu0 0.0
      %2519 = vmatmul.mubr.f32.gmra.mrb[0].mxu0 %v2325
      %v2520 = vpop.f32.mrb[0].mxu0
      %v2521 = vadd.f32 %v2270, %v2520
      %v2522 = vpop.f32.mrb[0].mxu0
      %2523 = vmatprep.mubr.f32.mxu0 0.0
      %2524 = vmatmul.mubr.f32.gmra.mrb[0].mxu0 %v2328
      %v2525 = vpop.f32.mrb[0].mxu0
      %v2526 = vadd.f32 %v2270, %v2525
      %v2527 = vpop.f32.mrb[0].mxu0
      %2528 = vmatprep.mubr.f32.mxu0 0.0
      %2529 = vmatmul.mubr.f32.gmra.mrb[0].mxu0 %v2331
      %v2530 = vpop.f32.mrb[0].mxu0
      %v2531 = vadd.f32 %v2270, %v2530
      %v2532 = vpop.f32.mrb[0].mxu0
      %2533 = vmatprep.mubr.f32.mxu0 0.0
      %2534 = vmatmul.mubr.f32.gmra.mrb[0].mxu0 %v2334
      %v2535 = vpop.f32.mrb[0].mxu0
      %v2536 = vadd.f32 %v2270, %v2535
      %v2537 = vpop.f32.mrb[0].mxu0
      %2538 = vmatprep.mubr.f32.mxu0 0.0
      %2539 = vmatmul.mubr.f32.gmra.mrb[0].mxu0 %v2337
      %v2540 = vpop.f32.mrb[0].mxu0
      %v2541 = vadd.f32 %v2270, %v2540
      %v2542 = vpop.f32.mrb[0].mxu0
      %2543 = vmatprep.mubr.f32.mxu0 0.0
      %2544 = vmatmul.mubr.f32.gmra.mrb[0].mxu0 %v2340
      %v2545 = vpop.f32.mrb[0].mxu0
      %v2546 = vadd.f32 %v2270, %v2545
      %v2547 = vpop.f32.mrb[0].mxu0
      %2548 = vmatprep.mubr.f32.mxu0 0.0
      %2549 = vmatmul.mubr.f32.gmra.mrb[0].mxu0 %v2343
      %v2550 = vpop.f32.mrb[0].mxu0
      %v2551 = vadd.f32 %v2270, %v2550
      %v2552 = vpop.f32.mrb[0].mxu0
      %2553 = vmatprep.mubr.f32.mxu0 0.0
      %2554 = vmatmul.mubr.f32.gmra.mrb[0].mxu0 %v2346
      %v2555 = vpop.f32.mrb[0].mxu0
      %v2556 = vadd.f32 %v2270, %v2555
      %v2557 = vpop.f32.mrb[0].mxu0
      %2558 = vmatprep.mubr.f32.mxu0 0.0
      %2559 = vmatmul.mubr.f32.gmra.mrb[0].mxu0 %v2349
      %v2560 = vpop.f32.mrb[0].mxu0
      %v2561 = vadd.f32 %v2270, %v2560
      %v2562 = vpop.f32.mrb[0].mxu0
      %2563 = vmatprep.mubr.f32.mxu0 0.0
      %2564 = vmatmul.mubr.f32.gmra.mrb[0].mxu0 %v2352
      %v2565 = vpop.f32.mrb[0].mxu0
      %v2566 = vadd.f32 %v2270, %v2565
      %v2567 = vpop.f32.mrb[0].mxu0
      %2568 = vmatprep.mubr.f32.mxu0 0.0
      %2569 = vmatmul.mubr.f32.gmra.mrb[0].mxu0 %v2355
      %v2570 = vpop.f32.mrb[0].mxu0
      %v2571 = vadd.f32 %v2270, %v2570
      %v2572 = vpop.f32.mrb[0].mxu0
      %2573 = vmatprep.mubr.f32.mxu0 0.0
      %2574 = vmatmul.mubr.f32.gmra.mrb[0].mxu0 %v2358
      %v2575 = vpop.f32.mrb[0].mxu0
      %v2576 = vadd.f32 %v2270, %v2575
      %v2577 = vpop.f32.mrb[0].mxu0
      %2578 = vmatprep.mubr.f32.mxu0 0.0
      %2579 = vmatmul.mubr.f32.gmra.mrb[0].mxu0 %v2361
      %v2580 = vpop.f32.mrb[0].mxu0
      %v2581 = vadd.f32 %v2270, %v2580
      %v2582 = vpop.f32.mrb[0].mxu0
      %2583 = vmatprep.mubr.f32.mxu0 0.0
      %2584 = vmatmul.mubr.f32.gmra.mrb[0].mxu0 %v2364
      %v2585 = vpop.f32.mrb[0].mxu0
      %v2586 = vadd.f32 %v2270, %v2585
      %v2587 = vpop.f32.mrb[0].mxu0
      %2588 = vmatprep.mubr.f32.mxu0 0.0
      %2589 = vmatmul.mubr.f32.gmra.mrb[0].mxu0 %v2367
      %v2590 = vpop.f32.mrb[0].mxu0
      %v2591 = vadd.f32 %v2270, %v2590
      %v2592 = vpop.f32.mrb[0].mxu0
      %2593 = vdwg.mxu0
      %vm2594 = vcmp.gt.f32.partialorder %v2436, 0.0
      %vm2595 = vcmp.gt.f32.partialorder %v2441, 0.0
      %vm2596 = vcmp.gt.f32.partialorder %v2446, 0.0
      %vm2597 = vcmp.gt.f32.partialorder %v2451, 0.0
      %vm2598 = vcmp.gt.f32.partialorder %v2456, 0.0
      %vm2599 = vcmp.gt.f32.partialorder %v2461, 0.0
      %vm2600 = vcmp.gt.f32.partialorder %v2466, 0.0
      %vm2601 = vcmp.gt.f32.partialorder %v2471, 0.0
      %vm2602 = vcmp.gt.f32.partialorder %v2476, 0.0
      %vm2603 = vcmp.gt.f32.partialorder %v2481, 0.0
      %vm2604 = vcmp.gt.f32.partialorder %v2486, 0.0
      %vm2605 = vcmp.gt.f32.partialorder %v2491, 0.0
      %vm2606 = vcmp.gt.f32.partialorder %v2496, 0.0
      %vm2607 = vcmp.gt.f32.partialorder %v2501, 0.0
      %vm2608 = vcmp.gt.f32.partialorder %v2506, 0.0
      %vm2609 = vcmp.gt.f32.partialorder %v2511, 0.0
      %vm2610 = vcmp.gt.f32.partialorder %v2516, 0.0
      %vm2611 = vcmp.gt.f32.partialorder %v2521, 0.0
      %vm2612 = vcmp.gt.f32.partialorder %v2526, 0.0
      %vm2613 = vcmp.gt.f32.partialorder %v2531, 0.0
      %vm2614 = vcmp.gt.f32.partialorder %v2536, 0.0
      %vm2615 = vcmp.gt.f32.partialorder %v2541, 0.0
      %vm2616 = vcmp.gt.f32.partialorder %v2546, 0.0
      %vm2617 = vcmp.gt.f32.partialorder %v2551, 0.0
      %vm2618 = vcmp.gt.f32.partialorder %v2556, 0.0
      %vm2619 = vcmp.gt.f32.partialorder %v2561, 0.0
      %vm2620 = vcmp.gt.f32.partialorder %v2566, 0.0
      %vm2621 = vcmp.gt.f32.partialorder %v2571, 0.0
      %vm2622 = vcmp.gt.f32.partialorder %v2576, 0.0
      %vm2623 = vcmp.gt.f32.partialorder %v2581, 0.0
      %vm2624 = vcmp.gt.f32.partialorder %v2586, 0.0
      %vm2625 = vcmp.gt.f32.partialorder %v2591, 0.0
      %v2626 = vmul.f32 %v2436, 0.01
      %v2627 = vmul.f32 %v2441, 0.01
      %v2628 = vmul.f32 %v2446, 0.01
      %v2629 = vmul.f32 %v2451, 0.01
      %v2630 = vmul.f32 %v2456, 0.01
      %v2631 = vmul.f32 %v2461, 0.01
      %v2632 = vmul.f32 %v2466, 0.01
      %v2633 = vmul.f32 %v2471, 0.01
      %v2634 = vmul.f32 %v2476, 0.01
      %v2635 = vmul.f32 %v2481, 0.01
      %v2636 = vmul.f32 %v2486, 0.01
      %v2637 = vmul.f32 %v2491, 0.01
      %v2638 = vmul.f32 %v2496, 0.01
      %v2639 = vmul.f32 %v2501, 0.01
      %v2640 = vmul.f32 %v2506, 0.01
      %v2641 = vmul.f32 %v2511, 0.01
      %v2642 = vmul.f32 %v2516, 0.01
      %v2643 = vmul.f32 %v2521, 0.01
      %v2644 = vmul.f32 %v2526, 0.01
      %v2645 = vmul.f32 %v2531, 0.01
      %v2646 = vmul.f32 %v2536, 0.01
      %v2647 = vmul.f32 %v2541, 0.01
      %v2648 = vmul.f32 %v2546, 0.01
      %v2649 = vmul.f32 %v2551, 0.01
      %v2650 = vmul.f32 %v2556, 0.01
      %v2651 = vmul.f32 %v2561, 0.01
      %v2652 = vmul.f32 %v2566, 0.01
      %v2653 = vmul.f32 %v2571, 0.01
      %v2654 = vmul.f32 %v2576, 0.01
      %v2655 = vmul.f32 %v2581, 0.01
      %v2656 = vmul.f32 %v2586, 0.01
      %v2657 = vmul.f32 %v2591, 0.01
      %v2658 = vsel %vm2594, %v2436, %v2626
      %v2659 = vsel %vm2595, %v2441, %v2627
      %v2660 = vsel %vm2596, %v2446, %v2628
      %v2661 = vsel %vm2597, %v2451, %v2629
      %v2662 = vsel %vm2598, %v2456, %v2630
      %v2663 = vsel %vm2599, %v2461, %v2631
      %v2664 = vsel %vm2600, %v2466, %v2632
      %v2665 = vsel %vm2601, %v2471, %v2633
      %v2666 = vsel %vm2602, %v2476, %v2634
      %v2667 = vsel %vm2603, %v2481, %v2635
      %v2668 = vsel %vm2604, %v2486, %v2636
      %v2669 = vsel %vm2605, %v2491, %v2637
      %v2670 = vsel %vm2606, %v2496, %v2638
      %v2671 = vsel %vm2607, %v2501, %v2639
      %v2672 = vsel %vm2608, %v2506, %v2640
      %v2673 = vsel %vm2609, %v2511, %v2641
      %v2674 = vsel %vm2610, %v2516, %v2642
      %v2675 = vsel %vm2611, %v2521, %v2643
      %v2676 = vsel %vm2612, %v2526, %v2644
      %v2677 = vsel %vm2613, %v2531, %v2645
      %v2678 = vsel %vm2614, %v2536, %v2646
      %v2679 = vsel %vm2615, %v2541, %v2647
      %v2680 = vsel %vm2616, %v2546, %v2648
      %v2681 = vsel %vm2617, %v2551, %v2649
      %v2682 = vsel %vm2618, %v2556, %v2650
      %v2683 = vsel %vm2619, %v2561, %v2651
      %v2684 = vsel %vm2620, %v2566, %v2652
      %v2685 = vsel %vm2621, %v2571, %v2653
      %v2686 = vsel %vm2622, %v2576, %v2654
      %v2687 = vsel %vm2623, %v2581, %v2655
      %v2688 = vsel %vm2624, %v2586, %v2656
      %v2689 = vsel %vm2625, %v2591, %v2657
      %2690 = vst.msk [vmem:[%s304 + $0x1] sm:$0xff] %vm534, %v2658
      %2691 = vst.msk [vmem:[%s304 + $0x9] sm:$0xff] %vm534, %v2659
      %2692 = vst.msk [vmem:[%s304 + $0x19] sm:$0xff] %vm534, %v2660
      %2693 = vst.msk [vmem:[%s304 + $0x21] sm:$0xff] %vm534, %v2661
      %2694 = vst.msk [vmem:[%s304 + $0x31] sm:$0xff] %vm534, %v2662
      %2695 = vst.msk [vmem:[%s304 + $0x39] sm:$0xff] %vm534, %v2663
      %2696 = vst.msk [vmem:[%s304 + $0x49] sm:$0xff] %vm534, %v2664
      %2697 = vst.msk [vmem:[%s304 + $0x51] sm:$0xff] %vm534, %v2665
      %2698 = vst.msk [vmem:[%s304 + $0x61] sm:$0xff] %vm534, %v2666
      %2699 = vst.msk [vmem:[%s304 + $0x69] sm:$0xff] %vm534, %v2667
      %2700 = vst.msk [vmem:[%s304 + $0x79] sm:$0xff] %vm534, %v2668
      %2701 = vst.msk [vmem:[%s304 + $0x81] sm:$0xff] %vm534, %v2669
      %2702 = vst.msk [vmem:[%s304 + $0x91] sm:$0xff] %vm534, %v2670
      %2703 = vst.msk [vmem:[%s304 + $0x99] sm:$0xff] %vm534, %v2671
      %2704 = vst.msk [vmem:[%s304 + $0xa9] sm:$0xff] %vm534, %v2672
      %2705 = vst.msk [vmem:[%s304 + $0xb1] sm:$0xff] %vm534, %v2673
      %2706 = vst.msk [vmem:[%s304 + $0xc1] sm:$0xff] %vm534, %v2674
      %2707 = vst.msk [vmem:[%s304 + $0xc9] sm:$0xff] %vm534, %v2675
      %2708 = vst.msk [vmem:[%s304 + $0xd9] sm:$0xff] %vm534, %v2676
      %2709 = vst.msk [vmem:[%s304 + $0xe1] sm:$0xff] %vm534, %v2677
      %2710 = vst.msk [vmem:[%s304 + $0xf1] sm:$0xff] %vm534, %v2678
      %2711 = vst.msk [vmem:[%s304 + $0xf9] sm:$0xff] %vm534, %v2679
      %2712 = vst.msk [vmem:[%s304 + $0x109] sm:$0xff] %vm534, %v2680
      %2713 = vst.msk [vmem:[%s304 + $0x111] sm:$0xff] %vm534, %v2681
      %2714 = vst.msk [vmem:[%s304 + $0x121] sm:$0xff] %vm534, %v2682
      %2715 = vst.msk [vmem:[%s304 + $0x129] sm:$0xff] %vm534, %v2683
      %2716 = vst.msk [vmem:[%s304 + $0x139] sm:$0xff] %vm534, %v2684
      %2717 = vst.msk [vmem:[%s304 + $0x141] sm:$0xff] %vm534, %v2685
      %2718 = vst.msk [vmem:[%s304 + $0x151] sm:$0xff] %vm534, %v2686
      %2719 = vst.msk [vmem:[%s304 + $0x159] sm:$0xff] %vm534, %v2687
      %2720 = vst.msk [vmem:[%s304 + $0x169] sm:$0xff] %vm534, %v2688
      %2721 = vst.msk [vmem:[%s304 + $0x171] sm:$0xff] %vm534, %v2689
      %v2722 = vld [vmem:[%s531 + $0x1] sm:$0xff]
      %v2723 = vld [vmem:[%s531 + $0x9] sm:$0xff]
      %2724 = vst.msk [vmem:[#allocation2 + $0x1] sm:$0xff] %vm534, %v2722
      %2725 = vst.msk [vmem:[#allocation2 + $0x9] sm:$0xff] %vm534, %v2723
      %v2726 = vld [vmem:[%s537 + $0x1] sm:$0xff]
      %v2727 = vld [vmem:[%s537 + $0x9] sm:$0xff]
      %2728 = vst.msk [vmem:[%s540 + $0x1] sm:$0xff] %vm534, %v2726
      %2729 = vst.msk [vmem:[%s540 + $0x9] sm:$0xff] %vm534, %v2727
      %v2730 = vld [vmem:[#allocation2 + $0x2] sm:$0x1]
      %v2731 = vld [vmem:[#allocation2 + $0x1a] sm:$0x1]
      %v2732 = vld [vmem:[#allocation2 + $0x32] sm:$0x1]
      %v2733 = vld [vmem:[#allocation2 + $0x4a] sm:$0x1]
      %v2734 = vld [vmem:[#allocation2 + $0x62] sm:$0x1]
      %v2735 = vld [vmem:[#allocation2 + $0x7a] sm:$0x1]
      %v2736 = vld [vmem:[#allocation2 + $0x92] sm:$0x1]
      %v2737 = vld [vmem:[#allocation2 + $0xaa] sm:$0x1]
      %v2738 = vld [vmem:[#allocation2 + $0xc2] sm:$0x1]
      %v2739 = vld [vmem:[#allocation2 + $0xda] sm:$0x1]
      %v2740 = vld [vmem:[#allocation2 + $0xf2] sm:$0x1]
      %v2741 = vld [vmem:[#allocation2 + $0x10a] sm:$0x1]
      %v2742 = vld [vmem:[#allocation2 + $0x122] sm:$0x1]
      %v2743 = vld [vmem:[#allocation2 + $0x13a] sm:$0x1]
      %v2744 = vld [vmem:[#allocation2 + $0x152] sm:$0x1]
      %v2745 = vld [vmem:[#allocation2 + $0x16a] sm:$0x1]
      %v2746 = vld [vmem:[#allocation2 + $0x182] sm:$0x1]
      %v2747 = vld [vmem:[#allocation2 + $0x19a] sm:$0x1]
      %2748 = vst.msk [vmem:[#allocation2] sm:$0x1] %vm561, %v2730
      %2749 = vst.msk [vmem:[#allocation2 + $0x18] sm:$0x1] %vm561, %v2731
      %2750 = vst.msk [vmem:[#allocation2 + $0x30] sm:$0x1] %vm561, %v2732
      %2751 = vst.msk [vmem:[#allocation2 + $0x48] sm:$0x1] %vm561, %v2733
      %2752 = vst.msk [vmem:[#allocation2 + $0x60] sm:$0x1] %vm561, %v2734
      %2753 = vst.msk [vmem:[#allocation2 + $0x78] sm:$0x1] %vm561, %v2735
      %2754 = vst.msk [vmem:[#allocation2 + $0x90] sm:$0x1] %vm561, %v2736
      %2755 = vst.msk [vmem:[#allocation2 + $0xa8] sm:$0x1] %vm561, %v2737
      %2756 = vst.msk [vmem:[#allocation2 + $0xc0] sm:$0x1] %vm561, %v2738
      %2757 = vst.msk [vmem:[#allocation2 + $0xd8] sm:$0x1] %vm561, %v2739
      %2758 = vst.msk [vmem:[#allocation2 + $0xf0] sm:$0x1] %vm561, %v2740
      %2759 = vst.msk [vmem:[#allocation2 + $0x108] sm:$0x1] %vm561, %v2741
      %2760 = vst.msk [vmem:[#allocation2 + $0x120] sm:$0x1] %vm561, %v2742
      %2761 = vst.msk [vmem:[#allocation2 + $0x138] sm:$0x1] %vm561, %v2743
      %2762 = vst.msk [vmem:[#allocation2 + $0x150] sm:$0x1] %vm561, %v2744
      %2763 = vst.msk [vmem:[#allocation2 + $0x168] sm:$0x1] %vm561, %v2745
      %2764 = vst.msk [vmem:[#allocation2 + $0x180] sm:$0x1] %vm561, %v2746
      %2765 = vst.msk [vmem:[#allocation2 + $0x198] sm:$0x1] %vm561, %v2747
      %v2766 = vld [vmem:[#allocation2 + $0xf] sm:$0x1]
      %v2767 = vld [vmem:[#allocation2 + $0x27] sm:$0x1]
      %v2768 = vld [vmem:[#allocation2 + $0x3f] sm:$0x1]
      %v2769 = vld [vmem:[#allocation2 + $0x57] sm:$0x1]
      %v2770 = vld [vmem:[#allocation2 + $0x6f] sm:$0x1]
      %v2771 = vld [vmem:[#allocation2 + $0x87] sm:$0x1]
      %v2772 = vld [vmem:[#allocation2 + $0x9f] sm:$0x1]
      %v2773 = vld [vmem:[#allocation2 + $0xb7] sm:$0x1]
      %v2774 = vld [vmem:[#allocation2 + $0xcf] sm:$0x1]
      %v2775 = vld [vmem:[#allocation2 + $0xe7] sm:$0x1]
      %v2776 = vld [vmem:[#allocation2 + $0xff] sm:$0x1]
      %v2777 = vld [vmem:[#allocation2 + $0x117] sm:$0x1]
      %v2778 = vld [vmem:[#allocation2 + $0x12f] sm:$0x1]
      %v2779 = vld [vmem:[#allocation2 + $0x147] sm:$0x1]
      %v2780 = vld [vmem:[#allocation2 + $0x15f] sm:$0x1]
      %v2781 = vld [vmem:[#allocation2 + $0x177] sm:$0x1]
      %v2782 = vld [vmem:[#allocation2 + $0x18f] sm:$0x1]
      %v2783 = vld [vmem:[#allocation2 + $0x1a7] sm:$0x1]
      %2784 = vst.msk [vmem:[#allocation2 + $0x11] sm:$0x1] %vm561, %v2766
      %2785 = vst.msk [vmem:[#allocation2 + $0x29] sm:$0x1] %vm561, %v2767
      %2786 = vst.msk [vmem:[#allocation2 + $0x41] sm:$0x1] %vm561, %v2768
      %2787 = vst.msk [vmem:[#allocation2 + $0x59] sm:$0x1] %vm561, %v2769
      %2788 = vst.msk [vmem:[#allocation2 + $0x71] sm:$0x1] %vm561, %v2770
      %2789 = vst.msk [vmem:[#allocation2 + $0x89] sm:$0x1] %vm561, %v2771
      %2790 = vst.msk [vmem:[#allocation2 + $0xa1] sm:$0x1] %vm561, %v2772
      %2791 = vst.msk [vmem:[#allocation2 + $0xb9] sm:$0x1] %vm561, %v2773
      %2792 = vst.msk [vmem:[#allocation2 + $0xd1] sm:$0x1] %vm561, %v2774
      %2793 = vst.msk [vmem:[#allocation2 + $0xe9] sm:$0x1] %vm561, %v2775
      %2794 = vst.msk [vmem:[#allocation2 + $0x101] sm:$0x1] %vm561, %v2776
      %2795 = vst.msk [vmem:[#allocation2 + $0x119] sm:$0x1] %vm561, %v2777
      %2796 = vst.msk [vmem:[#allocation2 + $0x131] sm:$0x1] %vm561, %v2778
      %2797 = vst.msk [vmem:[#allocation2 + $0x149] sm:$0x1] %vm561, %v2779
      %2798 = vst.msk [vmem:[#allocation2 + $0x161] sm:$0x1] %vm561, %v2780
      %2799 = vst.msk [vmem:[#allocation2 + $0x179] sm:$0x1] %vm561, %v2781
      %2800 = vst.msk [vmem:[#allocation2 + $0x191] sm:$0x1] %vm561, %v2782
      %2801 = vst.msk [vmem:[#allocation2 + $0x1a9] sm:$0x1] %vm561, %v2783
      %v2802 = vld [vmem:[#allocation2] sm:$0xff]
      %v2803 = vld [vmem:[#allocation2 + $0x8] sm:$0xff]
      %v2804 = vld [vmem:[#allocation2 + $0x18] sm:$0xff]
      %v2805 = vld [vmem:[#allocation2 + $0x20] sm:$0xff]
      %v2806 = vld [vmem:[#allocation2 + $0x30] sm:$0xff]
      %v2807 = vld [vmem:[#allocation2 + $0x38] sm:$0xff]
      %v2808 = vld [vmem:[#allocation2 + $0x48] sm:$0xff]
      %v2809 = vld [vmem:[#allocation2 + $0x50] sm:$0xff]
      %v2810 = vld [vmem:[#allocation2 + $0x60] sm:$0xff]
      %v2811 = vld [vmem:[#allocation2 + $0x68] sm:$0xff]
      %v2812 = vld [vmem:[#allocation2 + $0x78] sm:$0xff]
      %v2813 = vld [vmem:[#allocation2 + $0x80] sm:$0xff]
      %v2814 = vld [vmem:[#allocation2 + $0x90] sm:$0xff]
      %v2815 = vld [vmem:[#allocation2 + $0x98] sm:$0xff]
      %v2816 = vld [vmem:[#allocation2 + $0xa8] sm:$0xff]
      %v2817 = vld [vmem:[#allocation2 + $0xb0] sm:$0xff]
      %v2818 = vld [vmem:[#allocation2 + $0xc0] sm:$0xff]
      %v2819 = vld [vmem:[#allocation2 + $0xc8] sm:$0xff]
      %v2820 = vld [vmem:[#allocation2 + $0xd8] sm:$0xff]
      %v2821 = vld [vmem:[#allocation2 + $0xe0] sm:$0xff]
      %v2822 = vld [vmem:[#allocation2 + $0xf0] sm:$0xff]
      %v2823 = vld [vmem:[#allocation2 + $0xf8] sm:$0xff]
      %v2824 = vld [vmem:[#allocation2 + $0x108] sm:$0xff]
      %v2825 = vld [vmem:[#allocation2 + $0x110] sm:$0xff]
      %v2826 = vld [vmem:[#allocation2 + $0x120] sm:$0xff]
      %v2827 = vld [vmem:[#allocation2 + $0x128] sm:$0xff]
      %v2828 = vld [vmem:[#allocation2 + $0x138] sm:$0xff]
      %v2829 = vld [vmem:[#allocation2 + $0x140] sm:$0xff]
      %v2830 = vld [vmem:[#allocation2 + $0x150] sm:$0xff]
      %v2831 = vld [vmem:[#allocation2 + $0x158] sm:$0xff]
      %v2832 = vld [vmem:[#allocation2 + $0x168] sm:$0xff]
      %v2833 = vld [vmem:[#allocation2 + $0x170] sm:$0xff]
      %2834 = vst.msk [vmem:[#allocation3] sm:$0xff] %vm534, %v2802
      %2835 = vst.msk [vmem:[#allocation3 + $0x8] sm:$0xff] %vm534, %v2803
      %2836 = vst.msk [vmem:[#allocation3 + $0x10] sm:$0xff] %vm534, %v2804
      %2837 = vst.msk [vmem:[#allocation3 + $0x18] sm:$0xff] %vm534, %v2805
      %2838 = vst.msk [vmem:[#allocation3 + $0x20] sm:$0xff] %vm534, %v2806
      %2839 = vst.msk [vmem:[#allocation3 + $0x28] sm:$0xff] %vm534, %v2807
      %2840 = vst.msk [vmem:[#allocation3 + $0x30] sm:$0xff] %vm534, %v2808
      %2841 = vst.msk [vmem:[#allocation3 + $0x38] sm:$0xff] %vm534, %v2809
      %2842 = vst.msk [vmem:[#allocation3 + $0x40] sm:$0xff] %vm534, %v2810
      %2843 = vst.msk [vmem:[#allocation3 + $0x48] sm:$0xff] %vm534, %v2811
      %2844 = vst.msk [vmem:[#allocation3 + $0x50] sm:$0xff] %vm534, %v2812
      %2845 = vst.msk [vmem:[#allocation3 + $0x58] sm:$0xff] %vm534, %v2813
      %2846 = vst.msk [vmem:[#allocation3 + $0x60] sm:$0xff] %vm534, %v2814
      %2847 = vst.msk [vmem:[#allocation3 + $0x68] sm:$0xff] %vm534, %v2815
      %2848 = vst.msk [vmem:[#allocation3 + $0x70] sm:$0xff] %vm534, %v2816
      %2849 = vst.msk [vmem:[#allocation3 + $0x78] sm:$0xff] %vm534, %v2817
      %2850 = vst.msk [vmem:[#allocation3 + $0x80] sm:$0xff] %vm534, %v2818
      %2851 = vst.msk [vmem:[#allocation3 + $0x88] sm:$0xff] %vm534, %v2819
      %2852 = vst.msk [vmem:[#allocation3 + $0x90] sm:$0xff] %vm534, %v2820
      %2853 = vst.msk [vmem:[#allocation3 + $0x98] sm:$0xff] %vm534, %v2821
      %2854 = vst.msk [vmem:[#allocation3 + $0xa0] sm:$0xff] %vm534, %v2822
      %2855 = vst.msk [vmem:[#allocation3 + $0xa8] sm:$0xff] %vm534, %v2823
      %2856 = vst.msk [vmem:[#allocation3 + $0xb0] sm:$0xff] %vm534, %v2824
      %2857 = vst.msk [vmem:[#allocation3 + $0xb8] sm:$0xff] %vm534, %v2825
      %2858 = vst.msk [vmem:[#allocation3 + $0xc0] sm:$0xff] %vm534, %v2826
      %2859 = vst.msk [vmem:[#allocation3 + $0xc8] sm:$0xff] %vm534, %v2827
      %2860 = vst.msk [vmem:[#allocation3 + $0xd0] sm:$0xff] %vm534, %v2828
      %2861 = vst.msk [vmem:[#allocation3 + $0xd8] sm:$0xff] %vm534, %v2829
      %2862 = vst.msk [vmem:[#allocation3 + $0xe0] sm:$0xff] %vm534, %v2830
      %2863 = vst.msk [vmem:[#allocation3 + $0xe8] sm:$0xff] %vm534, %v2831
      %2864 = vst.msk [vmem:[#allocation3 + $0xf0] sm:$0xff] %vm534, %v2832
      %2865 = vst.msk [vmem:[#allocation3 + $0xf8] sm:$0xff] %vm534, %v2833
      %v2866 = vld [vmem:[#allocation2 + $0x1] sm:$0xff]
      %v2867 = vld [vmem:[#allocation2 + $0x9] sm:$0xff]
      %v2868 = vld [vmem:[#allocation2 + $0x19] sm:$0xff]
      %v2869 = vld [vmem:[#allocation2 + $0x21] sm:$0xff]
      %v2870 = vld [vmem:[#allocation2 + $0x31] sm:$0xff]
      %v2871 = vld [vmem:[#allocation2 + $0x39] sm:$0xff]
      %v2872 = vld [vmem:[#allocation2 + $0x49] sm:$0xff]
      %v2873 = vld [vmem:[#allocation2 + $0x51] sm:$0xff]
      %v2874 = vld [vmem:[#allocation2 + $0x61] sm:$0xff]
      %v2875 = vld [vmem:[#allocation2 + $0x69] sm:$0xff]
      %v2876 = vld [vmem:[#allocation2 + $0x79] sm:$0xff]
      %v2877 = vld [vmem:[#allocation2 + $0x81] sm:$0xff]
      %v2878 = vld [vmem:[#allocation2 + $0x91] sm:$0xff]
      %v2879 = vld [vmem:[#allocation2 + $0x99] sm:$0xff]
      %v2880 = vld [vmem:[#allocation2 + $0xa9] sm:$0xff]
      %v2881 = vld [vmem:[#allocation2 + $0xb1] sm:$0xff]
      %v2882 = vld [vmem:[#allocation2 + $0xc1] sm:$0xff]
      %v2883 = vld [vmem:[#allocation2 + $0xc9] sm:$0xff]
      %v2884 = vld [vmem:[#allocation2 + $0xd9] sm:$0xff]
      %v2885 = vld [vmem:[#allocation2 + $0xe1] sm:$0xff]
      %v2886 = vld [vmem:[#allocation2 + $0xf1] sm:$0xff]
      %v2887 = vld [vmem:[#allocation2 + $0xf9] sm:$0xff]
      %v2888 = vld [vmem:[#allocation2 + $0x109] sm:$0xff]
      %v2889 = vld [vmem:[#allocation2 + $0x111] sm:$0xff]
      %v2890 = vld [vmem:[#allocation2 + $0x121] sm:$0xff]
      %v2891 = vld [vmem:[#allocation2 + $0x129] sm:$0xff]
      %v2892 = vld [vmem:[#allocation2 + $0x139] sm:$0xff]
      %v2893 = vld [vmem:[#allocation2 + $0x141] sm:$0xff]
      %v2894 = vld [vmem:[#allocation2 + $0x151] sm:$0xff]
      %v2895 = vld [vmem:[#allocation2 + $0x159] sm:$0xff]
      %v2896 = vld [vmem:[#allocation2 + $0x169] sm:$0xff]
      %v2897 = vld [vmem:[#allocation2 + $0x171] sm:$0xff]
      %2930 = vrot.lane.b32.xlu0 %v2866, 8
      %v2931 = vpop.permute.xlu0 %2930
      %2932 = vrot.lane.b32.xlu0 %v2867, 8
      %v2933 = vpop.permute.xlu0 %2932
      %2934 = vrot.lane.b32.xlu0 %v2868, 8
      %v2935 = vpop.permute.xlu0 %2934
      %2936 = vrot.lane.b32.xlu0 %v2869, 8
      %v2937 = vpop.permute.xlu0 %2936
      %2938 = vrot.lane.b32.xlu0 %v2870, 8
      %v2939 = vpop.permute.xlu0 %2938
      %2940 = vrot.lane.b32.xlu0 %v2871, 8
      %v2941 = vpop.permute.xlu0 %2940
      %2942 = vrot.lane.b32.xlu0 %v2872, 8
      %v2943 = vpop.permute.xlu0 %2942
      %2944 = vrot.lane.b32.xlu0 %v2873, 8
      %v2945 = vpop.permute.xlu0 %2944
      %2946 = vrot.lane.b32.xlu0 %v2874, 8
      %v2947 = vpop.permute.xlu0 %2946
      %2948 = vrot.lane.b32.xlu0 %v2875, 8
      %v2949 = vpop.permute.xlu0 %2948
      %2950 = vrot.lane.b32.xlu0 %v2876, 8
      %v2951 = vpop.permute.xlu0 %2950
      %2952 = vrot.lane.b32.xlu0 %v2877, 8
      %v2953 = vpop.permute.xlu0 %2952
      %2954 = vrot.lane.b32.xlu0 %v2878, 8
      %v2955 = vpop.permute.xlu0 %2954
      %2956 = vrot.lane.b32.xlu0 %v2879, 8
      %v2957 = vpop.permute.xlu0 %2956
      %2958 = vrot.lane.b32.xlu0 %v2880, 8
      %v2959 = vpop.permute.xlu0 %2958
      %2960 = vrot.lane.b32.xlu0 %v2881, 8
      %v2961 = vpop.permute.xlu0 %2960
      %2962 = vrot.lane.b32.xlu0 %v2882, 8
      %v2963 = vpop.permute.xlu0 %2962
      %2964 = vrot.lane.b32.xlu0 %v2883, 8
      %v2965 = vpop.permute.xlu0 %2964
      %2966 = vrot.lane.b32.xlu0 %v2884, 8
      %v2967 = vpop.permute.xlu0 %2966
      %2968 = vrot.lane.b32.xlu0 %v2885, 8
      %v2969 = vpop.permute.xlu0 %2968
      %2970 = vrot.lane.b32.xlu0 %v2886, 8
      %v2971 = vpop.permute.xlu0 %2970
      %2972 = vrot.lane.b32.xlu0 %v2887, 8
      %v2973 = vpop.permute.xlu0 %2972
      %2974 = vrot.lane.b32.xlu0 %v2888, 8
      %v2975 = vpop.permute.xlu0 %2974
      %2976 = vrot.lane.b32.xlu0 %v2889, 8
      %v2977 = vpop.permute.xlu0 %2976
      %2978 = vrot.lane.b32.xlu0 %v2890, 8
      %v2979 = vpop.permute.xlu0 %2978
      %2980 = vrot.lane.b32.xlu0 %v2891, 8
      %v2981 = vpop.permute.xlu0 %2980
      %2982 = vrot.lane.b32.xlu0 %v2892, 8
      %v2983 = vpop.permute.xlu0 %2982
      %2984 = vrot.lane.b32.xlu0 %v2893, 8
      %v2985 = vpop.permute.xlu0 %2984
      %2986 = vrot.lane.b32.xlu0 %v2894, 8
      %v2987 = vpop.permute.xlu0 %2986
      %2988 = vrot.lane.b32.xlu0 %v2895, 8
      %v2989 = vpop.permute.xlu0 %2988
      %2990 = vrot.lane.b32.xlu0 %v2896, 8
      %v2991 = vpop.permute.xlu0 %2990
      %2992 = vrot.lane.b32.xlu0 %v2897, 8
      %v2993 = vpop.permute.xlu0 %2992
      %3026 = vst.msk [vmem:[#allocation3] sm:$0xff] %vm840, %v2931
      %3027 = vst.msk [vmem:[#allocation3 + $0x8] sm:$0xff] %vm840, %v2933
      %3028 = vst.msk [vmem:[#allocation3 + $0x10] sm:$0xff] %vm840, %v2935
      %3029 = vst.msk [vmem:[#allocation3 + $0x18] sm:$0xff] %vm840, %v2937
      %3030 = vst.msk [vmem:[#allocation3 + $0x20] sm:$0xff] %vm840, %v2939
      %3031 = vst.msk [vmem:[#allocation3 + $0x28] sm:$0xff] %vm840, %v2941
      %3032 = vst.msk [vmem:[#allocation3 + $0x30] sm:$0xff] %vm840, %v2943
      %3033 = vst.msk [vmem:[#allocation3 + $0x38] sm:$0xff] %vm840, %v2945
      %3034 = vst.msk [vmem:[#allocation3 + $0x40] sm:$0xff] %vm840, %v2947
      %3035 = vst.msk [vmem:[#allocation3 + $0x48] sm:$0xff] %vm840, %v2949
      %3036 = vst.msk [vmem:[#allocation3 + $0x50] sm:$0xff] %vm840, %v2951
      %3037 = vst.msk [vmem:[#allocation3 + $0x58] sm:$0xff] %vm840, %v2953
      %3038 = vst.msk [vmem:[#allocation3 + $0x60] sm:$0xff] %vm840, %v2955
      %3039 = vst.msk [vmem:[#allocation3 + $0x68] sm:$0xff] %vm840, %v2957
      %3040 = vst.msk [vmem:[#allocation3 + $0x70] sm:$0xff] %vm840, %v2959
      %3041 = vst.msk [vmem:[#allocation3 + $0x78] sm:$0xff] %vm840, %v2961
      %3042 = vst.msk [vmem:[#allocation3 + $0x80] sm:$0xff] %vm840, %v2963
      %3043 = vst.msk [vmem:[#allocation3 + $0x88] sm:$0xff] %vm840, %v2965
      %3044 = vst.msk [vmem:[#allocation3 + $0x90] sm:$0xff] %vm840, %v2967
      %3045 = vst.msk [vmem:[#allocation3 + $0x98] sm:$0xff] %vm840, %v2969
      %3046 = vst.msk [vmem:[#allocation3 + $0xa0] sm:$0xff] %vm840, %v2971
      %3047 = vst.msk [vmem:[#allocation3 + $0xa8] sm:$0xff] %vm840, %v2973
      %3048 = vst.msk [vmem:[#allocation3 + $0xb0] sm:$0xff] %vm840, %v2975
      %3049 = vst.msk [vmem:[#allocation3 + $0xb8] sm:$0xff] %vm840, %v2977
      %3050 = vst.msk [vmem:[#allocation3 + $0xc0] sm:$0xff] %vm840, %v2979
      %3051 = vst.msk [vmem:[#allocation3 + $0xc8] sm:$0xff] %vm840, %v2981
      %3052 = vst.msk [vmem:[#allocation3 + $0xd0] sm:$0xff] %vm840, %v2983
      %3053 = vst.msk [vmem:[#allocation3 + $0xd8] sm:$0xff] %vm840, %v2985
      %3054 = vst.msk [vmem:[#allocation3 + $0xe0] sm:$0xff] %vm840, %v2987
      %3055 = vst.msk [vmem:[#allocation3 + $0xe8] sm:$0xff] %vm840, %v2989
      %3056 = vst.msk [vmem:[#allocation3 + $0xf0] sm:$0xff] %vm840, %v2991
      %3057 = vst.msk [vmem:[#allocation3 + $0xf8] sm:$0xff] %vm840, %v2993
      %v3058 = vld [vmem:[#allocation2 + $0x2] sm:$0xff]
      %v3059 = vld [vmem:[#allocation2 + $0xa] sm:$0xff]
      %v3060 = vld [vmem:[#allocation2 + $0x1a] sm:$0xff]
      %v3061 = vld [vmem:[#allocation2 + $0x22] sm:$0xff]
      %v3062 = vld [vmem:[#allocation2 + $0x32] sm:$0xff]
      %v3063 = vld [vmem:[#allocation2 + $0x3a] sm:$0xff]
      %v3064 = vld [vmem:[#allocation2 + $0x4a] sm:$0xff]
      %v3065 = vld [vmem:[#allocation2 + $0x52] sm:$0xff]
      %v3066 = vld [vmem:[#allocation2 + $0x62] sm:$0xff]
      %v3067 = vld [vmem:[#allocation2 + $0x6a] sm:$0xff]
      %v3068 = vld [vmem:[#allocation2 + $0x7a] sm:$0xff]
      %v3069 = vld [vmem:[#allocation2 + $0x82] sm:$0xff]
      %v3070 = vld [vmem:[#allocation2 + $0x92] sm:$0xff]
      %v3071 = vld [vmem:[#allocation2 + $0x9a] sm:$0xff]
      %v3072 = vld [vmem:[#allocation2 + $0xaa] sm:$0xff]
      %v3073 = vld [vmem:[#allocation2 + $0xb2] sm:$0xff]
      %v3074 = vld [vmem:[#allocation2 + $0xc2] sm:$0xff]
      %v3075 = vld [vmem:[#allocation2 + $0xca] sm:$0xff]
      %v3076 = vld [vmem:[#allocation2 + $0xda] sm:$0xff]
      %v3077 = vld [vmem:[#allocation2 + $0xe2] sm:$0xff]
      %v3078 = vld [vmem:[#allocation2 + $0xf2] sm:$0xff]
      %v3079 = vld [vmem:[#allocation2 + $0xfa] sm:$0xff]
      %v3080 = vld [vmem:[#allocation2 + $0x10a] sm:$0xff]
      %v3081 = vld [vmem:[#allocation2 + $0x112] sm:$0xff]
      %v3082 = vld [vmem:[#allocation2 + $0x122] sm:$0xff]
      %v3083 = vld [vmem:[#allocation2 + $0x12a] sm:$0xff]
      %v3084 = vld [vmem:[#allocation2 + $0x13a] sm:$0xff]
      %v3085 = vld [vmem:[#allocation2 + $0x142] sm:$0xff]
      %v3086 = vld [vmem:[#allocation2 + $0x152] sm:$0xff]
      %v3087 = vld [vmem:[#allocation2 + $0x15a] sm:$0xff]
      %v3088 = vld [vmem:[#allocation2 + $0x16a] sm:$0xff]
      %v3089 = vld [vmem:[#allocation2 + $0x172] sm:$0xff]
      %3122 = vrot.lane.b32.xlu0 %v3058, 16
      %v3123 = vpop.permute.xlu0 %3122
      %3124 = vrot.lane.b32.xlu0 %v3059, 16
      %v3125 = vpop.permute.xlu0 %3124
      %3126 = vrot.lane.b32.xlu0 %v3060, 16
      %v3127 = vpop.permute.xlu0 %3126
      %3128 = vrot.lane.b32.xlu0 %v3061, 16
      %v3129 = vpop.permute.xlu0 %3128
      %3130 = vrot.lane.b32.xlu0 %v3062, 16
      %v3131 = vpop.permute.xlu0 %3130
      %3132 = vrot.lane.b32.xlu0 %v3063, 16
      %v3133 = vpop.permute.xlu0 %3132
      %3134 = vrot.lane.b32.xlu0 %v3064, 16
      %v3135 = vpop.permute.xlu0 %3134
      %3136 = vrot.lane.b32.xlu0 %v3065, 16
      %v3137 = vpop.permute.xlu0 %3136
      %3138 = vrot.lane.b32.xlu0 %v3066, 16
      %v3139 = vpop.permute.xlu0 %3138
      %3140 = vrot.lane.b32.xlu0 %v3067, 16
      %v3141 = vpop.permute.xlu0 %3140
      %3142 = vrot.lane.b32.xlu0 %v3068, 16
      %v3143 = vpop.permute.xlu0 %3142
      %3144 = vrot.lane.b32.xlu0 %v3069, 16
      %v3145 = vpop.permute.xlu0 %3144
      %3146 = vrot.lane.b32.xlu0 %v3070, 16
      %v3147 = vpop.permute.xlu0 %3146
      %3148 = vrot.lane.b32.xlu0 %v3071, 16
      %v3149 = vpop.permute.xlu0 %3148
      %3150 = vrot.lane.b32.xlu0 %v3072, 16
      %v3151 = vpop.permute.xlu0 %3150
      %3152 = vrot.lane.b32.xlu0 %v3073, 16
      %v3153 = vpop.permute.xlu0 %3152
      %3154 = vrot.lane.b32.xlu0 %v3074, 16
      %v3155 = vpop.permute.xlu0 %3154
      %3156 = vrot.lane.b32.xlu0 %v3075, 16
      %v3157 = vpop.permute.xlu0 %3156
      %3158 = vrot.lane.b32.xlu0 %v3076, 16
      %v3159 = vpop.permute.xlu0 %3158
      %3160 = vrot.lane.b32.xlu0 %v3077, 16
      %v3161 = vpop.permute.xlu0 %3160
      %3162 = vrot.lane.b32.xlu0 %v3078, 16
      %v3163 = vpop.permute.xlu0 %3162
      %3164 = vrot.lane.b32.xlu0 %v3079, 16
      %v3165 = vpop.permute.xlu0 %3164
      %3166 = vrot.lane.b32.xlu0 %v3080, 16
      %v3167 = vpop.permute.xlu0 %3166
      %3168 = vrot.lane.b32.xlu0 %v3081, 16
      %v3169 = vpop.permute.xlu0 %3168
      %3170 = vrot.lane.b32.xlu0 %v3082, 16
      %v3171 = vpop.permute.xlu0 %3170
      %3172 = vrot.lane.b32.xlu0 %v3083, 16
      %v3173 = vpop.permute.xlu0 %3172
      %3174 = vrot.lane.b32.xlu0 %v3084, 16
      %v3175 = vpop.permute.xlu0 %3174
      %3176 = vrot.lane.b32.xlu0 %v3085, 16
      %v3177 = vpop.permute.xlu0 %3176
      %3178 = vrot.lane.b32.xlu0 %v3086, 16
      %v3179 = vpop.permute.xlu0 %3178
      %3180 = vrot.lane.b32.xlu0 %v3087, 16
      %v3181 = vpop.permute.xlu0 %3180
      %3182 = vrot.lane.b32.xlu0 %v3088, 16
      %v3183 = vpop.permute.xlu0 %3182
      %3184 = vrot.lane.b32.xlu0 %v3089, 16
      %v3185 = vpop.permute.xlu0 %3184
      %3218 = vst.msk [vmem:[#allocation3] sm:$0xff] %vm1033, %v3123
      %3219 = vst.msk [vmem:[#allocation3 + $0x8] sm:$0xff] %vm1033, %v3125
      %3220 = vst.msk [vmem:[#allocation3 + $0x10] sm:$0xff] %vm1033, %v3127
      %3221 = vst.msk [vmem:[#allocation3 + $0x18] sm:$0xff] %vm1033, %v3129
      %3222 = vst.msk [vmem:[#allocation3 + $0x20] sm:$0xff] %vm1033, %v3131
      %3223 = vst.msk [vmem:[#allocation3 + $0x28] sm:$0xff] %vm1033, %v3133
      %3224 = vst.msk [vmem:[#allocation3 + $0x30] sm:$0xff] %vm1033, %v3135
      %3225 = vst.msk [vmem:[#allocation3 + $0x38] sm:$0xff] %vm1033, %v3137
      %3226 = vst.msk [vmem:[#allocation3 + $0x40] sm:$0xff] %vm1033, %v3139
      %3227 = vst.msk [vmem:[#allocation3 + $0x48] sm:$0xff] %vm1033, %v3141
      %3228 = vst.msk [vmem:[#allocation3 + $0x50] sm:$0xff] %vm1033, %v3143
      %3229 = vst.msk [vmem:[#allocation3 + $0x58] sm:$0xff] %vm1033, %v3145
      %3230 = vst.msk [vmem:[#allocation3 + $0x60] sm:$0xff] %vm1033, %v3147
      %3231 = vst.msk [vmem:[#allocation3 + $0x68] sm:$0xff] %vm1033, %v3149
      %3232 = vst.msk [vmem:[#allocation3 + $0x70] sm:$0xff] %vm1033, %v3151
      %3233 = vst.msk [vmem:[#allocation3 + $0x78] sm:$0xff] %vm1033, %v3153
      %3234 = vst.msk [vmem:[#allocation3 + $0x80] sm:$0xff] %vm1033, %v3155
      %3235 = vst.msk [vmem:[#allocation3 + $0x88] sm:$0xff] %vm1033, %v3157
      %3236 = vst.msk [vmem:[#allocation3 + $0x90] sm:$0xff] %vm1033, %v3159
      %3237 = vst.msk [vmem:[#allocation3 + $0x98] sm:$0xff] %vm1033, %v3161
      %3238 = vst.msk [vmem:[#allocation3 + $0xa0] sm:$0xff] %vm1033, %v3163
      %3239 = vst.msk [vmem:[#allocation3 + $0xa8] sm:$0xff] %vm1033, %v3165
      %3240 = vst.msk [vmem:[#allocation3 + $0xb0] sm:$0xff] %vm1033, %v3167
      %3241 = vst.msk [vmem:[#allocation3 + $0xb8] sm:$0xff] %vm1033, %v3169
      %3242 = vst.msk [vmem:[#allocation3 + $0xc0] sm:$0xff] %vm1033, %v3171
      %3243 = vst.msk [vmem:[#allocation3 + $0xc8] sm:$0xff] %vm1033, %v3173
      %3244 = vst.msk [vmem:[#allocation3 + $0xd0] sm:$0xff] %vm1033, %v3175
      %3245 = vst.msk [vmem:[#allocation3 + $0xd8] sm:$0xff] %vm1033, %v3177
      %3246 = vst.msk [vmem:[#allocation3 + $0xe0] sm:$0xff] %vm1033, %v3179
      %3247 = vst.msk [vmem:[#allocation3 + $0xe8] sm:$0xff] %vm1033, %v3181
      %3248 = vst.msk [vmem:[#allocation3 + $0xf0] sm:$0xff] %vm1033, %v3183
      %3249 = vst.msk [vmem:[#allocation3 + $0xf8] sm:$0xff] %vm1033, %v3185
      %v3250 = vld [vmem:[%s304] sm:$0xff]
      %v3251 = vld [vmem:[%s304 + $0x8] sm:$0xff]
      %v3252 = vld [vmem:[%s304 + $0x18] sm:$0xff]
      %v3253 = vld [vmem:[%s304 + $0x20] sm:$0xff]
      %v3254 = vld [vmem:[%s304 + $0x30] sm:$0xff]
      %v3255 = vld [vmem:[%s304 + $0x38] sm:$0xff]
      %v3256 = vld [vmem:[%s304 + $0x48] sm:$0xff]
      %v3257 = vld [vmem:[%s304 + $0x50] sm:$0xff]
      %v3258 = vld [vmem:[%s304 + $0x60] sm:$0xff]
      %v3259 = vld [vmem:[%s304 + $0x68] sm:$0xff]
      %v3260 = vld [vmem:[%s304 + $0x78] sm:$0xff]
      %v3261 = vld [vmem:[%s304 + $0x80] sm:$0xff]
      %v3262 = vld [vmem:[%s304 + $0x90] sm:$0xff]
      %v3263 = vld [vmem:[%s304 + $0x98] sm:$0xff]
      %v3264 = vld [vmem:[%s304 + $0xa8] sm:$0xff]
      %v3265 = vld [vmem:[%s304 + $0xb0] sm:$0xff]
      %v3266 = vld [vmem:[%s304 + $0xc0] sm:$0xff]
      %v3267 = vld [vmem:[%s304 + $0xc8] sm:$0xff]
      %v3268 = vld [vmem:[%s304 + $0xd8] sm:$0xff]
      %v3269 = vld [vmem:[%s304 + $0xe0] sm:$0xff]
      %v3270 = vld [vmem:[%s304 + $0xf0] sm:$0xff]
      %v3271 = vld [vmem:[%s304 + $0xf8] sm:$0xff]
      %v3272 = vld [vmem:[%s304 + $0x108] sm:$0xff]
      %v3273 = vld [vmem:[%s304 + $0x110] sm:$0xff]
      %v3274 = vld [vmem:[%s304 + $0x120] sm:$0xff]
      %v3275 = vld [vmem:[%s304 + $0x128] sm:$0xff]
      %v3276 = vld [vmem:[%s304 + $0x138] sm:$0xff]
      %v3277 = vld [vmem:[%s304 + $0x140] sm:$0xff]
      %v3278 = vld [vmem:[%s304 + $0x150] sm:$0xff]
      %v3279 = vld [vmem:[%s304 + $0x158] sm:$0xff]
      %v3280 = vld [vmem:[%s304 + $0x168] sm:$0xff]
      %v3281 = vld [vmem:[%s304 + $0x170] sm:$0xff]
      %3314 = vrot.lane.b32.xlu0 %v3250, 24
      %v3315 = vpop.permute.xlu0 %3314
      %3316 = vrot.lane.b32.xlu0 %v3251, 24
      %v3317 = vpop.permute.xlu0 %3316
      %3318 = vrot.lane.b32.xlu0 %v3252, 24
      %v3319 = vpop.permute.xlu0 %3318
      %3320 = vrot.lane.b32.xlu0 %v3253, 24
      %v3321 = vpop.permute.xlu0 %3320
      %3322 = vrot.lane.b32.xlu0 %v3254, 24
      %v3323 = vpop.permute.xlu0 %3322
      %3324 = vrot.lane.b32.xlu0 %v3255, 24
      %v3325 = vpop.permute.xlu0 %3324
      %3326 = vrot.lane.b32.xlu0 %v3256, 24
      %v3327 = vpop.permute.xlu0 %3326
      %3328 = vrot.lane.b32.xlu0 %v3257, 24
      %v3329 = vpop.permute.xlu0 %3328
      %3330 = vrot.lane.b32.xlu0 %v3258, 24
      %v3331 = vpop.permute.xlu0 %3330
      %3332 = vrot.lane.b32.xlu0 %v3259, 24
      %v3333 = vpop.permute.xlu0 %3332
      %3334 = vrot.lane.b32.xlu0 %v3260, 24
      %v3335 = vpop.permute.xlu0 %3334
      %3336 = vrot.lane.b32.xlu0 %v3261, 24
      %v3337 = vpop.permute.xlu0 %3336
      %3338 = vrot.lane.b32.xlu0 %v3262, 24
      %v3339 = vpop.permute.xlu0 %3338
      %3340 = vrot.lane.b32.xlu0 %v3263, 24
      %v3341 = vpop.permute.xlu0 %3340
      %3342 = vrot.lane.b32.xlu0 %v3264, 24
      %v3343 = vpop.permute.xlu0 %3342
      %3344 = vrot.lane.b32.xlu0 %v3265, 24
      %v3345 = vpop.permute.xlu0 %3344
      %3346 = vrot.lane.b32.xlu0 %v3266, 24
      %v3347 = vpop.permute.xlu0 %3346
      %3348 = vrot.lane.b32.xlu0 %v3267, 24
      %v3349 = vpop.permute.xlu0 %3348
      %3350 = vrot.lane.b32.xlu0 %v3268, 24
      %v3351 = vpop.permute.xlu0 %3350
      %3352 = vrot.lane.b32.xlu0 %v3269, 24
      %v3353 = vpop.permute.xlu0 %3352
      %3354 = vrot.lane.b32.xlu0 %v3270, 24
      %v3355 = vpop.permute.xlu0 %3354
      %3356 = vrot.lane.b32.xlu0 %v3271, 24
      %v3357 = vpop.permute.xlu0 %3356
      %3358 = vrot.lane.b32.xlu0 %v3272, 24
      %v3359 = vpop.permute.xlu0 %3358
      %3360 = vrot.lane.b32.xlu0 %v3273, 24
      %v3361 = vpop.permute.xlu0 %3360
      %3362 = vrot.lane.b32.xlu0 %v3274, 24
      %v3363 = vpop.permute.xlu0 %3362
      %3364 = vrot.lane.b32.xlu0 %v3275, 24
      %v3365 = vpop.permute.xlu0 %3364
      %3366 = vrot.lane.b32.xlu0 %v3276, 24
      %v3367 = vpop.permute.xlu0 %3366
      %3368 = vrot.lane.b32.xlu0 %v3277, 24
      %v3369 = vpop.permute.xlu0 %3368
      %3370 = vrot.lane.b32.xlu0 %v3278, 24
      %v3371 = vpop.permute.xlu0 %3370
      %3372 = vrot.lane.b32.xlu0 %v3279, 24
      %v3373 = vpop.permute.xlu0 %3372
      %3374 = vrot.lane.b32.xlu0 %v3280, 24
      %v3375 = vpop.permute.xlu0 %3374
      %3376 = vrot.lane.b32.xlu0 %v3281, 24
      %v3377 = vpop.permute.xlu0 %3376
      %3410 = vst.msk [vmem:[#allocation3] sm:$0xff] %vm1226, %v3315
      %3411 = vst.msk [vmem:[#allocation3 + $0x8] sm:$0xff] %vm1226, %v3317
      %3412 = vst.msk [vmem:[#allocation3 + $0x10] sm:$0xff] %vm1226, %v3319
      %3413 = vst.msk [vmem:[#allocation3 + $0x18] sm:$0xff] %vm1226, %v3321
      %3414 = vst.msk [vmem:[#allocation3 + $0x20] sm:$0xff] %vm1226, %v3323
      %3415 = vst.msk [vmem:[#allocation3 + $0x28] sm:$0xff] %vm1226, %v3325
      %3416 = vst.msk [vmem:[#allocation3 + $0x30] sm:$0xff] %vm1226, %v3327
      %3417 = vst.msk [vmem:[#allocation3 + $0x38] sm:$0xff] %vm1226, %v3329
      %3418 = vst.msk [vmem:[#allocation3 + $0x40] sm:$0xff] %vm1226, %v3331
      %3419 = vst.msk [vmem:[#allocation3 + $0x48] sm:$0xff] %vm1226, %v3333
      %3420 = vst.msk [vmem:[#allocation3 + $0x50] sm:$0xff] %vm1226, %v3335
      %3421 = vst.msk [vmem:[#allocation3 + $0x58] sm:$0xff] %vm1226, %v3337
      %3422 = vst.msk [vmem:[#allocation3 + $0x60] sm:$0xff] %vm1226, %v3339
      %3423 = vst.msk [vmem:[#allocation3 + $0x68] sm:$0xff] %vm1226, %v3341
      %3424 = vst.msk [vmem:[#allocation3 + $0x70] sm:$0xff] %vm1226, %v3343
      %3425 = vst.msk [vmem:[#allocation3 + $0x78] sm:$0xff] %vm1226, %v3345
      %3426 = vst.msk [vmem:[#allocation3 + $0x80] sm:$0xff] %vm1226, %v3347
      %3427 = vst.msk [vmem:[#allocation3 + $0x88] sm:$0xff] %vm1226, %v3349
      %3428 = vst.msk [vmem:[#allocation3 + $0x90] sm:$0xff] %vm1226, %v3351
      %3429 = vst.msk [vmem:[#allocation3 + $0x98] sm:$0xff] %vm1226, %v3353
      %3430 = vst.msk [vmem:[#allocation3 + $0xa0] sm:$0xff] %vm1226, %v3355
      %3431 = vst.msk [vmem:[#allocation3 + $0xa8] sm:$0xff] %vm1226, %v3357
      %3432 = vst.msk [vmem:[#allocation3 + $0xb0] sm:$0xff] %vm1226, %v3359
      %3433 = vst.msk [vmem:[#allocation3 + $0xb8] sm:$0xff] %vm1226, %v3361
      %3434 = vst.msk [vmem:[#allocation3 + $0xc0] sm:$0xff] %vm1226, %v3363
      %3435 = vst.msk [vmem:[#allocation3 + $0xc8] sm:$0xff] %vm1226, %v3365
      %3436 = vst.msk [vmem:[#allocation3 + $0xd0] sm:$0xff] %vm1226, %v3367
      %3437 = vst.msk [vmem:[#allocation3 + $0xd8] sm:$0xff] %vm1226, %v3369
      %3438 = vst.msk [vmem:[#allocation3 + $0xe0] sm:$0xff] %vm1226, %v3371
      %3439 = vst.msk [vmem:[#allocation3 + $0xe8] sm:$0xff] %vm1226, %v3373
      %3440 = vst.msk [vmem:[#allocation3 + $0xf0] sm:$0xff] %vm1226, %v3375
      %3441 = vst.msk [vmem:[#allocation3 + $0xf8] sm:$0xff] %vm1226, %v3377
      %v3442 = vld [vmem:[%s304 + $0x1] sm:$0xff]
      %v3443 = vld [vmem:[%s304 + $0x9] sm:$0xff]
      %v3444 = vld [vmem:[%s304 + $0x19] sm:$0xff]
      %v3445 = vld [vmem:[%s304 + $0x21] sm:$0xff]
      %v3446 = vld [vmem:[%s304 + $0x31] sm:$0xff]
      %v3447 = vld [vmem:[%s304 + $0x39] sm:$0xff]
      %v3448 = vld [vmem:[%s304 + $0x49] sm:$0xff]
      %v3449 = vld [vmem:[%s304 + $0x51] sm:$0xff]
      %v3450 = vld [vmem:[%s304 + $0x61] sm:$0xff]
      %v3451 = vld [vmem:[%s304 + $0x69] sm:$0xff]
      %v3452 = vld [vmem:[%s304 + $0x79] sm:$0xff]
      %v3453 = vld [vmem:[%s304 + $0x81] sm:$0xff]
      %v3454 = vld [vmem:[%s304 + $0x91] sm:$0xff]
      %v3455 = vld [vmem:[%s304 + $0x99] sm:$0xff]
      %v3456 = vld [vmem:[%s304 + $0xa9] sm:$0xff]
      %v3457 = vld [vmem:[%s304 + $0xb1] sm:$0xff]
      %v3458 = vld [vmem:[%s304 + $0xc1] sm:$0xff]
      %v3459 = vld [vmem:[%s304 + $0xc9] sm:$0xff]
      %v3460 = vld [vmem:[%s304 + $0xd9] sm:$0xff]
      %v3461 = vld [vmem:[%s304 + $0xe1] sm:$0xff]
      %v3462 = vld [vmem:[%s304 + $0xf1] sm:$0xff]
      %v3463 = vld [vmem:[%s304 + $0xf9] sm:$0xff]
      %v3464 = vld [vmem:[%s304 + $0x109] sm:$0xff]
      %v3465 = vld [vmem:[%s304 + $0x111] sm:$0xff]
      %v3466 = vld [vmem:[%s304 + $0x121] sm:$0xff]
      %v3467 = vld [vmem:[%s304 + $0x129] sm:$0xff]
      %v3468 = vld [vmem:[%s304 + $0x139] sm:$0xff]
      %v3469 = vld [vmem:[%s304 + $0x141] sm:$0xff]
      %v3470 = vld [vmem:[%s304 + $0x151] sm:$0xff]
      %v3471 = vld [vmem:[%s304 + $0x159] sm:$0xff]
      %v3472 = vld [vmem:[%s304 + $0x169] sm:$0xff]
      %v3473 = vld [vmem:[%s304 + $0x171] sm:$0xff]
      %3506 = vrot.lane.b32.xlu0 %v3442, 32
      %v3507 = vpop.permute.xlu0 %3506
      %3508 = vrot.lane.b32.xlu0 %v3443, 32
      %v3509 = vpop.permute.xlu0 %3508
      %3510 = vrot.lane.b32.xlu0 %v3444, 32
      %v3511 = vpop.permute.xlu0 %3510
      %3512 = vrot.lane.b32.xlu0 %v3445, 32
      %v3513 = vpop.permute.xlu0 %3512
      %3514 = vrot.lane.b32.xlu0 %v3446, 32
      %v3515 = vpop.permute.xlu0 %3514
      %3516 = vrot.lane.b32.xlu0 %v3447, 32
      %v3517 = vpop.permute.xlu0 %3516
      %3518 = vrot.lane.b32.xlu0 %v3448, 32
      %v3519 = vpop.permute.xlu0 %3518
      %3520 = vrot.lane.b32.xlu0 %v3449, 32
      %v3521 = vpop.permute.xlu0 %3520
      %3522 = vrot.lane.b32.xlu0 %v3450, 32
      %v3523 = vpop.permute.xlu0 %3522
      %3524 = vrot.lane.b32.xlu0 %v3451, 32
      %v3525 = vpop.permute.xlu0 %3524
      %3526 = vrot.lane.b32.xlu0 %v3452, 32
      %v3527 = vpop.permute.xlu0 %3526
      %3528 = vrot.lane.b32.xlu0 %v3453, 32
      %v3529 = vpop.permute.xlu0 %3528
      %3530 = vrot.lane.b32.xlu0 %v3454, 32
      %v3531 = vpop.permute.xlu0 %3530
      %3532 = vrot.lane.b32.xlu0 %v3455, 32
      %v3533 = vpop.permute.xlu0 %3532
      %3534 = vrot.lane.b32.xlu0 %v3456, 32
      %v3535 = vpop.permute.xlu0 %3534
      %3536 = vrot.lane.b32.xlu0 %v3457, 32
      %v3537 = vpop.permute.xlu0 %3536
      %3538 = vrot.lane.b32.xlu0 %v3458, 32
      %v3539 = vpop.permute.xlu0 %3538
      %3540 = vrot.lane.b32.xlu0 %v3459, 32
      %v3541 = vpop.permute.xlu0 %3540
      %3542 = vrot.lane.b32.xlu0 %v3460, 32
      %v3543 = vpop.permute.xlu0 %3542
      %3544 = vrot.lane.b32.xlu0 %v3461, 32
      %v3545 = vpop.permute.xlu0 %3544
      %3546 = vrot.lane.b32.xlu0 %v3462, 32
      %v3547 = vpop.permute.xlu0 %3546
      %3548 = vrot.lane.b32.xlu0 %v3463, 32
      %v3549 = vpop.permute.xlu0 %3548
      %3550 = vrot.lane.b32.xlu0 %v3464, 32
      %v3551 = vpop.permute.xlu0 %3550
      %3552 = vrot.lane.b32.xlu0 %v3465, 32
      %v3553 = vpop.permute.xlu0 %3552
      %3554 = vrot.lane.b32.xlu0 %v3466, 32
      %v3555 = vpop.permute.xlu0 %3554
      %3556 = vrot.lane.b32.xlu0 %v3467, 32
      %v3557 = vpop.permute.xlu0 %3556
      %3558 = vrot.lane.b32.xlu0 %v3468, 32
      %v3559 = vpop.permute.xlu0 %3558
      %3560 = vrot.lane.b32.xlu0 %v3469, 32
      %v3561 = vpop.permute.xlu0 %3560
      %3562 = vrot.lane.b32.xlu0 %v3470, 32
      %v3563 = vpop.permute.xlu0 %3562
      %3564 = vrot.lane.b32.xlu0 %v3471, 32
      %v3565 = vpop.permute.xlu0 %3564
      %3566 = vrot.lane.b32.xlu0 %v3472, 32
      %v3567 = vpop.permute.xlu0 %3566
      %3568 = vrot.lane.b32.xlu0 %v3473, 32
      %v3569 = vpop.permute.xlu0 %3568
      %3602 = vst.msk [vmem:[#allocation3] sm:$0xff] %vm1419, %v3507
      %3603 = vst.msk [vmem:[#allocation3 + $0x8] sm:$0xff] %vm1419, %v3509
      %3604 = vst.msk [vmem:[#allocation3 + $0x10] sm:$0xff] %vm1419, %v3511
      %3605 = vst.msk [vmem:[#allocation3 + $0x18] sm:$0xff] %vm1419, %v3513
      %3606 = vst.msk [vmem:[#allocation3 + $0x20] sm:$0xff] %vm1419, %v3515
      %3607 = vst.msk [vmem:[#allocation3 + $0x28] sm:$0xff] %vm1419, %v3517
      %3608 = vst.msk [vmem:[#allocation3 + $0x30] sm:$0xff] %vm1419, %v3519
      %3609 = vst.msk [vmem:[#allocation3 + $0x38] sm:$0xff] %vm1419, %v3521
      %3610 = vst.msk [vmem:[#allocation3 + $0x40] sm:$0xff] %vm1419, %v3523
      %3611 = vst.msk [vmem:[#allocation3 + $0x48] sm:$0xff] %vm1419, %v3525
      %3612 = vst.msk [vmem:[#allocation3 + $0x50] sm:$0xff] %vm1419, %v3527
      %3613 = vst.msk [vmem:[#allocation3 + $0x58] sm:$0xff] %vm1419, %v3529
      %3614 = vst.msk [vmem:[#allocation3 + $0x60] sm:$0xff] %vm1419, %v3531
      %3615 = vst.msk [vmem:[#allocation3 + $0x68] sm:$0xff] %vm1419, %v3533
      %3616 = vst.msk [vmem:[#allocation3 + $0x70] sm:$0xff] %vm1419, %v3535
      %3617 = vst.msk [vmem:[#allocation3 + $0x78] sm:$0xff] %vm1419, %v3537
      %3618 = vst.msk [vmem:[#allocation3 + $0x80] sm:$0xff] %vm1419, %v3539
      %3619 = vst.msk [vmem:[#allocation3 + $0x88] sm:$0xff] %vm1419, %v3541
      %3620 = vst.msk [vmem:[#allocation3 + $0x90] sm:$0xff] %vm1419, %v3543
      %3621 = vst.msk [vmem:[#allocation3 + $0x98] sm:$0xff] %vm1419, %v3545
      %3622 = vst.msk [vmem:[#allocation3 + $0xa0] sm:$0xff] %vm1419, %v3547
      %3623 = vst.msk [vmem:[#allocation3 + $0xa8] sm:$0xff] %vm1419, %v3549
      %3624 = vst.msk [vmem:[#allocation3 + $0xb0] sm:$0xff] %vm1419, %v3551
      %3625 = vst.msk [vmem:[#allocation3 + $0xb8] sm:$0xff] %vm1419, %v3553
      %3626 = vst.msk [vmem:[#allocation3 + $0xc0] sm:$0xff] %vm1419, %v3555
      %3627 = vst.msk [vmem:[#allocation3 + $0xc8] sm:$0xff] %vm1419, %v3557
      %3628 = vst.msk [vmem:[#allocation3 + $0xd0] sm:$0xff] %vm1419, %v3559
      %3629 = vst.msk [vmem:[#allocation3 + $0xd8] sm:$0xff] %vm1419, %v3561
      %3630 = vst.msk [vmem:[#allocation3 + $0xe0] sm:$0xff] %vm1419, %v3563
      %3631 = vst.msk [vmem:[#allocation3 + $0xe8] sm:$0xff] %vm1419, %v3565
      %3632 = vst.msk [vmem:[#allocation3 + $0xf0] sm:$0xff] %vm1419, %v3567
      %3633 = vst.msk [vmem:[#allocation3 + $0xf8] sm:$0xff] %vm1419, %v3569
      %v3634 = vld [vmem:[%s304 + $0x2] sm:$0xff]
      %v3635 = vld [vmem:[%s304 + $0xa] sm:$0xff]
      %v3636 = vld [vmem:[%s304 + $0x1a] sm:$0xff]
      %v3637 = vld [vmem:[%s304 + $0x22] sm:$0xff]
      %v3638 = vld [vmem:[%s304 + $0x32] sm:$0xff]
      %v3639 = vld [vmem:[%s304 + $0x3a] sm:$0xff]
      %v3640 = vld [vmem:[%s304 + $0x4a] sm:$0xff]
      %v3641 = vld [vmem:[%s304 + $0x52] sm:$0xff]
      %v3642 = vld [vmem:[%s304 + $0x62] sm:$0xff]
      %v3643 = vld [vmem:[%s304 + $0x6a] sm:$0xff]
      %v3644 = vld [vmem:[%s304 + $0x7a] sm:$0xff]
      %v3645 = vld [vmem:[%s304 + $0x82] sm:$0xff]
      %v3646 = vld [vmem:[%s304 + $0x92] sm:$0xff]
      %v3647 = vld [vmem:[%s304 + $0x9a] sm:$0xff]
      %v3648 = vld [vmem:[%s304 + $0xaa] sm:$0xff]
      %v3649 = vld [vmem:[%s304 + $0xb2] sm:$0xff]
      %v3650 = vld [vmem:[%s304 + $0xc2] sm:$0xff]
      %v3651 = vld [vmem:[%s304 + $0xca] sm:$0xff]
      %v3652 = vld [vmem:[%s304 + $0xda] sm:$0xff]
      %v3653 = vld [vmem:[%s304 + $0xe2] sm:$0xff]
      %v3654 = vld [vmem:[%s304 + $0xf2] sm:$0xff]
      %v3655 = vld [vmem:[%s304 + $0xfa] sm:$0xff]
      %v3656 = vld [vmem:[%s304 + $0x10a] sm:$0xff]
      %v3657 = vld [vmem:[%s304 + $0x112] sm:$0xff]
      %v3658 = vld [vmem:[%s304 + $0x122] sm:$0xff]
      %v3659 = vld [vmem:[%s304 + $0x12a] sm:$0xff]
      %v3660 = vld [vmem:[%s304 + $0x13a] sm:$0xff]
      %v3661 = vld [vmem:[%s304 + $0x142] sm:$0xff]
      %v3662 = vld [vmem:[%s304 + $0x152] sm:$0xff]
      %v3663 = vld [vmem:[%s304 + $0x15a] sm:$0xff]
      %v3664 = vld [vmem:[%s304 + $0x16a] sm:$0xff]
      %v3665 = vld [vmem:[%s304 + $0x172] sm:$0xff]
      %3698 = vrot.lane.b32.xlu0 %v3634, 40
      %v3699 = vpop.permute.xlu0 %3698
      %3700 = vrot.lane.b32.xlu0 %v3635, 40
      %v3701 = vpop.permute.xlu0 %3700
      %3702 = vrot.lane.b32.xlu0 %v3636, 40
      %v3703 = vpop.permute.xlu0 %3702
      %3704 = vrot.lane.b32.xlu0 %v3637, 40
      %v3705 = vpop.permute.xlu0 %3704
      %3706 = vrot.lane.b32.xlu0 %v3638, 40
      %v3707 = vpop.permute.xlu0 %3706
      %3708 = vrot.lane.b32.xlu0 %v3639, 40
      %v3709 = vpop.permute.xlu0 %3708
      %3710 = vrot.lane.b32.xlu0 %v3640, 40
      %v3711 = vpop.permute.xlu0 %3710
      %3712 = vrot.lane.b32.xlu0 %v3641, 40
      %v3713 = vpop.permute.xlu0 %3712
      %3714 = vrot.lane.b32.xlu0 %v3642, 40
      %v3715 = vpop.permute.xlu0 %3714
      %3716 = vrot.lane.b32.xlu0 %v3643, 40
      %v3717 = vpop.permute.xlu0 %3716
      %3718 = vrot.lane.b32.xlu0 %v3644, 40
      %v3719 = vpop.permute.xlu0 %3718
      %3720 = vrot.lane.b32.xlu0 %v3645, 40
      %v3721 = vpop.permute.xlu0 %3720
      %3722 = vrot.lane.b32.xlu0 %v3646, 40
      %v3723 = vpop.permute.xlu0 %3722
      %3724 = vrot.lane.b32.xlu0 %v3647, 40
      %v3725 = vpop.permute.xlu0 %3724
      %3726 = vrot.lane.b32.xlu0 %v3648, 40
      %v3727 = vpop.permute.xlu0 %3726
      %3728 = vrot.lane.b32.xlu0 %v3649, 40
      %v3729 = vpop.permute.xlu0 %3728
      %3730 = vrot.lane.b32.xlu0 %v3650, 40
      %v3731 = vpop.permute.xlu0 %3730
      %3732 = vrot.lane.b32.xlu0 %v3651, 40
      %v3733 = vpop.permute.xlu0 %3732
      %3734 = vrot.lane.b32.xlu0 %v3652, 40
      %v3735 = vpop.permute.xlu0 %3734
      %3736 = vrot.lane.b32.xlu0 %v3653, 40
      %v3737 = vpop.permute.xlu0 %3736
      %3738 = vrot.lane.b32.xlu0 %v3654, 40
      %v3739 = vpop.permute.xlu0 %3738
      %3740 = vrot.lane.b32.xlu0 %v3655, 40
      %v3741 = vpop.permute.xlu0 %3740
      %3742 = vrot.lane.b32.xlu0 %v3656, 40
      %v3743 = vpop.permute.xlu0 %3742
      %3744 = vrot.lane.b32.xlu0 %v3657, 40
      %v3745 = vpop.permute.xlu0 %3744
      %3746 = vrot.lane.b32.xlu0 %v3658, 40
      %v3747 = vpop.permute.xlu0 %3746
      %3748 = vrot.lane.b32.xlu0 %v3659, 40
      %v3749 = vpop.permute.xlu0 %3748
      %3750 = vrot.lane.b32.xlu0 %v3660, 40
      %v3751 = vpop.permute.xlu0 %3750
      %3752 = vrot.lane.b32.xlu0 %v3661, 40
      %v3753 = vpop.permute.xlu0 %3752
      %3754 = vrot.lane.b32.xlu0 %v3662, 40
      %v3755 = vpop.permute.xlu0 %3754
      %3756 = vrot.lane.b32.xlu0 %v3663, 40
      %v3757 = vpop.permute.xlu0 %3756
      %3758 = vrot.lane.b32.xlu0 %v3664, 40
      %v3759 = vpop.permute.xlu0 %3758
      %3760 = vrot.lane.b32.xlu0 %v3665, 40
      %v3761 = vpop.permute.xlu0 %3760
      %3794 = vst.msk [vmem:[#allocation3] sm:$0xff] %vm1612, %v3699
      %3795 = vst.msk [vmem:[#allocation3 + $0x8] sm:$0xff] %vm1612, %v3701
      %3796 = vst.msk [vmem:[#allocation3 + $0x10] sm:$0xff] %vm1612, %v3703
      %3797 = vst.msk [vmem:[#allocation3 + $0x18] sm:$0xff] %vm1612, %v3705
      %3798 = vst.msk [vmem:[#allocation3 + $0x20] sm:$0xff] %vm1612, %v3707
      %3799 = vst.msk [vmem:[#allocation3 + $0x28] sm:$0xff] %vm1612, %v3709
      %3800 = vst.msk [vmem:[#allocation3 + $0x30] sm:$0xff] %vm1612, %v3711
      %3801 = vst.msk [vmem:[#allocation3 + $0x38] sm:$0xff] %vm1612, %v3713
      %3802 = vst.msk [vmem:[#allocation3 + $0x40] sm:$0xff] %vm1612, %v3715
      %3803 = vst.msk [vmem:[#allocation3 + $0x48] sm:$0xff] %vm1612, %v3717
      %3804 = vst.msk [vmem:[#allocation3 + $0x50] sm:$0xff] %vm1612, %v3719
      %3805 = vst.msk [vmem:[#allocation3 + $0x58] sm:$0xff] %vm1612, %v3721
      %3806 = vst.msk [vmem:[#allocation3 + $0x60] sm:$0xff] %vm1612, %v3723
      %3807 = vst.msk [vmem:[#allocation3 + $0x68] sm:$0xff] %vm1612, %v3725
      %3808 = vst.msk [vmem:[#allocation3 + $0x70] sm:$0xff] %vm1612, %v3727
      %3809 = vst.msk [vmem:[#allocation3 + $0x78] sm:$0xff] %vm1612, %v3729
      %3810 = vst.msk [vmem:[#allocation3 + $0x80] sm:$0xff] %vm1612, %v3731
      %3811 = vst.msk [vmem:[#allocation3 + $0x88] sm:$0xff] %vm1612, %v3733
      %3812 = vst.msk [vmem:[#allocation3 + $0x90] sm:$0xff] %vm1612, %v3735
      %3813 = vst.msk [vmem:[#allocation3 + $0x98] sm:$0xff] %vm1612, %v3737
      %3814 = vst.msk [vmem:[#allocation3 + $0xa0] sm:$0xff] %vm1612, %v3739
      %3815 = vst.msk [vmem:[#allocation3 + $0xa8] sm:$0xff] %vm1612, %v3741
      %3816 = vst.msk [vmem:[#allocation3 + $0xb0] sm:$0xff] %vm1612, %v3743
      %3817 = vst.msk [vmem:[#allocation3 + $0xb8] sm:$0xff] %vm1612, %v3745
      %3818 = vst.msk [vmem:[#allocation3 + $0xc0] sm:$0xff] %vm1612, %v3747
      %3819 = vst.msk [vmem:[#allocation3 + $0xc8] sm:$0xff] %vm1612, %v3749
      %3820 = vst.msk [vmem:[#allocation3 + $0xd0] sm:$0xff] %vm1612, %v3751
      %3821 = vst.msk [vmem:[#allocation3 + $0xd8] sm:$0xff] %vm1612, %v3753
      %3822 = vst.msk [vmem:[#allocation3 + $0xe0] sm:$0xff] %vm1612, %v3755
      %3823 = vst.msk [vmem:[#allocation3 + $0xe8] sm:$0xff] %vm1612, %v3757
      %3824 = vst.msk [vmem:[#allocation3 + $0xf0] sm:$0xff] %vm1612, %v3759
      %3825 = vst.msk [vmem:[#allocation3 + $0xf8] sm:$0xff] %vm1612, %v3761
      %v3826 = vld [vmem:[%s531] sm:$0xff]
      %v3827 = vld [vmem:[%s531 + $0x8] sm:$0xff]
      %v3828 = vld [vmem:[%s531 + $0x18] sm:$0xff]
      %v3829 = vld [vmem:[%s531 + $0x20] sm:$0xff]
      %v3830 = vld [vmem:[%s531 + $0x30] sm:$0xff]
      %v3831 = vld [vmem:[%s531 + $0x38] sm:$0xff]
      %v3832 = vld [vmem:[%s531 + $0x48] sm:$0xff]
      %v3833 = vld [vmem:[%s531 + $0x50] sm:$0xff]
      %v3834 = vld [vmem:[%s531 + $0x60] sm:$0xff]
      %v3835 = vld [vmem:[%s531 + $0x68] sm:$0xff]
      %v3836 = vld [vmem:[%s531 + $0x78] sm:$0xff]
      %v3837 = vld [vmem:[%s531 + $0x80] sm:$0xff]
      %v3838 = vld [vmem:[%s531 + $0x90] sm:$0xff]
      %v3839 = vld [vmem:[%s531 + $0x98] sm:$0xff]
      %v3840 = vld [vmem:[%s531 + $0xa8] sm:$0xff]
      %v3841 = vld [vmem:[%s531 + $0xb0] sm:$0xff]
      %v3842 = vld [vmem:[%s531 + $0xc0] sm:$0xff]
      %v3843 = vld [vmem:[%s531 + $0xc8] sm:$0xff]
      %v3844 = vld [vmem:[%s531 + $0xd8] sm:$0xff]
      %v3845 = vld [vmem:[%s531 + $0xe0] sm:$0xff]
      %v3846 = vld [vmem:[%s531 + $0xf0] sm:$0xff]
      %v3847 = vld [vmem:[%s531 + $0xf8] sm:$0xff]
      %v3848 = vld [vmem:[%s531 + $0x108] sm:$0xff]
      %v3849 = vld [vmem:[%s531 + $0x110] sm:$0xff]
      %v3850 = vld [vmem:[%s531 + $0x120] sm:$0xff]
      %v3851 = vld [vmem:[%s531 + $0x128] sm:$0xff]
      %v3852 = vld [vmem:[%s531 + $0x138] sm:$0xff]
      %v3853 = vld [vmem:[%s531 + $0x140] sm:$0xff]
      %v3854 = vld [vmem:[%s531 + $0x150] sm:$0xff]
      %v3855 = vld [vmem:[%s531 + $0x158] sm:$0xff]
      %v3856 = vld [vmem:[%s531 + $0x168] sm:$0xff]
      %v3857 = vld [vmem:[%s531 + $0x170] sm:$0xff]
      %3890 = vrot.lane.b32.xlu0 %v3826, 48
      %v3891 = vpop.permute.xlu0 %3890
      %3892 = vrot.lane.b32.xlu0 %v3827, 48
      %v3893 = vpop.permute.xlu0 %3892
      %3894 = vrot.lane.b32.xlu0 %v3828, 48
      %v3895 = vpop.permute.xlu0 %3894
      %3896 = vrot.lane.b32.xlu0 %v3829, 48
      %v3897 = vpop.permute.xlu0 %3896
      %3898 = vrot.lane.b32.xlu0 %v3830, 48
      %v3899 = vpop.permute.xlu0 %3898
      %3900 = vrot.lane.b32.xlu0 %v3831, 48
      %v3901 = vpop.permute.xlu0 %3900
      %3902 = vrot.lane.b32.xlu0 %v3832, 48
      %v3903 = vpop.permute.xlu0 %3902
      %3904 = vrot.lane.b32.xlu0 %v3833, 48
      %v3905 = vpop.permute.xlu0 %3904
      %3906 = vrot.lane.b32.xlu0 %v3834, 48
      %v3907 = vpop.permute.xlu0 %3906
      %3908 = vrot.lane.b32.xlu0 %v3835, 48
      %v3909 = vpop.permute.xlu0 %3908
      %3910 = vrot.lane.b32.xlu0 %v3836, 48
      %v3911 = vpop.permute.xlu0 %3910
      %3912 = vrot.lane.b32.xlu0 %v3837, 48
      %v3913 = vpop.permute.xlu0 %3912
      %3914 = vrot.lane.b32.xlu0 %v3838, 48
      %v3915 = vpop.permute.xlu0 %3914
      %3916 = vrot.lane.b32.xlu0 %v3839, 48
      %v3917 = vpop.permute.xlu0 %3916
      %3918 = vrot.lane.b32.xlu0 %v3840, 48
      %v3919 = vpop.permute.xlu0 %3918
      %3920 = vrot.lane.b32.xlu0 %v3841, 48
      %v3921 = vpop.permute.xlu0 %3920
      %3922 = vrot.lane.b32.xlu0 %v3842, 48
      %v3923 = vpop.permute.xlu0 %3922
      %3924 = vrot.lane.b32.xlu0 %v3843, 48
      %v3925 = vpop.permute.xlu0 %3924
      %3926 = vrot.lane.b32.xlu0 %v3844, 48
      %v3927 = vpop.permute.xlu0 %3926
      %3928 = vrot.lane.b32.xlu0 %v3845, 48
      %v3929 = vpop.permute.xlu0 %3928
      %3930 = vrot.lane.b32.xlu0 %v3846, 48
      %v3931 = vpop.permute.xlu0 %3930
      %3932 = vrot.lane.b32.xlu0 %v3847, 48
      %v3933 = vpop.permute.xlu0 %3932
      %3934 = vrot.lane.b32.xlu0 %v3848, 48
      %v3935 = vpop.permute.xlu0 %3934
      %3936 = vrot.lane.b32.xlu0 %v3849, 48
      %v3937 = vpop.permute.xlu0 %3936
      %3938 = vrot.lane.b32.xlu0 %v3850, 48
      %v3939 = vpop.permute.xlu0 %3938
      %3940 = vrot.lane.b32.xlu0 %v3851, 48
      %v3941 = vpop.permute.xlu0 %3940
      %3942 = vrot.lane.b32.xlu0 %v3852, 48
      %v3943 = vpop.permute.xlu0 %3942
      %3944 = vrot.lane.b32.xlu0 %v3853, 48
      %v3945 = vpop.permute.xlu0 %3944
      %3946 = vrot.lane.b32.xlu0 %v3854, 48
      %v3947 = vpop.permute.xlu0 %3946
      %3948 = vrot.lane.b32.xlu0 %v3855, 48
      %v3949 = vpop.permute.xlu0 %3948
      %3950 = vrot.lane.b32.xlu0 %v3856, 48
      %v3951 = vpop.permute.xlu0 %3950
      %3952 = vrot.lane.b32.xlu0 %v3857, 48
      %v3953 = vpop.permute.xlu0 %3952
      %3986 = vst.msk [vmem:[#allocation3] sm:$0xff] %vm1805, %v3891
      %3987 = vst.msk [vmem:[#allocation3 + $0x8] sm:$0xff] %vm1805, %v3893
      %3988 = vst.msk [vmem:[#allocation3 + $0x10] sm:$0xff] %vm1805, %v3895
      %3989 = vst.msk [vmem:[#allocation3 + $0x18] sm:$0xff] %vm1805, %v3897
      %3990 = vst.msk [vmem:[#allocation3 + $0x20] sm:$0xff] %vm1805, %v3899
      %3991 = vst.msk [vmem:[#allocation3 + $0x28] sm:$0xff] %vm1805, %v3901
      %3992 = vst.msk [vmem:[#allocation3 + $0x30] sm:$0xff] %vm1805, %v3903
      %3993 = vst.msk [vmem:[#allocation3 + $0x38] sm:$0xff] %vm1805, %v3905
      %3994 = vst.msk [vmem:[#allocation3 + $0x40] sm:$0xff] %vm1805, %v3907
      %3995 = vst.msk [vmem:[#allocation3 + $0x48] sm:$0xff] %vm1805, %v3909
      %3996 = vst.msk [vmem:[#allocation3 + $0x50] sm:$0xff] %vm1805, %v3911
      %3997 = vst.msk [vmem:[#allocation3 + $0x58] sm:$0xff] %vm1805, %v3913
      %3998 = vst.msk [vmem:[#allocation3 + $0x60] sm:$0xff] %vm1805, %v3915
      %3999 = vst.msk [vmem:[#allocation3 + $0x68] sm:$0xff] %vm1805, %v3917
      %4000 = vst.msk [vmem:[#allocation3 + $0x70] sm:$0xff] %vm1805, %v3919
      %4001 = vst.msk [vmem:[#allocation3 + $0x78] sm:$0xff] %vm1805, %v3921
      %4002 = vst.msk [vmem:[#allocation3 + $0x80] sm:$0xff] %vm1805, %v3923
      %4003 = vst.msk [vmem:[#allocation3 + $0x88] sm:$0xff] %vm1805, %v3925
      %4004 = vst.msk [vmem:[#allocation3 + $0x90] sm:$0xff] %vm1805, %v3927
      %4005 = vst.msk [vmem:[#allocation3 + $0x98] sm:$0xff] %vm1805, %v3929
      %4006 = vst.msk [vmem:[#allocation3 + $0xa0] sm:$0xff] %vm1805, %v3931
      %4007 = vst.msk [vmem:[#allocation3 + $0xa8] sm:$0xff] %vm1805, %v3933
      %4008 = vst.msk [vmem:[#allocation3 + $0xb0] sm:$0xff] %vm1805, %v3935
      %4009 = vst.msk [vmem:[#allocation3 + $0xb8] sm:$0xff] %vm1805, %v3937
      %4010 = vst.msk [vmem:[#allocation3 + $0xc0] sm:$0xff] %vm1805, %v3939
      %4011 = vst.msk [vmem:[#allocation3 + $0xc8] sm:$0xff] %vm1805, %v3941
      %4012 = vst.msk [vmem:[#allocation3 + $0xd0] sm:$0xff] %vm1805, %v3943
      %4013 = vst.msk [vmem:[#allocation3 + $0xd8] sm:$0xff] %vm1805, %v3945
      %4014 = vst.msk [vmem:[#allocation3 + $0xe0] sm:$0xff] %vm1805, %v3947
      %4015 = vst.msk [vmem:[#allocation3 + $0xe8] sm:$0xff] %vm1805, %v3949
      %4016 = vst.msk [vmem:[#allocation3 + $0xf0] sm:$0xff] %vm1805, %v3951
      %4017 = vst.msk [vmem:[#allocation3 + $0xf8] sm:$0xff] %vm1805, %v3953
      %v4018 = vld [vmem:[%s531 + $0x1] sm:$0xff]
      %v4019 = vld [vmem:[%s531 + $0x9] sm:$0xff]
      %v4020 = vld [vmem:[%s531 + $0x19] sm:$0xff]
      %v4021 = vld [vmem:[%s531 + $0x21] sm:$0xff]
      %v4022 = vld [vmem:[%s531 + $0x31] sm:$0xff]
      %v4023 = vld [vmem:[%s531 + $0x39] sm:$0xff]
      %v4024 = vld [vmem:[%s531 + $0x49] sm:$0xff]
      %v4025 = vld [vmem:[%s531 + $0x51] sm:$0xff]
      %v4026 = vld [vmem:[%s531 + $0x61] sm:$0xff]
      %v4027 = vld [vmem:[%s531 + $0x69] sm:$0xff]
      %v4028 = vld [vmem:[%s531 + $0x79] sm:$0xff]
      %v4029 = vld [vmem:[%s531 + $0x81] sm:$0xff]
      %v4030 = vld [vmem:[%s531 + $0x91] sm:$0xff]
      %v4031 = vld [vmem:[%s531 + $0x99] sm:$0xff]
      %v4032 = vld [vmem:[%s531 + $0xa9] sm:$0xff]
      %v4033 = vld [vmem:[%s531 + $0xb1] sm:$0xff]
      %v4034 = vld [vmem:[%s531 + $0xc1] sm:$0xff]
      %v4035 = vld [vmem:[%s531 + $0xc9] sm:$0xff]
      %v4036 = vld [vmem:[%s531 + $0xd9] sm:$0xff]
      %v4037 = vld [vmem:[%s531 + $0xe1] sm:$0xff]
      %v4038 = vld [vmem:[%s531 + $0xf1] sm:$0xff]
      %v4039 = vld [vmem:[%s531 + $0xf9] sm:$0xff]
      %v4040 = vld [vmem:[%s531 + $0x109] sm:$0xff]
      %v4041 = vld [vmem:[%s531 + $0x111] sm:$0xff]
      %v4042 = vld [vmem:[%s531 + $0x121] sm:$0xff]
      %v4043 = vld [vmem:[%s531 + $0x129] sm:$0xff]
      %v4044 = vld [vmem:[%s531 + $0x139] sm:$0xff]
      %v4045 = vld [vmem:[%s531 + $0x141] sm:$0xff]
      %v4046 = vld [vmem:[%s531 + $0x151] sm:$0xff]
      %v4047 = vld [vmem:[%s531 + $0x159] sm:$0xff]
      %v4048 = vld [vmem:[%s531 + $0x169] sm:$0xff]
      %v4049 = vld [vmem:[%s531 + $0x171] sm:$0xff]
      %4082 = vrot.lane.b32.xlu0 %v4018, 56
      %v4083 = vpop.permute.xlu0 %4082
      %4084 = vrot.lane.b32.xlu0 %v4019, 56
      %v4085 = vpop.permute.xlu0 %4084
      %4086 = vrot.lane.b32.xlu0 %v4020, 56
      %v4087 = vpop.permute.xlu0 %4086
      %4088 = vrot.lane.b32.xlu0 %v4021, 56
      %v4089 = vpop.permute.xlu0 %4088
      %4090 = vrot.lane.b32.xlu0 %v4022, 56
      %v4091 = vpop.permute.xlu0 %4090
      %4092 = vrot.lane.b32.xlu0 %v4023, 56
      %v4093 = vpop.permute.xlu0 %4092
      %4094 = vrot.lane.b32.xlu0 %v4024, 56
      %v4095 = vpop.permute.xlu0 %4094
      %4096 = vrot.lane.b32.xlu0 %v4025, 56
      %v4097 = vpop.permute.xlu0 %4096
      %4098 = vrot.lane.b32.xlu0 %v4026, 56
      %v4099 = vpop.permute.xlu0 %4098
      %4100 = vrot.lane.b32.xlu0 %v4027, 56
      %v4101 = vpop.permute.xlu0 %4100
      %4102 = vrot.lane.b32.xlu0 %v4028, 56
      %v4103 = vpop.permute.xlu0 %4102
      %4104 = vrot.lane.b32.xlu0 %v4029, 56
      %v4105 = vpop.permute.xlu0 %4104
      %4106 = vrot.lane.b32.xlu0 %v4030, 56
      %v4107 = vpop.permute.xlu0 %4106
      %4108 = vrot.lane.b32.xlu0 %v4031, 56
      %v4109 = vpop.permute.xlu0 %4108
      %4110 = vrot.lane.b32.xlu0 %v4032, 56
      %v4111 = vpop.permute.xlu0 %4110
      %4112 = vrot.lane.b32.xlu0 %v4033, 56
      %v4113 = vpop.permute.xlu0 %4112
      %4114 = vrot.lane.b32.xlu0 %v4034, 56
      %v4115 = vpop.permute.xlu0 %4114
      %4116 = vrot.lane.b32.xlu0 %v4035, 56
      %v4117 = vpop.permute.xlu0 %4116
      %4118 = vrot.lane.b32.xlu0 %v4036, 56
      %v4119 = vpop.permute.xlu0 %4118
      %4120 = vrot.lane.b32.xlu0 %v4037, 56
      %v4121 = vpop.permute.xlu0 %4120
      %4122 = vrot.lane.b32.xlu0 %v4038, 56
      %v4123 = vpop.permute.xlu0 %4122
      %4124 = vrot.lane.b32.xlu0 %v4039, 56
      %v4125 = vpop.permute.xlu0 %4124
      %4126 = vrot.lane.b32.xlu0 %v4040, 56
      %v4127 = vpop.permute.xlu0 %4126
      %4128 = vrot.lane.b32.xlu0 %v4041, 56
      %v4129 = vpop.permute.xlu0 %4128
      %4130 = vrot.lane.b32.xlu0 %v4042, 56
      %v4131 = vpop.permute.xlu0 %4130
      %4132 = vrot.lane.b32.xlu0 %v4043, 56
      %v4133 = vpop.permute.xlu0 %4132
      %4134 = vrot.lane.b32.xlu0 %v4044, 56
      %v4135 = vpop.permute.xlu0 %4134
      %4136 = vrot.lane.b32.xlu0 %v4045, 56
      %v4137 = vpop.permute.xlu0 %4136
      %4138 = vrot.lane.b32.xlu0 %v4046, 56
      %v4139 = vpop.permute.xlu0 %4138
      %4140 = vrot.lane.b32.xlu0 %v4047, 56
      %v4141 = vpop.permute.xlu0 %4140
      %4142 = vrot.lane.b32.xlu0 %v4048, 56
      %v4143 = vpop.permute.xlu0 %4142
      %4144 = vrot.lane.b32.xlu0 %v4049, 56
      %v4145 = vpop.permute.xlu0 %4144
      %4178 = vst.msk [vmem:[#allocation3] sm:$0xff] %vm1998, %v4083
      %4179 = vst.msk [vmem:[#allocation3 + $0x8] sm:$0xff] %vm1998, %v4085
      %4180 = vst.msk [vmem:[#allocation3 + $0x10] sm:$0xff] %vm1998, %v4087
      %4181 = vst.msk [vmem:[#allocation3 + $0x18] sm:$0xff] %vm1998, %v4089
      %4182 = vst.msk [vmem:[#allocation3 + $0x20] sm:$0xff] %vm1998, %v4091
      %4183 = vst.msk [vmem:[#allocation3 + $0x28] sm:$0xff] %vm1998, %v4093
      %4184 = vst.msk [vmem:[#allocation3 + $0x30] sm:$0xff] %vm1998, %v4095
      %4185 = vst.msk [vmem:[#allocation3 + $0x38] sm:$0xff] %vm1998, %v4097
      %4186 = vst.msk [vmem:[#allocation3 + $0x40] sm:$0xff] %vm1998, %v4099
      %4187 = vst.msk [vmem:[#allocation3 + $0x48] sm:$0xff] %vm1998, %v4101
      %4188 = vst.msk [vmem:[#allocation3 + $0x50] sm:$0xff] %vm1998, %v4103
      %4189 = vst.msk [vmem:[#allocation3 + $0x58] sm:$0xff] %vm1998, %v4105
      %4190 = vst.msk [vmem:[#allocation3 + $0x60] sm:$0xff] %vm1998, %v4107
      %4191 = vst.msk [vmem:[#allocation3 + $0x68] sm:$0xff] %vm1998, %v4109
      %4192 = vst.msk [vmem:[#allocation3 + $0x70] sm:$0xff] %vm1998, %v4111
      %4193 = vst.msk [vmem:[#allocation3 + $0x78] sm:$0xff] %vm1998, %v4113
      %4194 = vst.msk [vmem:[#allocation3 + $0x80] sm:$0xff] %vm1998, %v4115
      %4195 = vst.msk [vmem:[#allocation3 + $0x88] sm:$0xff] %vm1998, %v4117
      %4196 = vst.msk [vmem:[#allocation3 + $0x90] sm:$0xff] %vm1998, %v4119
      %4197 = vst.msk [vmem:[#allocation3 + $0x98] sm:$0xff] %vm1998, %v4121
      %4198 = vst.msk [vmem:[#allocation3 + $0xa0] sm:$0xff] %vm1998, %v4123
      %4199 = vst.msk [vmem:[#allocation3 + $0xa8] sm:$0xff] %vm1998, %v4125
      %4200 = vst.msk [vmem:[#allocation3 + $0xb0] sm:$0xff] %vm1998, %v4127
      %4201 = vst.msk [vmem:[#allocation3 + $0xb8] sm:$0xff] %vm1998, %v4129
      %4202 = vst.msk [vmem:[#allocation3 + $0xc0] sm:$0xff] %vm1998, %v4131
      %4203 = vst.msk [vmem:[#allocation3 + $0xc8] sm:$0xff] %vm1998, %v4133
      %4204 = vst.msk [vmem:[#allocation3 + $0xd0] sm:$0xff] %vm1998, %v4135
      %4205 = vst.msk [vmem:[#allocation3 + $0xd8] sm:$0xff] %vm1998, %v4137
      %4206 = vst.msk [vmem:[#allocation3 + $0xe0] sm:$0xff] %vm1998, %v4139
      %4207 = vst.msk [vmem:[#allocation3 + $0xe8] sm:$0xff] %vm1998, %v4141
      %4208 = vst.msk [vmem:[#allocation3 + $0xf0] sm:$0xff] %vm1998, %v4143
      %4209 = vst.msk [vmem:[#allocation3 + $0xf8] sm:$0xff] %vm1998, %v4145
      %v4210 = vld [vmem:[%s531 + $0x2] sm:$0xff]
      %v4211 = vld [vmem:[%s531 + $0xa] sm:$0xff]
      %v4212 = vld [vmem:[%s531 + $0x1a] sm:$0xff]
      %v4213 = vld [vmem:[%s531 + $0x22] sm:$0xff]
      %v4214 = vld [vmem:[%s531 + $0x32] sm:$0xff]
      %v4215 = vld [vmem:[%s531 + $0x3a] sm:$0xff]
      %v4216 = vld [vmem:[%s531 + $0x4a] sm:$0xff]
      %v4217 = vld [vmem:[%s531 + $0x52] sm:$0xff]
      %v4218 = vld [vmem:[%s531 + $0x62] sm:$0xff]
      %v4219 = vld [vmem:[%s531 + $0x6a] sm:$0xff]
      %v4220 = vld [vmem:[%s531 + $0x7a] sm:$0xff]
      %v4221 = vld [vmem:[%s531 + $0x82] sm:$0xff]
      %v4222 = vld [vmem:[%s531 + $0x92] sm:$0xff]
      %v4223 = vld [vmem:[%s531 + $0x9a] sm:$0xff]
      %v4224 = vld [vmem:[%s531 + $0xaa] sm:$0xff]
      %v4225 = vld [vmem:[%s531 + $0xb2] sm:$0xff]
      %v4226 = vld [vmem:[%s531 + $0xc2] sm:$0xff]
      %v4227 = vld [vmem:[%s531 + $0xca] sm:$0xff]
      %v4228 = vld [vmem:[%s531 + $0xda] sm:$0xff]
      %v4229 = vld [vmem:[%s531 + $0xe2] sm:$0xff]
      %v4230 = vld [vmem:[%s531 + $0xf2] sm:$0xff]
      %v4231 = vld [vmem:[%s531 + $0xfa] sm:$0xff]
      %v4232 = vld [vmem:[%s531 + $0x10a] sm:$0xff]
      %v4233 = vld [vmem:[%s531 + $0x112] sm:$0xff]
      %v4234 = vld [vmem:[%s531 + $0x122] sm:$0xff]
      %v4235 = vld [vmem:[%s531 + $0x12a] sm:$0xff]
      %v4236 = vld [vmem:[%s531 + $0x13a] sm:$0xff]
      %v4237 = vld [vmem:[%s531 + $0x142] sm:$0xff]
      %v4238 = vld [vmem:[%s531 + $0x152] sm:$0xff]
      %v4239 = vld [vmem:[%s531 + $0x15a] sm:$0xff]
      %v4240 = vld [vmem:[%s531 + $0x16a] sm:$0xff]
      %v4241 = vld [vmem:[%s531 + $0x172] sm:$0xff]
      %4274 = vrot.lane.b32.xlu0 %v4210, 64
      %v4275 = vpop.permute.xlu0 %4274
      %4276 = vrot.lane.b32.xlu0 %v4211, 64
      %v4277 = vpop.permute.xlu0 %4276
      %4278 = vrot.lane.b32.xlu0 %v4212, 64
      %v4279 = vpop.permute.xlu0 %4278
      %4280 = vrot.lane.b32.xlu0 %v4213, 64
      %v4281 = vpop.permute.xlu0 %4280
      %4282 = vrot.lane.b32.xlu0 %v4214, 64
      %v4283 = vpop.permute.xlu0 %4282
      %4284 = vrot.lane.b32.xlu0 %v4215, 64
      %v4285 = vpop.permute.xlu0 %4284
      %4286 = vrot.lane.b32.xlu0 %v4216, 64
      %v4287 = vpop.permute.xlu0 %4286
      %4288 = vrot.lane.b32.xlu0 %v4217, 64
      %v4289 = vpop.permute.xlu0 %4288
      %4290 = vrot.lane.b32.xlu0 %v4218, 64
      %v4291 = vpop.permute.xlu0 %4290
      %4292 = vrot.lane.b32.xlu0 %v4219, 64
      %v4293 = vpop.permute.xlu0 %4292
      %4294 = vrot.lane.b32.xlu0 %v4220, 64
      %v4295 = vpop.permute.xlu0 %4294
      %4296 = vrot.lane.b32.xlu0 %v4221, 64
      %v4297 = vpop.permute.xlu0 %4296
      %4298 = vrot.lane.b32.xlu0 %v4222, 64
      %v4299 = vpop.permute.xlu0 %4298
      %4300 = vrot.lane.b32.xlu0 %v4223, 64
      %v4301 = vpop.permute.xlu0 %4300
      %4302 = vrot.lane.b32.xlu0 %v4224, 64
      %v4303 = vpop.permute.xlu0 %4302
      %4304 = vrot.lane.b32.xlu0 %v4225, 64
      %v4305 = vpop.permute.xlu0 %4304
      %4306 = vrot.lane.b32.xlu0 %v4226, 64
      %v4307 = vpop.permute.xlu0 %4306
      %4308 = vrot.lane.b32.xlu0 %v4227, 64
      %v4309 = vpop.permute.xlu0 %4308
      %4310 = vrot.lane.b32.xlu0 %v4228, 64
      %v4311 = vpop.permute.xlu0 %4310
      %4312 = vrot.lane.b32.xlu0 %v4229, 64
      %v4313 = vpop.permute.xlu0 %4312
      %4314 = vrot.lane.b32.xlu0 %v4230, 64
      %v4315 = vpop.permute.xlu0 %4314
      %4316 = vrot.lane.b32.xlu0 %v4231, 64
      %v4317 = vpop.permute.xlu0 %4316
      %4318 = vrot.lane.b32.xlu0 %v4232, 64
      %v4319 = vpop.permute.xlu0 %4318
      %4320 = vrot.lane.b32.xlu0 %v4233, 64
      %v4321 = vpop.permute.xlu0 %4320
      %4322 = vrot.lane.b32.xlu0 %v4234, 64
      %v4323 = vpop.permute.xlu0 %4322
      %4324 = vrot.lane.b32.xlu0 %v4235, 64
      %v4325 = vpop.permute.xlu0 %4324
      %4326 = vrot.lane.b32.xlu0 %v4236, 64
      %v4327 = vpop.permute.xlu0 %4326
      %4328 = vrot.lane.b32.xlu0 %v4237, 64
      %v4329 = vpop.permute.xlu0 %4328
      %4330 = vrot.lane.b32.xlu0 %v4238, 64
      %v4331 = vpop.permute.xlu0 %4330
      %4332 = vrot.lane.b32.xlu0 %v4239, 64
      %v4333 = vpop.permute.xlu0 %4332
      %4334 = vrot.lane.b32.xlu0 %v4240, 64
      %v4335 = vpop.permute.xlu0 %4334
      %4336 = vrot.lane.b32.xlu0 %v4241, 64
      %v4337 = vpop.permute.xlu0 %4336
      %4370 = vst.msk [vmem:[#allocation3] sm:$0xff] %vm2191, %v4275
      %4371 = vst.msk [vmem:[#allocation3 + $0x8] sm:$0xff] %vm2191, %v4277
      %4372 = vst.msk [vmem:[#allocation3 + $0x10] sm:$0xff] %vm2191, %v4279
      %4373 = vst.msk [vmem:[#allocation3 + $0x18] sm:$0xff] %vm2191, %v4281
      %4374 = vst.msk [vmem:[#allocation3 + $0x20] sm:$0xff] %vm2191, %v4283
      %4375 = vst.msk [vmem:[#allocation3 + $0x28] sm:$0xff] %vm2191, %v4285
      %4376 = vst.msk [vmem:[#allocation3 + $0x30] sm:$0xff] %vm2191, %v4287
      %4377 = vst.msk [vmem:[#allocation3 + $0x38] sm:$0xff] %vm2191, %v4289
      %4378 = vst.msk [vmem:[#allocation3 + $0x40] sm:$0xff] %vm2191, %v4291
      %4379 = vst.msk [vmem:[#allocation3 + $0x48] sm:$0xff] %vm2191, %v4293
      %4380 = vst.msk [vmem:[#allocation3 + $0x50] sm:$0xff] %vm2191, %v4295
      %4381 = vst.msk [vmem:[#allocation3 + $0x58] sm:$0xff] %vm2191, %v4297
      %4382 = vst.msk [vmem:[#allocation3 + $0x60] sm:$0xff] %vm2191, %v4299
      %4383 = vst.msk [vmem:[#allocation3 + $0x68] sm:$0xff] %vm2191, %v4301
      %4384 = vst.msk [vmem:[#allocation3 + $0x70] sm:$0xff] %vm2191, %v4303
      %4385 = vst.msk [vmem:[#allocation3 + $0x78] sm:$0xff] %vm2191, %v4305
      %4386 = vst.msk [vmem:[#allocation3 + $0x80] sm:$0xff] %vm2191, %v4307
      %4387 = vst.msk [vmem:[#allocation3 + $0x88] sm:$0xff] %vm2191, %v4309
      %4388 = vst.msk [vmem:[#allocation3 + $0x90] sm:$0xff] %vm2191, %v4311
      %4389 = vst.msk [vmem:[#allocation3 + $0x98] sm:$0xff] %vm2191, %v4313
      %4390 = vst.msk [vmem:[#allocation3 + $0xa0] sm:$0xff] %vm2191, %v4315
      %4391 = vst.msk [vmem:[#allocation3 + $0xa8] sm:$0xff] %vm2191, %v4317
      %4392 = vst.msk [vmem:[#allocation3 + $0xb0] sm:$0xff] %vm2191, %v4319
      %4393 = vst.msk [vmem:[#allocation3 + $0xb8] sm:$0xff] %vm2191, %v4321
      %4394 = vst.msk [vmem:[#allocation3 + $0xc0] sm:$0xff] %vm2191, %v4323
      %4395 = vst.msk [vmem:[#allocation3 + $0xc8] sm:$0xff] %vm2191, %v4325
      %4396 = vst.msk [vmem:[#allocation3 + $0xd0] sm:$0xff] %vm2191, %v4327
      %4397 = vst.msk [vmem:[#allocation3 + $0xd8] sm:$0xff] %vm2191, %v4329
      %4398 = vst.msk [vmem:[#allocation3 + $0xe0] sm:$0xff] %vm2191, %v4331
      %4399 = vst.msk [vmem:[#allocation3 + $0xe8] sm:$0xff] %vm2191, %v4333
      %4400 = vst.msk [vmem:[#allocation3 + $0xf0] sm:$0xff] %vm2191, %v4335
      %4401 = vst.msk [vmem:[#allocation3 + $0xf8] sm:$0xff] %vm2191, %v4337
      %v4402 = vld [vmem:[#allocation3] sm:$0xff]
      %v4403 = vld [vmem:[#allocation3 + $0x8] sm:$0xff]
      %v4404 = vld [vmem:[#allocation3 + $0x10] sm:$0xff]
      %v4405 = vld [vmem:[#allocation3 + $0x18] sm:$0xff]
      %v4406 = vld [vmem:[#allocation3 + $0x20] sm:$0xff]
      %v4407 = vld [vmem:[#allocation3 + $0x28] sm:$0xff]
      %v4408 = vld [vmem:[#allocation3 + $0x30] sm:$0xff]
      %v4409 = vld [vmem:[#allocation3 + $0x38] sm:$0xff]
      %v4410 = vld [vmem:[#allocation3 + $0x40] sm:$0xff]
      %v4411 = vld [vmem:[#allocation3 + $0x48] sm:$0xff]
      %v4412 = vld [vmem:[#allocation3 + $0x50] sm:$0xff]
      %v4413 = vld [vmem:[#allocation3 + $0x58] sm:$0xff]
      %v4414 = vld [vmem:[#allocation3 + $0x60] sm:$0xff]
      %v4415 = vld [vmem:[#allocation3 + $0x68] sm:$0xff]
      %v4416 = vld [vmem:[#allocation3 + $0x70] sm:$0xff]
      %v4417 = vld [vmem:[#allocation3 + $0x78] sm:$0xff]
      %v4418 = vld [vmem:[#allocation3 + $0x80] sm:$0xff]
      %v4419 = vld [vmem:[#allocation3 + $0x88] sm:$0xff]
      %v4420 = vld [vmem:[#allocation3 + $0x90] sm:$0xff]
      %v4421 = vld [vmem:[#allocation3 + $0x98] sm:$0xff]
      %v4422 = vld [vmem:[#allocation3 + $0xa0] sm:$0xff]
      %v4423 = vld [vmem:[#allocation3 + $0xa8] sm:$0xff]
      %v4424 = vld [vmem:[#allocation3 + $0xb0] sm:$0xff]
      %v4425 = vld [vmem:[#allocation3 + $0xb8] sm:$0xff]
      %v4426 = vld [vmem:[#allocation3 + $0xc0] sm:$0xff]
      %v4427 = vld [vmem:[#allocation3 + $0xc8] sm:$0xff]
      %v4428 = vld [vmem:[#allocation3 + $0xd0] sm:$0xff]
      %v4429 = vld [vmem:[#allocation3 + $0xd8] sm:$0xff]
      %v4430 = vld [vmem:[#allocation3 + $0xe0] sm:$0xff]
      %v4431 = vld [vmem:[#allocation3 + $0xe8] sm:$0xff]
      %v4432 = vld [vmem:[#allocation3 + $0xf0] sm:$0xff]
      %v4433 = vld [vmem:[#allocation3 + $0xf8] sm:$0xff]
      %v4434 = vld [vmem:[%s4] sm:$0xff]
      %v4435 = vld [vmem:[%s4 + $0x8] sm:$0xff]
      %v4436 = vld [vmem:[%s4 + $0x10] sm:$0xff]
      %v4437 = vld [vmem:[%s4 + $0x18] sm:$0xff]
      %v4438 = vld [vmem:[%s4 + $0x20] sm:$0xff]
      %v4439 = vld [vmem:[%s4 + $0x28] sm:$0xff]
      %v4440 = vld [vmem:[%s4 + $0x30] sm:$0xff]
      %v4441 = vld [vmem:[%s4 + $0x38] sm:$0xff]
      %v4442 = vld [vmem:[%s4 + $0x40] sm:$0xff]
      %v4443 = vld [vmem:[%s5] sm:$0x1]
      %v4445 = vlaneseq
      %v4446 = vshrl.u32 %v4445, 7
      %v4447 = vsub.s32 0, %v4446
      %v4448 = vrot.slane %v4443, %v4447
      %v4451 = vsel %vm2272, %v4402, 0
      %v4454 = vsel %vm2272, %v4403, 0
      %v4457 = vsel %vm2272, %v4404, 0
      %v4460 = vsel %vm2272, %v4405, 0
      %v4463 = vsel %vm2272, %v4406, 0
      %v4466 = vsel %vm2272, %v4407, 0
      %v4469 = vsel %vm2272, %v4408, 0
      %v4472 = vsel %vm2272, %v4409, 0
      %v4475 = vsel %vm2272, %v4410, 0
      %v4478 = vsel %vm2272, %v4411, 0
      %v4481 = vsel %vm2272, %v4412, 0
      %v4484 = vsel %vm2272, %v4413, 0
      %v4487 = vsel %vm2272, %v4414, 0
      %v4490 = vsel %vm2272, %v4415, 0
      %v4493 = vsel %vm2272, %v4416, 0
      %v4496 = vsel %vm2272, %v4417, 0
      %v4499 = vsel %vm2272, %v4418, 0
      %v4502 = vsel %vm2272, %v4419, 0
      %v4505 = vsel %vm2272, %v4420, 0
      %v4508 = vsel %vm2272, %v4421, 0
      %v4511 = vsel %vm2272, %v4422, 0
      %v4514 = vsel %vm2272, %v4423, 0
      %v4517 = vsel %vm2272, %v4424, 0
      %v4520 = vsel %vm2272, %v4425, 0
      %v4523 = vsel %vm2272, %v4426, 0
      %v4526 = vsel %vm2272, %v4427, 0
      %v4529 = vsel %vm2272, %v4428, 0
      %v4532 = vsel %vm2272, %v4429, 0
      %v4535 = vsel %vm2272, %v4430, 0
      %v4538 = vsel %vm2272, %v4431, 0
      %v4541 = vsel %vm2272, %v4432, 0
      %v4544 = vsel %vm2272, %v4433, 0
      %4546 = vmatprep.subr.mxu0 0.0
      %4547 = vmatpush1.msra.mxu0 %v4434
      %4548 = vmatprep.subr.mxu0 0.0
      %4549 = vmatpush1.msra.mxu0 %v4435
      %4550 = vmatprep.subr.mxu0 0.0
      %4551 = vmatpush1.msra.mxu0 %v4436
      %4552 = vmatprep.subr.mxu0 0.0
      %4553 = vmatpush1.msra.mxu0 %v4437
      %4554 = vmatprep.subr.mxu0 0.0
      %4555 = vmatpush1.msra.mxu0 %v4438
      %4556 = vmatprep.subr.mxu0 0.0
      %4557 = vmatpush1.msra.mxu0 %v4439
      %4558 = vmatprep.subr.mxu0 0.0
      %4559 = vmatpush1.msra.mxu0 %v4440
      %4560 = vmatprep.subr.mxu0 0.0
      %4561 = vmatpush1.msra.mxu0 %v4441
      %4562 = vmatprep.subr.mxu0 0.0
      %4563 = vmatpush1.msra.mxu0 %v4442
      %4564 = vmatprep.subr.mxu0 0.0
      %4565 = vmatpush1.msra.mxu0 0.0
      %4566 = vmatprep.subr.mxu0 0.0
      %4567 = vmatpush1.msra.mxu0 0.0
      %4568 = vmatprep.subr.mxu0 0.0
      %4569 = vmatpush1.msra.mxu0 0.0
      %4570 = vmatprep.subr.mxu0 0.0
      %4571 = vmatpush1.msra.mxu0 0.0
      %4572 = vmatprep.subr.mxu0 0.0
      %4573 = vmatpush1.msra.mxu0 0.0
      %4574 = vmatprep.subr.mxu0 0.0
      %4575 = vmatpush1.msra.mxu0 0.0
      %4576 = vmatprep.subr.mxu0 0.0
      %4577 = vmatpush1.msra.mxu0 0.0
      %4578 = vmatprep.subr.mxu0 0.0
      %4579 = vmatpush1.msra.mxu0 0.0
      %4580 = vmatprep.subr.mxu0 0.0
      %4581 = vmatpush1.msra.mxu0 0.0
      %4582 = vmatprep.subr.mxu0 0.0
      %4583 = vmatpush1.msra.mxu0 0.0
      %4584 = vmatprep.subr.mxu0 0.0
      %4585 = vmatpush1.msra.mxu0 0.0
      %4586 = vmatprep.subr.mxu0 0.0
      %4587 = vmatpush1.msra.mxu0 0.0
      %4588 = vmatprep.subr.mxu0 0.0
      %4589 = vmatpush1.msra.mxu0 0.0
      %4590 = vmatprep.subr.mxu0 0.0
      %4591 = vmatpush1.msra.mxu0 0.0
      %4592 = vmatprep.subr.mxu0 0.0
      %4593 = vmatpush1.msra.mxu0 0.0
      %4594 = vmatprep.subr.mxu0 0.0
      %4595 = vmatpush1.msra.mxu0 0.0
      %4596 = vmatprep.subr.mxu0 0.0
      %4597 = vmatpush1.msra.mxu0 0.0
      %4598 = vmatprep.subr.mxu0 0.0
      %4599 = vmatpush1.msra.mxu0 0.0
      %4600 = vmatprep.subr.mxu0 0.0
      %4601 = vmatpush1.msra.mxu0 0.0
      %4602 = vmatprep.subr.mxu0 0.0
      %4603 = vmatpush1.msra.mxu0 0.0
      %4604 = vmatprep.subr.mxu0 0.0
      %4605 = vmatpush1.msra.mxu0 0.0
      %4606 = vmatprep.subr.mxu0 0.0
      %4607 = vmatpush1.msra.mxu0 0.0
      %4608 = vmatprep.subr.mxu0 0.0
      %4609 = vmatpush1.msra.mxu0 0.0
      %4610 = vmatprep.mubr.f32.mxu0 0.0
      %4611 = vmatmul.mubr.f32.gmra.mrb[0].mxu0 %v4451
      %v4612 = vpop.f32.mrb[0].mxu0
      %v4613 = vadd.f32 %v4448, %v4612
      %v4614 = vpop.f32.mrb[0].mxu0
      %4615 = vmatprep.mubr.f32.mxu0 0.0
      %4616 = vmatmul.mubr.f32.gmra.mrb[0].mxu0 %v4454
      %v4617 = vpop.f32.mrb[0].mxu0
      %v4618 = vadd.f32 %v4448, %v4617
      %v4619 = vpop.f32.mrb[0].mxu0
      %4620 = vmatprep.mubr.f32.mxu0 0.0
      %4621 = vmatmul.mubr.f32.gmra.mrb[0].mxu0 %v4457
      %v4622 = vpop.f32.mrb[0].mxu0
      %v4623 = vadd.f32 %v4448, %v4622
      %v4624 = vpop.f32.mrb[0].mxu0
      %4625 = vmatprep.mubr.f32.mxu0 0.0
      %4626 = vmatmul.mubr.f32.gmra.mrb[0].mxu0 %v4460
      %v4627 = vpop.f32.mrb[0].mxu0
      %v4628 = vadd.f32 %v4448, %v4627
      %v4629 = vpop.f32.mrb[0].mxu0
      %4630 = vmatprep.mubr.f32.mxu0 0.0
      %4631 = vmatmul.mubr.f32.gmra.mrb[0].mxu0 %v4463
      %v4632 = vpop.f32.mrb[0].mxu0
      %v4633 = vadd.f32 %v4448, %v4632
      %v4634 = vpop.f32.mrb[0].mxu0
      %4635 = vmatprep.mubr.f32.mxu0 0.0
      %4636 = vmatmul.mubr.f32.gmra.mrb[0].mxu0 %v4466
      %v4637 = vpop.f32.mrb[0].mxu0
      %v4638 = vadd.f32 %v4448, %v4637
      %v4639 = vpop.f32.mrb[0].mxu0
      %4640 = vmatprep.mubr.f32.mxu0 0.0
      %4641 = vmatmul.mubr.f32.gmra.mrb[0].mxu0 %v4469
      %v4642 = vpop.f32.mrb[0].mxu0
      %v4643 = vadd.f32 %v4448, %v4642
      %v4644 = vpop.f32.mrb[0].mxu0
      %4645 = vmatprep.mubr.f32.mxu0 0.0
      %4646 = vmatmul.mubr.f32.gmra.mrb[0].mxu0 %v4472
      %v4647 = vpop.f32.mrb[0].mxu0
      %v4648 = vadd.f32 %v4448, %v4647
      %v4649 = vpop.f32.mrb[0].mxu0
      %4650 = vmatprep.mubr.f32.mxu0 0.0
      %4651 = vmatmul.mubr.f32.gmra.mrb[0].mxu0 %v4475
      %v4652 = vpop.f32.mrb[0].mxu0
      %v4653 = vadd.f32 %v4448, %v4652
      %v4654 = vpop.f32.mrb[0].mxu0
      %4655 = vmatprep.mubr.f32.mxu0 0.0
      %4656 = vmatmul.mubr.f32.gmra.mrb[0].mxu0 %v4478
      %v4657 = vpop.f32.mrb[0].mxu0
      %v4658 = vadd.f32 %v4448, %v4657
      %v4659 = vpop.f32.mrb[0].mxu0
      %4660 = vmatprep.mubr.f32.mxu0 0.0
      %4661 = vmatmul.mubr.f32.gmra.mrb[0].mxu0 %v4481
      %v4662 = vpop.f32.mrb[0].mxu0
      %v4663 = vadd.f32 %v4448, %v4662
      %v4664 = vpop.f32.mrb[0].mxu0
      %4665 = vmatprep.mubr.f32.mxu0 0.0
      %4666 = vmatmul.mubr.f32.gmra.mrb[0].mxu0 %v4484
      %v4667 = vpop.f32.mrb[0].mxu0
      %v4668 = vadd.f32 %v4448, %v4667
      %v4669 = vpop.f32.mrb[0].mxu0
      %4670 = vmatprep.mubr.f32.mxu0 0.0
      %4671 = vmatmul.mubr.f32.gmra.mrb[0].mxu0 %v4487
      %v4672 = vpop.f32.mrb[0].mxu0
      %v4673 = vadd.f32 %v4448, %v4672
      %v4674 = vpop.f32.mrb[0].mxu0
      %4675 = vmatprep.mubr.f32.mxu0 0.0
      %4676 = vmatmul.mubr.f32.gmra.mrb[0].mxu0 %v4490
      %v4677 = vpop.f32.mrb[0].mxu0
      %v4678 = vadd.f32 %v4448, %v4677
      %v4679 = vpop.f32.mrb[0].mxu0
      %4680 = vmatprep.mubr.f32.mxu0 0.0
      %4681 = vmatmul.mubr.f32.gmra.mrb[0].mxu0 %v4493
      %v4682 = vpop.f32.mrb[0].mxu0
      %v4683 = vadd.f32 %v4448, %v4682
      %v4684 = vpop.f32.mrb[0].mxu0
      %4685 = vmatprep.mubr.f32.mxu0 0.0
      %4686 = vmatmul.mubr.f32.gmra.mrb[0].mxu0 %v4496
      %v4687 = vpop.f32.mrb[0].mxu0
      %v4688 = vadd.f32 %v4448, %v4687
      %v4689 = vpop.f32.mrb[0].mxu0
      %4690 = vmatprep.mubr.f32.mxu0 0.0
      %4691 = vmatmul.mubr.f32.gmra.mrb[0].mxu0 %v4499
      %v4692 = vpop.f32.mrb[0].mxu0
      %v4693 = vadd.f32 %v4448, %v4692
      %v4694 = vpop.f32.mrb[0].mxu0
      %4695 = vmatprep.mubr.f32.mxu0 0.0
      %4696 = vmatmul.mubr.f32.gmra.mrb[0].mxu0 %v4502
      %v4697 = vpop.f32.mrb[0].mxu0
      %v4698 = vadd.f32 %v4448, %v4697
      %v4699 = vpop.f32.mrb[0].mxu0
      %4700 = vmatprep.mubr.f32.mxu0 0.0
      %4701 = vmatmul.mubr.f32.gmra.mrb[0].mxu0 %v4505
      %v4702 = vpop.f32.mrb[0].mxu0
      %v4703 = vadd.f32 %v4448, %v4702
      %v4704 = vpop.f32.mrb[0].mxu0
      %4705 = vmatprep.mubr.f32.mxu0 0.0
      %4706 = vmatmul.mubr.f32.gmra.mrb[0].mxu0 %v4508
      %v4707 = vpop.f32.mrb[0].mxu0
      %v4708 = vadd.f32 %v4448, %v4707
      %v4709 = vpop.f32.mrb[0].mxu0
      %4710 = vmatprep.mubr.f32.mxu0 0.0
      %4711 = vmatmul.mubr.f32.gmra.mrb[0].mxu0 %v4511
      %v4712 = vpop.f32.mrb[0].mxu0
      %v4713 = vadd.f32 %v4448, %v4712
      %v4714 = vpop.f32.mrb[0].mxu0
      %4715 = vmatprep.mubr.f32.mxu0 0.0
      %4716 = vmatmul.mubr.f32.gmra.mrb[0].mxu0 %v4514
      %v4717 = vpop.f32.mrb[0].mxu0
      %v4718 = vadd.f32 %v4448, %v4717
      %v4719 = vpop.f32.mrb[0].mxu0
      %4720 = vmatprep.mubr.f32.mxu0 0.0
      %4721 = vmatmul.mubr.f32.gmra.mrb[0].mxu0 %v4517
      %v4722 = vpop.f32.mrb[0].mxu0
      %v4723 = vadd.f32 %v4448, %v4722
      %v4724 = vpop.f32.mrb[0].mxu0
      %4725 = vmatprep.mubr.f32.mxu0 0.0
      %4726 = vmatmul.mubr.f32.gmra.mrb[0].mxu0 %v4520
      %v4727 = vpop.f32.mrb[0].mxu0
      %v4728 = vadd.f32 %v4448, %v4727
      %v4729 = vpop.f32.mrb[0].mxu0
      %4730 = vmatprep.mubr.f32.mxu0 0.0
      %4731 = vmatmul.mubr.f32.gmra.mrb[0].mxu0 %v4523
      %v4732 = vpop.f32.mrb[0].mxu0
      %v4733 = vadd.f32 %v4448, %v4732
      %v4734 = vpop.f32.mrb[0].mxu0
      %4735 = vmatprep.mubr.f32.mxu0 0.0
      %4736 = vmatmul.mubr.f32.gmra.mrb[0].mxu0 %v4526
      %v4737 = vpop.f32.mrb[0].mxu0
      %v4738 = vadd.f32 %v4448, %v4737
      %v4739 = vpop.f32.mrb[0].mxu0
      %4740 = vmatprep.mubr.f32.mxu0 0.0
      %4741 = vmatmul.mubr.f32.gmra.mrb[0].mxu0 %v4529
      %v4742 = vpop.f32.mrb[0].mxu0
      %v4743 = vadd.f32 %v4448, %v4742
      %v4744 = vpop.f32.mrb[0].mxu0
      %4745 = vmatprep.mubr.f32.mxu0 0.0
      %4746 = vmatmul.mubr.f32.gmra.mrb[0].mxu0 %v4532
      %v4747 = vpop.f32.mrb[0].mxu0
      %v4748 = vadd.f32 %v4448, %v4747
      %v4749 = vpop.f32.mrb[0].mxu0
      %4750 = vmatprep.mubr.f32.mxu0 0.0
      %4751 = vmatmul.mubr.f32.gmra.mrb[0].mxu0 %v4535
      %v4752 = vpop.f32.mrb[0].mxu0
      %v4753 = vadd.f32 %v4448, %v4752
      %v4754 = vpop.f32.mrb[0].mxu0
      %4755 = vmatprep.mubr.f32.mxu0 0.0
      %4756 = vmatmul.mubr.f32.gmra.mrb[0].mxu0 %v4538
      %v4757 = vpop.f32.mrb[0].mxu0
      %v4758 = vadd.f32 %v4448, %v4757
      %v4759 = vpop.f32.mrb[0].mxu0
      %4760 = vmatprep.mubr.f32.mxu0 0.0
      %4761 = vmatmul.mubr.f32.gmra.mrb[0].mxu0 %v4541
      %v4762 = vpop.f32.mrb[0].mxu0
      %v4763 = vadd.f32 %v4448, %v4762
      %v4764 = vpop.f32.mrb[0].mxu0
      %4765 = vmatprep.mubr.f32.mxu0 0.0
      %4766 = vmatmul.mubr.f32.gmra.mrb[0].mxu0 %v4544
      %v4767 = vpop.f32.mrb[0].mxu0
      %v4768 = vadd.f32 %v4448, %v4767
      %v4769 = vpop.f32.mrb[0].mxu0
      %4770 = vdwg.mxu0
      %v4771 = vsub.f32 0.0, %v4613
      %v4772 = vsub.f32 0.0, %v4618
      %v4773 = vsub.f32 0.0, %v4623
      %v4774 = vsub.f32 0.0, %v4628
      %v4775 = vsub.f32 0.0, %v4633
      %v4776 = vsub.f32 0.0, %v4638
      %v4777 = vsub.f32 0.0, %v4643
      %v4778 = vsub.f32 0.0, %v4648
      %v4779 = vsub.f32 0.0, %v4653
      %v4780 = vsub.f32 0.0, %v4658
      %v4781 = vsub.f32 0.0, %v4663
      %v4782 = vsub.f32 0.0, %v4668
      %v4783 = vsub.f32 0.0, %v4673
      %v4784 = vsub.f32 0.0, %v4678
      %v4785 = vsub.f32 0.0, %v4683
      %v4786 = vsub.f32 0.0, %v4688
      %v4787 = vsub.f32 0.0, %v4693
      %v4788 = vsub.f32 0.0, %v4698
      %v4789 = vsub.f32 0.0, %v4703
      %v4790 = vsub.f32 0.0, %v4708
      %v4791 = vsub.f32 0.0, %v4713
      %v4792 = vsub.f32 0.0, %v4718
      %v4793 = vsub.f32 0.0, %v4723
      %v4794 = vsub.f32 0.0, %v4728
      %v4795 = vsub.f32 0.0, %v4733
      %v4796 = vsub.f32 0.0, %v4738
      %v4797 = vsub.f32 0.0, %v4743
      %v4798 = vsub.f32 0.0, %v4748
      %v4799 = vsub.f32 0.0, %v4753
      %v4800 = vsub.f32 0.0, %v4758
      %v4801 = vsub.f32 0.0, %v4763
      %v4802 = vsub.f32 0.0, %v4768
      %v4803 = vmul.f32 %v4771, 1.442695
      %v4804 = vpow.pop %v4803
      %v4805 = vmul.f32 %v4772, 1.442695
      %v4806 = vpow.pop %v4805
      %v4807 = vmul.f32 %v4773, 1.442695
      %v4808 = vpow.pop %v4807
      %v4809 = vmul.f32 %v4774, 1.442695
      %v4810 = vpow.pop %v4809
      %v4811 = vmul.f32 %v4775, 1.442695
      %v4812 = vpow.pop %v4811
      %v4813 = vmul.f32 %v4776, 1.442695
      %v4814 = vpow.pop %v4813
      %v4815 = vmul.f32 %v4777, 1.442695
      %v4816 = vpow.pop %v4815
      %v4817 = vmul.f32 %v4778, 1.442695
      %v4818 = vpow.pop %v4817
      %v4819 = vmul.f32 %v4779, 1.442695
      %v4820 = vpow.pop %v4819
      %v4821 = vmul.f32 %v4780, 1.442695
      %v4822 = vpow.pop %v4821
      %v4823 = vmul.f32 %v4781, 1.442695
      %v4824 = vpow.pop %v4823
      %v4825 = vmul.f32 %v4782, 1.442695
      %v4826 = vpow.pop %v4825
      %v4827 = vmul.f32 %v4783, 1.442695
      %v4828 = vpow.pop %v4827
      %v4829 = vmul.f32 %v4784, 1.442695
      %v4830 = vpow.pop %v4829
      %v4831 = vmul.f32 %v4785, 1.442695
      %v4832 = vpow.pop %v4831
      %v4833 = vmul.f32 %v4786, 1.442695
      %v4834 = vpow.pop %v4833
      %v4835 = vmul.f32 %v4787, 1.442695
      %v4836 = vpow.pop %v4835
      %v4837 = vmul.f32 %v4788, 1.442695
      %v4838 = vpow.pop %v4837
      %v4839 = vmul.f32 %v4789, 1.442695
      %v4840 = vpow.pop %v4839
      %v4841 = vmul.f32 %v4790, 1.442695
      %v4842 = vpow.pop %v4841
      %v4843 = vmul.f32 %v4791, 1.442695
      %v4844 = vpow.pop %v4843
      %v4845 = vmul.f32 %v4792, 1.442695
      %v4846 = vpow.pop %v4845
      %v4847 = vmul.f32 %v4793, 1.442695
      %v4848 = vpow.pop %v4847
      %v4849 = vmul.f32 %v4794, 1.442695
      %v4850 = vpow.pop %v4849
      %v4851 = vmul.f32 %v4795, 1.442695
      %v4852 = vpow.pop %v4851
      %v4853 = vmul.f32 %v4796, 1.442695
      %v4854 = vpow.pop %v4853
      %v4855 = vmul.f32 %v4797, 1.442695
      %v4856 = vpow.pop %v4855
      %v4857 = vmul.f32 %v4798, 1.442695
      %v4858 = vpow.pop %v4857
      %v4859 = vmul.f32 %v4799, 1.442695
      %v4860 = vpow.pop %v4859
      %v4861 = vmul.f32 %v4800, 1.442695
      %v4862 = vpow.pop %v4861
      %v4863 = vmul.f32 %v4801, 1.442695
      %v4864 = vpow.pop %v4863
      %v4865 = vmul.f32 %v4802, 1.442695
      %v4866 = vpow.pop %v4865
      %v4867 = vadd.f32 %v4804, 1.0
      %v4868 = vadd.f32 %v4806, 1.0
      %v4869 = vadd.f32 %v4808, 1.0
      %v4870 = vadd.f32 %v4810, 1.0
      %v4871 = vadd.f32 %v4812, 1.0
      %v4872 = vadd.f32 %v4814, 1.0
      %v4873 = vadd.f32 %v4816, 1.0
      %v4874 = vadd.f32 %v4818, 1.0
      %v4875 = vadd.f32 %v4820, 1.0
      %v4876 = vadd.f32 %v4822, 1.0
      %v4877 = vadd.f32 %v4824, 1.0
      %v4878 = vadd.f32 %v4826, 1.0
      %v4879 = vadd.f32 %v4828, 1.0
      %v4880 = vadd.f32 %v4830, 1.0
      %v4881 = vadd.f32 %v4832, 1.0
      %v4882 = vadd.f32 %v4834, 1.0
      %v4883 = vadd.f32 %v4836, 1.0
      %v4884 = vadd.f32 %v4838, 1.0
      %v4885 = vadd.f32 %v4840, 1.0
      %v4886 = vadd.f32 %v4842, 1.0
      %v4887 = vadd.f32 %v4844, 1.0
      %v4888 = vadd.f32 %v4846, 1.0
      %v4889 = vadd.f32 %v4848, 1.0
      %v4890 = vadd.f32 %v4850, 1.0
      %v4891 = vadd.f32 %v4852, 1.0
      %v4892 = vadd.f32 %v4854, 1.0
      %v4893 = vadd.f32 %v4856, 1.0
      %v4894 = vadd.f32 %v4858, 1.0
      %v4895 = vadd.f32 %v4860, 1.0
      %v4896 = vadd.f32 %v4862, 1.0
      %v4897 = vadd.f32 %v4864, 1.0
      %v4898 = vadd.f32 %v4866, 1.0
      %v4899 = vrcp.pop %v4867
      %v4900 = vmul.f32 1.0, %v4899
      %v4901 = vrcp.pop %v4868
      %v4902 = vmul.f32 1.0, %v4901
      %v4903 = vrcp.pop %v4869
      %v4904 = vmul.f32 1.0, %v4903
      %v4905 = vrcp.pop %v4870
      %v4906 = vmul.f32 1.0, %v4905
      %v4907 = vrcp.pop %v4871
      %v4908 = vmul.f32 1.0, %v4907
      %v4909 = vrcp.pop %v4872
      %v4910 = vmul.f32 1.0, %v4909
      %v4911 = vrcp.pop %v4873
      %v4912 = vmul.f32 1.0, %v4911
      %v4913 = vrcp.pop %v4874
      %v4914 = vmul.f32 1.0, %v4913
      %v4915 = vrcp.pop %v4875
      %v4916 = vmul.f32 1.0, %v4915
      %v4917 = vrcp.pop %v4876
      %v4918 = vmul.f32 1.0, %v4917
      %v4919 = vrcp.pop %v4877
      %v4920 = vmul.f32 1.0, %v4919
      %v4921 = vrcp.pop %v4878
      %v4922 = vmul.f32 1.0, %v4921
      %v4923 = vrcp.pop %v4879
      %v4924 = vmul.f32 1.0, %v4923
      %v4925 = vrcp.pop %v4880
      %v4926 = vmul.f32 1.0, %v4925
      %v4927 = vrcp.pop %v4881
      %v4928 = vmul.f32 1.0, %v4927
      %v4929 = vrcp.pop %v4882
      %v4930 = vmul.f32 1.0, %v4929
      %v4931 = vrcp.pop %v4883
      %v4932 = vmul.f32 1.0, %v4931
      %v4933 = vrcp.pop %v4884
      %v4934 = vmul.f32 1.0, %v4933
      %v4935 = vrcp.pop %v4885
      %v4936 = vmul.f32 1.0, %v4935
      %v4937 = vrcp.pop %v4886
      %v4938 = vmul.f32 1.0, %v4937
      %v4939 = vrcp.pop %v4887
      %v4940 = vmul.f32 1.0, %v4939
      %v4941 = vrcp.pop %v4888
      %v4942 = vmul.f32 1.0, %v4941
      %v4943 = vrcp.pop %v4889
      %v4944 = vmul.f32 1.0, %v4943
      %v4945 = vrcp.pop %v4890
      %v4946 = vmul.f32 1.0, %v4945
      %v4947 = vrcp.pop %v4891
      %v4948 = vmul.f32 1.0, %v4947
      %v4949 = vrcp.pop %v4892
      %v4950 = vmul.f32 1.0, %v4949
      %v4951 = vrcp.pop %v4893
      %v4952 = vmul.f32 1.0, %v4951
      %v4953 = vrcp.pop %v4894
      %v4954 = vmul.f32 1.0, %v4953
      %v4955 = vrcp.pop %v4895
      %v4956 = vmul.f32 1.0, %v4955
      %v4957 = vrcp.pop %v4896
      %v4958 = vmul.f32 1.0, %v4957
      %v4959 = vrcp.pop %v4897
      %v4960 = vmul.f32 1.0, %v4959
      %v4961 = vrcp.pop %v4898
      %v4962 = vmul.f32 1.0, %v4961
      %4963 = vst.msk [vmem:[%s271] sm:$0xff] %vm305, %v4900
      %4964 = vst.msk [vmem:[%s271 + $0x8] sm:$0xff] %vm305, %v4902
      %4965 = vst.msk [vmem:[%s271 + $0x10] sm:$0xff] %vm305, %v4904
      %4966 = vst.msk [vmem:[%s271 + $0x18] sm:$0xff] %vm305, %v4906
      %4967 = vst.msk [vmem:[%s271 + $0x20] sm:$0xff] %vm305, %v4908
      %4968 = vst.msk [vmem:[%s271 + $0x28] sm:$0xff] %vm305, %v4910
      %4969 = vst.msk [vmem:[%s271 + $0x30] sm:$0xff] %vm305, %v4912
      %4970 = vst.msk [vmem:[%s271 + $0x38] sm:$0xff] %vm305, %v4914
      %4971 = vst.msk [vmem:[%s271 + $0x40] sm:$0xff] %vm305, %v4916
      %4972 = vst.msk [vmem:[%s271 + $0x48] sm:$0xff] %vm305, %v4918
      %4973 = vst.msk [vmem:[%s271 + $0x50] sm:$0xff] %vm305, %v4920
      %4974 = vst.msk [vmem:[%s271 + $0x58] sm:$0xff] %vm305, %v4922
      %4975 = vst.msk [vmem:[%s271 + $0x60] sm:$0xff] %vm305, %v4924
      %4976 = vst.msk [vmem:[%s271 + $0x68] sm:$0xff] %vm305, %v4926
      %4977 = vst.msk [vmem:[%s271 + $0x70] sm:$0xff] %vm305, %v4928
      %4978 = vst.msk [vmem:[%s271 + $0x78] sm:$0xff] %vm305, %v4930
      %4979 = vst.msk [vmem:[%s271 + $0x80] sm:$0xff] %vm305, %v4932
      %4980 = vst.msk [vmem:[%s271 + $0x88] sm:$0xff] %vm305, %v4934
      %4981 = vst.msk [vmem:[%s271 + $0x90] sm:$0xff] %vm305, %v4936
      %4982 = vst.msk [vmem:[%s271 + $0x98] sm:$0xff] %vm305, %v4938
      %4983 = vst.msk [vmem:[%s271 + $0xa0] sm:$0xff] %vm305, %v4940
      %4984 = vst.msk [vmem:[%s271 + $0xa8] sm:$0xff] %vm305, %v4942
      %4985 = vst.msk [vmem:[%s271 + $0xb0] sm:$0xff] %vm305, %v4944
      %4986 = vst.msk [vmem:[%s271 + $0xb8] sm:$0xff] %vm305, %v4946
      %4987 = vst.msk [vmem:[%s271 + $0xc0] sm:$0xff] %vm305, %v4948
      %4988 = vst.msk [vmem:[%s271 + $0xc8] sm:$0xff] %vm305, %v4950
      %4989 = vst.msk [vmem:[%s271 + $0xd0] sm:$0xff] %vm305, %v4952
      %4990 = vst.msk [vmem:[%s271 + $0xd8] sm:$0xff] %vm305, %v4954
      %4991 = vst.msk [vmem:[%s271 + $0xe0] sm:$0xff] %vm305, %v4956
      %4992 = vst.msk [vmem:[%s271 + $0xe8] sm:$0xff] %vm305, %v4958
      %4993 = vst.msk [vmem:[%s271 + $0xf0] sm:$0xff] %vm305, %v4960
      %4994 = vst.msk [vmem:[%s271 + $0xf8] sm:$0xff] %vm305, %v4962
      %p4995 = scmp.lt.s32.totalorder %s17, 1
      %s4996 = scalar_select %p4995, %s17, 1
      %s4997 = smul.addr %s4996, 32
      %s4998 = smul.addr %s4997, 8
      %s4999 = scalar_lea.vmem %s6, %s4998
      // Predicated region
      $region45: #{spatial_attention_forward.1} parent=43 // pred_check
        %p5000 = pneg %p171
      $region46: #{spatial_attention_forward.1} parent=43 // pred_check_branch
        %5002 = sbr.rel (%p5000) target = $region48
      $region47: #{spatial_attention_forward.1} parent=43 // pred_region
        _
      $region48: #{spatial_attention_forward.1} parent=43 // pred_fallthru
        _
    $region44: #{spatial_attention_forward.1} parent=5 // pred_fallthru
      _
    %p5003 = scmp.le.s32.totalorder 2, %s12
    // Predicated region
    $region49: #{spatial_attention_forward.1} parent=5 // pred_check
      %p5004 = pneg %p5003
    $region50: #{spatial_attention_forward.1} parent=5 // pred_check_branch
      %5006 = sbr.rel (%p5004) target = $region52
    $region51: #{spatial_attention_forward.1} parent=5 // pred_region
      %s5007 = ssub.s32 %s12, 2
      // Predicated region
      $region53: #{spatial_attention_forward.1} parent=51 // pred_check
        %p5008 = pneg %p177
      $region54: #{spatial_attention_forward.1} parent=51 // pred_check_branch
        %5010 = sbr.rel (%p5008) target = $region56
      $region55: #{spatial_attention_forward.1} parent=51 // pred_region
        %p5011 = scmp.lt.s32.totalorder %s18, 1
        %s5012 = scalar_select %p5011, %s18, 1
        %s5013 = smul.addr %s5012, 32
        %s5014 = smul.addr %s5013, 8
        %s5015 = scalar_lea.vmem %s6, %s5014
      $region56: #{spatial_attention_forward.1} parent=51 // pred_fallthru
        _
    $region52: #{spatial_attention_forward.1} parent=5 // pred_fallthru
      _
  $region6: #{spatial_attention_forward.1} parent=0 // loop_footer
    %s16 = sadd.s32 1, %s12
  $region7: #{spatial_attention_forward.1} parent=0 // loop_footer_branch
    %11 = sbr.rel target = $region3
  $region8: #{spatial_attention_forward.1} parent=0 // loop_exit
    _

</llo_original>
